<compile_context>
chip_gen: v7x
topology: tpu7x:2x2x1
jax: 0.10.0
libtpu: 0.0.40
codegen_flags: <defaults>
</compile_context>

<pallas_src>
import functools

import jax
import jax.numpy as jnp
from jax.experimental import pallas as pl
from jax.experimental.pallas import tpu as pltpu


# ---------------------------------------------------------------------------
# In-kernel helpers (traced jnp code, runs inside the Pallas kernel body).
# ---------------------------------------------------------------------------
def _mha_heads(qkv, w_out, b_out, num_heads, embed_dim):
    """Multi-head self-attention for one batch element.

    qkv: (S, 3*embed_dim) f32; the q block is already pre-scaled by
    1/sqrt(head_dim) (folded into the in-projection weights in the wrapper).
    w_out: (embed_dim, out_dim) bf16, b_out: (1, out_dim) f32.
    Head concatenation is folded into the out-projection (sum over per-head
    row blocks of w_out); the accumulator is initialised with the bias.
    """
    S = qkv.shape[0]
    out_dim = w_out.shape[1]
    dh = embed_dim // num_heads
    q = qkv[:, :embed_dim]
    k = qkv[:, embed_dim:2 * embed_dim]
    v = qkv[:, 2 * embed_dim:]
    y = jnp.broadcast_to(b_out, (S, out_dim))            # bias-initialised acc
    for h in range(num_heads):                           # static unroll
        lo = h * dh
        hi = lo + dh
        s = jnp.dot(q[:, lo:hi], k[:, lo:hi].T,
                    preferred_element_type=jnp.float32)  # (S, S)
        s = s - jnp.max(s, axis=-1, keepdims=True)
        p = jnp.exp(s)
        p = p * pl.reciprocal(jnp.sum(p, axis=-1, keepdims=True), approx=True)
        o_h = jnp.dot(p, v[:, lo:hi],
                      preferred_element_type=jnp.float32)  # (S, dh)
        y = y + jnp.dot(o_h.astype(jnp.bfloat16), w_out[lo:hi, :],
                        preferred_element_type=jnp.float32)
    return y


def _fusion_kernel(x_ref,
                   wp_ref, bp_ref,
                   win1_ref, bin1_ref, wout1_ref, bout1_ref,
                   win2x_ref, win2c_ref, bin2_ref, wout2_ref, bout2_ref,
                   wg_ref, bg_ref, wt_ref, bt_ref,
                   o_ref, *, num_heads, attn_dim, seq_len, batch_group):
    f32, bf16 = jnp.float32, jnp.bfloat16
    A, S, BG = attn_dim, seq_len, batch_group

    x = x_ref[...]                                                    # (M, F)

    # ---- per-token linears, batch folded into M = BG*S (bf16 MXU, f32 acc)
    xa = jnp.dot(x.astype(bf16), wp_ref[...],
                 preferred_element_type=f32) + bp_ref[...]            # (M, A)
    xa_b = xa.astype(bf16)

    qkv1 = jnp.dot(xa_b, win1_ref[...],
                   preferred_element_type=f32) + bin1_ref[...]        # (M, 3A)
    qkv2_x = jnp.dot(xa_b, win2x_ref[...],
                     preferred_element_type=f32)                      # (M, 6A)

    wout1, bout1 = wout1_ref[...], bout1_ref[...]
    wout2, bout2 = wout2_ref[...], bout2_ref[...]

    # ---- pass 1: first attention per batch element -> context embeddings --
    ctx_rows = []
    for b in range(BG):                                               # static unroll
        r0 = b * S
        a1_b = _mha_heads(qkv1[r0:r0 + S, :], wout1, bout1,
                          num_heads, A)                               # (S, A)
        ctx_rows.append(jnp.mean(a1_b, axis=0, keepdims=True))        # (1, A)
    ctx = ctx_rows[0] if BG == 1 else jnp.concatenate(ctx_rows, axis=0)

    # cat([xa, ctx]) @ W_in2 folded as xa @ W_in2[:A] + ctx @ W_in2[A:];
    # the ctx part is batched over the whole group in one matmul.
    ctx_qkv = jnp.dot(ctx.astype(bf16), win2c_ref[...],
                      preferred_element_type=f32) + bin2_ref[...]     # (BG, 6A)

    # ---- pass 2: second attention per batch element ----------------------
    gw_parts = []
    for b in range(BG):                                               # static unroll
        r0 = b * S
        qkv2_b = qkv2_x[r0:r0 + S, :] + ctx_qkv[b:b + 1, :]           # (S, 6A)
        gw_parts.append(_mha_heads(qkv2_b, wout2, bout2,
                                   num_heads, 2 * A))                 # (S, 2A)
    gw = gw_parts[0] if BG == 1 else jnp.concatenate(gw_parts, axis=0)

    # ---- gate_proj -> gating -> feature_transform -> relu ---------------
    gate = jnp.dot(gw.astype(bf16), wg_ref[...],
                   preferred_element_type=f32) + bg_ref[...]          # (M, A)
    gated = gate * xa
    out = jnp.dot(gated.astype(bf16), wt_ref[...],
                  preferred_element_type=f32) + bt_ref[...]           # (M, OPAD)
    o_ref[...] = jnp.maximum(out, 0.0)


# ---------------------------------------------------------------------------
# Wrapper: weight transforms (q pre-scale, win2 split, bf16 cast, output pad)
# + batch grouping + pallas_call.
# ---------------------------------------------------------------------------
def adaptive_gated_fusion(features, params, *, num_heads, attn_dim, output_dim,
                          num_groups=None):
    B, S, F = features.shape
    A = attn_dim
    bf16 = jnp.bfloat16

    # --- one-time weight transforms ---------------------------------------
    scale1 = 1.0 / ((A // num_heads) ** 0.5)
    scale2 = 1.0 / ((2 * A // num_heads) ** 0.5)

    wp = params["wp"].astype(bf16)
    bp = params["bp"]
    win1 = params["win1"].at[:, :A].multiply(scale1).astype(bf16)
    bin1 = params["bin1"].at[:, :A].multiply(scale1)
    wout1 = params["wout1"].astype(bf16)
    bout1 = params["bout1"]
    win2 = params["win2"].at[:, :2 * A].multiply(scale2)
    win2x = win2[:A, :].astype(bf16)          # multiplies features_aligned
    win2c = win2[A:, :].astype(bf16)          # multiplies the context embedding
    bin2 = params["bin2"].at[:, :2 * A].multiply(scale2)
    wout2 = params["wout2"].astype(bf16)
    bout2 = params["bout2"]
    wg = params["wg"].astype(bf16)
    bg_b = params["bg"]

    opad = ((output_dim + 127) // 128) * 128  # lane-dense output width
    wt = jnp.zeros((A, opad), jnp.float32).at[:, :output_dim].set(params["wt"])
    wt = wt.astype(bf16)
    bt = jnp.zeros((1, opad), jnp.float32).at[:, :output_dim].set(params["bt"])

    # --- batch grouping: 2 parallel groups keep both v7x TensorCores busy --
    if num_groups is None:
        num_groups = 2 if B >= 2 else 1
    if ((-(-B // num_groups)) * S) % 8 != 0:  # keep blocks sublane-aligned
        num_groups = 1
    bg_sz = -(-B // num_groups)               # batch elements per grid step
    b_pad = bg_sz * num_groups
    x = features
    if b_pad != B:
        x = jnp.concatenate(
            [x, jnp.zeros((b_pad - B, S, F), x.dtype)], axis=0)
    x2 = x.reshape(b_pad * S, F)              # fold batch into the matmul M dim
    M = bg_sz * S

    param_list = [wp, bp, win1, bin1, wout1, bout1, win2x, win2c, bin2,
                  wout2, bout2, wg, bg_b, wt, bt]

    in_specs = [pl.BlockSpec((M, F), lambda g: (g, 0))] + [
        pl.BlockSpec(p.shape, lambda g: (0, 0)) for p in param_list
    ]
    out_specs = pl.BlockSpec((M, opad), lambda g: (g, 0))

    kernel = functools.partial(_fusion_kernel, num_heads=num_heads,
                               attn_dim=A, seq_len=S, batch_group=bg_sz)

    out_flat = pl.pallas_call(
        kernel,
        out_shape=jax.ShapeDtypeStruct((b_pad * S, opad), jnp.float32),
        grid=(num_groups,),
        in_specs=in_specs,
        out_specs=out_specs,
        compiler_params=pltpu.CompilerParams(
            dimension_semantics=("parallel",)),
    )(x2, *param_list)

    return out_flat.reshape(b_pad, S, opad)[:B, :, :output_dim]


# ---------------------------------------------------------------------------
# Deterministic parameter initialization (synthetic weights, PyTorch shapes
# transposed to (in, out); biases kept 2D (1, out) for TPU friendliness).
# ---------------------------------------------------------------------------
def init_params(key, feature_dim, attn_dim, output_dim):
    e2 = 2 * attn_dim
    shapes = {
        "wp":    (feature_dim, attn_dim),  "bp":    (1, attn_dim),
        "win1":  (attn_dim, 3 * attn_dim), "bin1":  (1, 3 * attn_dim),
        "wout1": (attn_dim, attn_dim),     "bout1": (1, attn_dim),
        "win2":  (e2, 3 * e2),             "bin2":  (1, 3 * e2),
        "wout2": (e2, e2),                 "bout2": (1, e2),
        "wg":    (e2, attn_dim),           "bg":    (1, attn_dim),
        "wt":    (attn_dim, output_dim),   "bt":    (1, output_dim),
    }
    params = {}
    keys = jax.random.split(key, len(shapes))
    for k, (name, shp) in zip(keys, sorted(shapes.items())):
        scale = 0.05 if name.startswith("w") else 0.01
        params[name] = (scale * jax.random.normal(k, shp)).astype(jnp.float32)
    return params


# ---------------------------------------------------------------------------
# Pure-JAX fp32 reference (mirrors the PyTorch forward) for a sanity check.
# ---------------------------------------------------------------------------
def reference_forward(features, p, *, num_heads, attn_dim, output_dim):
    def mha(x, w_in_t, b_in, w_out_t, b_out, embed_dim):
        B, S, E = x.shape
        dh = embed_dim // num_heads
        qkv = x @ w_in_t + b_in                       # (B, S, 3E)
        q, k, v = jnp.split(qkv, 3, axis=-1)
        def heads(t):
            return t.reshape(B, S, num_heads, dh).transpose(0, 2, 1, 3)
        q, k, v = heads(q) / jnp.sqrt(dh), heads(k), heads(v)
        s = jnp.einsum("bhqd,bhkd->bhqk", q, k)
        a = jax.nn.softmax(s, axis=-1)
        o = jnp.einsum("bhqk,bhkd->bhqd", a, v)
        o = o.transpose(0, 2, 1, 3).reshape(B, S, embed_dim)
        return o @ w_out_t + b_out

    xa = features @ p["wp"] + p["bp"]
    a1 = mha(xa, p["win1"], p["bin1"], p["wout1"], p["bout1"], attn_dim)
    ctx = jnp.mean(a1, axis=1, keepdims=True)
    combined = jnp.concatenate(
        [xa, jnp.broadcast_to(ctx, xa.shape)], axis=-1)
    gw = mha(combined, p["win2"], p["bin2"], p["wout2"], p["bout2"],
             2 * attn_dim)
    gate = gw @ p["wg"] + p["bg"]
    out = (gate * xa) @ p["wt"] + p["bt"]
    return jax.nn.relu(out)


if __name__ == "__main__":
    # Small shapes consistent with the module: (batch, seq, feature_dim)
    B, S, FEATURE_DIM = 2, 8, 32
    NUM_HEADS, ATTN_DIM, OUTPUT_DIM = 4, 128, 64

    key = jax.random.PRNGKey(0)
    k_x, k_p = jax.random.split(key)
    features = jax.random.normal(k_x, (B, S, FEATURE_DIM), dtype=jnp.float32)
    params = init_params(k_p, FEATURE_DIM, ATTN_DIM, OUTPUT_DIM)

    out = adaptive_gated_fusion(features, params,
                                num_heads=NUM_HEADS,
                                attn_dim=ATTN_DIM,
                                output_dim=OUTPUT_DIM)
    out = jax.block_until_ready(out)

    ref = reference_forward(features, params,
                            num_heads=NUM_HEADS,
                            attn_dim=ATTN_DIM,
                            output_dim=OUTPUT_DIM)
    assert out.shape == (B, S, OUTPUT_DIM)
    max_err = float(jnp.max(jnp.abs(out - ref)))
    # bf16 MXU operands + approx reciprocal => slightly looser-than-fp32 check
    assert jnp.allclose(out, ref, atol=2e-3, rtol=2e-2), max_err

    print("KERNEL_OK")
</pallas_src>

<mosaic_0001>
module attributes {stable_mosaic.version = 11 : i64} {
  func.func @_fusion_kernel(%arg0: i32, %arg1: memref<8x32xf32, #tpu.memory_space<vmem>>, %arg2: memref<32x128xbf16, #tpu.memory_space<vmem>>, %arg3: memref<1x128xf32, #tpu.memory_space<vmem>>, %arg4: memref<128x384xbf16, #tpu.memory_space<vmem>>, %arg5: memref<1x384xf32, #tpu.memory_space<vmem>>, %arg6: memref<128x128xbf16, #tpu.memory_space<vmem>>, %arg7: memref<1x128xf32, #tpu.memory_space<vmem>>, %arg8: memref<128x768xbf16, #tpu.memory_space<vmem>>, %arg9: memref<128x768xbf16, #tpu.memory_space<vmem>>, %arg10: memref<1x768xf32, #tpu.memory_space<vmem>>, %arg11: memref<256x256xbf16, #tpu.memory_space<vmem>>, %arg12: memref<1x256xf32, #tpu.memory_space<vmem>>, %arg13: memref<256x128xbf16, #tpu.memory_space<vmem>>, %arg14: memref<1x128xf32, #tpu.memory_space<vmem>>, %arg15: memref<128x128xbf16, #tpu.memory_space<vmem>>, %arg16: memref<1x128xf32, #tpu.memory_space<vmem>>, %arg17: memref<8x128xf32, #tpu.memory_space<vmem>>) attributes {dimension_semantics = [#tpu.dimension_semantics<parallel>], iteration_bounds = array<i64: 2>, scalar_prefetch = 0 : i64, scratch_operands = 0 : i64, tpu.core_type = #tpu.core_type<tc>, window_params = [{transform_indices = @transform_0, window_bounds = array<i64: 8, 32>}, {pipeline_mode = #tpu.pipeline_mode<synchronous>, transform_indices = @transform_1, window_bounds = array<i64: 32, 128>}, {pipeline_mode = #tpu.pipeline_mode<synchronous>, transform_indices = @transform_2, window_bounds = array<i64: 1, 128>}, {pipeline_mode = #tpu.pipeline_mode<synchronous>, transform_indices = @transform_3, window_bounds = array<i64: 128, 384>}, {pipeline_mode = #tpu.pipeline_mode<synchronous>, transform_indices = @transform_4, window_bounds = array<i64: 1, 384>}, {pipeline_mode = #tpu.pipeline_mode<synchronous>, transform_indices = @transform_5, window_bounds = array<i64: 128, 128>}, {pipeline_mode = #tpu.pipeline_mode<synchronous>, transform_indices = @transform_6, window_bounds = array<i64: 1, 128>}, {pipeline_mode = #tpu.pipeline_mode<synchronous>, transform_indices = @transform_7, window_bounds = array<i64: 128, 768>}, {pipeline_mode = #tpu.pipeline_mode<synchronous>, transform_indices = @transform_8, window_bounds = array<i64: 128, 768>}, {pipeline_mode = #tpu.pipeline_mode<synchronous>, transform_indices = @transform_9, window_bounds = array<i64: 1, 768>}, {pipeline_mode = #tpu.pipeline_mode<synchronous>, transform_indices = @transform_10, window_bounds = array<i64: 256, 256>}, {pipeline_mode = #tpu.pipeline_mode<synchronous>, transform_indices = @transform_11, window_bounds = array<i64: 1, 256>}, {pipeline_mode = #tpu.pipeline_mode<synchronous>, transform_indices = @transform_12, window_bounds = array<i64: 256, 128>}, {pipeline_mode = #tpu.pipeline_mode<synchronous>, transform_indices = @transform_13, window_bounds = array<i64: 1, 128>}, {pipeline_mode = #tpu.pipeline_mode<synchronous>, transform_indices = @transform_14, window_bounds = array<i64: 128, 128>}, {pipeline_mode = #tpu.pipeline_mode<synchronous>, transform_indices = @transform_15, window_bounds = array<i64: 1, 128>}, {transform_indices = @transform_16, window_bounds = array<i64: 8, 128>}]} {
    %c0 = arith.constant 0 : index
    %c0_0 = arith.constant 0 : index
    %0 = vector.load %arg1[%c0, %c0_0] : memref<8x32xf32, #tpu.memory_space<vmem>>, vector<8x32xf32>
    %1 = arith.truncf %0 : vector<8x32xf32> to vector<8x32xbf16>
    %c0_1 = arith.constant 0 : index
    %c0_2 = arith.constant 0 : index
    %2 = vector.load %arg2[%c0_1, %c0_2] : memref<32x128xbf16, #tpu.memory_space<vmem>>, vector<32x128xbf16>
    %cst = arith.constant dense<0.000000e+00> : vector<8x128xf32>
    %3 = tpu.matmul %1, %2, %cst {dimension_numbers = #tpu.dot_dimension_numbers<[1], [0], [0], [1], [0, 0, 1, 1], [], []>} : vector<8x32xbf16>, vector<32x128xbf16>, vector<8x128xf32> -> vector<8x128xf32>
    %c0_3 = arith.constant 0 : index
    %c0_4 = arith.constant 0 : index
    %4 = vector.load %arg3[%c0_3, %c0_4] : memref<1x128xf32, #tpu.memory_space<vmem>>, vector<1x128xf32>
    %5 = vector.broadcast %4 : vector<1x128xf32> to vector<8x128xf32>
    %6 = arith.addf %3, %5 : vector<8x128xf32>
    %7 = arith.truncf %6 : vector<8x128xf32> to vector<8x128xbf16>
    %c0_5 = arith.constant 0 : index
    %c0_6 = arith.constant 0 : index
    %8 = vector.load %arg4[%c0_5, %c0_6] : memref<128x384xbf16, #tpu.memory_space<vmem>>, vector<128x384xbf16>
    %cst_7 = arith.constant dense<0.000000e+00> : vector<8x384xf32>
    %9 = tpu.matmul %7, %8, %cst_7 {dimension_numbers = #tpu.dot_dimension_numbers<[1], [0], [0], [1], [0, 0, 1, 1], [], []>} : vector<8x128xbf16>, vector<128x384xbf16>, vector<8x384xf32> -> vector<8x384xf32>
    %c0_8 = arith.constant 0 : index
    %c0_9 = arith.constant 0 : index
    %10 = vector.load %arg5[%c0_8, %c0_9] : memref<1x384xf32, #tpu.memory_space<vmem>>, vector<1x384xf32>
    %11 = vector.broadcast %10 : vector<1x384xf32> to vector<8x384xf32>
    %12 = arith.addf %9, %11 : vector<8x384xf32>
    %c0_10 = arith.constant 0 : index
    %c0_11 = arith.constant 0 : index
    %13 = vector.load %arg8[%c0_10, %c0_11] : memref<128x768xbf16, #tpu.memory_space<vmem>>, vector<128x768xbf16>
    %cst_12 = arith.constant dense<0.000000e+00> : vector<8x768xf32>
    %14 = tpu.matmul %7, %13, %cst_12 {dimension_numbers = #tpu.dot_dimension_numbers<[1], [0], [0], [1], [0, 0, 1, 1], [], []>} : vector<8x128xbf16>, vector<128x768xbf16>, vector<8x768xf32> -> vector<8x768xf32>
    %c0_13 = arith.constant 0 : index
    %c0_14 = arith.constant 0 : index
    %15 = vector.load %arg6[%c0_13, %c0_14] : memref<128x128xbf16, #tpu.memory_space<vmem>>, vector<128x128xbf16>
    %c0_15 = arith.constant 0 : index
    %c0_16 = arith.constant 0 : index
    %16 = vector.load %arg7[%c0_15, %c0_16] : memref<1x128xf32, #tpu.memory_space<vmem>>, vector<1x128xf32>
    %c0_17 = arith.constant 0 : index
    %c0_18 = arith.constant 0 : index
    %17 = vector.load %arg11[%c0_17, %c0_18] : memref<256x256xbf16, #tpu.memory_space<vmem>>, vector<256x256xbf16>
    %c0_19 = arith.constant 0 : index
    %c0_20 = arith.constant 0 : index
    %18 = vector.load %arg12[%c0_19, %c0_20] : memref<1x256xf32, #tpu.memory_space<vmem>>, vector<1x256xf32>
    %19 = vector.extract_strided_slice %12 {offsets = [0, 0], sizes = [8, 128], strides = [1, 1]} : vector<8x384xf32> to vector<8x128xf32>
    %20 = vector.extract_strided_slice %12 {offsets = [0, 128], sizes = [8, 128], strides = [1, 1]} : vector<8x384xf32> to vector<8x128xf32>
    %21 = vector.extract_strided_slice %12 {offsets = [0, 256], sizes = [8, 128], strides = [1, 1]} : vector<8x384xf32> to vector<8x128xf32>
    %22 = vector.shape_cast %16 : vector<1x128xf32> to vector<1x128xf32>
    %23 = vector.broadcast %22 : vector<1x128xf32> to vector<8x128xf32>
    %24 = vector.extract_strided_slice %19 {offsets = [0, 0], sizes = [8, 32], strides = [1, 1]} : vector<8x128xf32> to vector<8x32xf32>
    %25 = vector.extract_strided_slice %20 {offsets = [0, 0], sizes = [8, 32], strides = [1, 1]} : vector<8x128xf32> to vector<8x32xf32>
    %26 = tpu.transpose %25, [1, 0] : vector<8x32xf32> -> vector<32x8xf32>
    %cst_21 = arith.constant dense<0.000000e+00> : vector<8x8xf32>
    %27 = tpu.matmul %24, %26, %cst_21 {dimension_numbers = #tpu.dot_dimension_numbers<[1], [0], [0], [1], [0, 0, 1, 1], [], []>} : vector<8x32xf32>, vector<32x8xf32>, vector<8x8xf32> -> vector<8x8xf32>
    %cst_22 = arith.constant dense<0xFF800000> : vector<8xf32>
    %28 = vector.multi_reduction <maximumf>, %27, %cst_22 [1] : vector<8x8xf32> to vector<8xf32>
    %29 = vector.shape_cast %28 : vector<8xf32> to vector<8x1xf32>
    %30 = vector.broadcast %29 : vector<8x1xf32> to vector<8x8xf32>
    %31 = arith.subf %27, %30 : vector<8x8xf32>
    %32 = math.exp %31 : vector<8x8xf32>
    %cst_23 = arith.constant dense<0.000000e+00> : vector<8xf32>
    %33 = vector.multi_reduction <add>, %32, %cst_23 [1] : vector<8x8xf32> to vector<8xf32>
    %34 = vector.shape_cast %33 : vector<8xf32> to vector<8x1xf32>
    %35 = tpu.reciprocal %34 {approx = true} : vector<8x1xf32> -> vector<8x1xf32>
    %36 = vector.broadcast %35 : vector<8x1xf32> to vector<8x8xf32>
    %37 = arith.mulf %32, %36 : vector<8x8xf32>
    %38 = vector.extract_strided_slice %21 {offsets = [0, 0], sizes = [8, 32], strides = [1, 1]} : vector<8x128xf32> to vector<8x32xf32>
    %cst_24 = arith.constant dense<0.000000e+00> : vector<8x32xf32>
    %39 = tpu.matmul %37, %38, %cst_24 {dimension_numbers = #tpu.dot_dimension_numbers<[1], [0], [0], [1], [0, 0, 1, 1], [], []>} : vector<8x8xf32>, vector<8x32xf32>, vector<8x32xf32> -> vector<8x32xf32>
    %40 = arith.truncf %39 : vector<8x32xf32> to vector<8x32xbf16>
    %41 = vector.extract_strided_slice %15 {offsets = [0, 0], sizes = [32, 128], strides = [1, 1]} : vector<128x128xbf16> to vector<32x128xbf16>
    %cst_25 = arith.constant dense<0.000000e+00> : vector<8x128xf32>
    %42 = tpu.matmul %40, %41, %cst_25 {dimension_numbers = #tpu.dot_dimension_numbers<[1], [0], [0], [1], [0, 0, 1, 1], [], []>} : vector<8x32xbf16>, vector<32x128xbf16>, vector<8x128xf32> -> vector<8x128xf32>
    %43 = arith.addf %23, %42 : vector<8x128xf32>
    %44 = vector.extract_strided_slice %19 {offsets = [0, 32], sizes = [8, 32], strides = [1, 1]} : vector<8x128xf32> to vector<8x32xf32>
    %45 = vector.extract_strided_slice %20 {offsets = [0, 32], sizes = [8, 32], strides = [1, 1]} : vector<8x128xf32> to vector<8x32xf32>
    %46 = tpu.transpose %45, [1, 0] : vector<8x32xf32> -> vector<32x8xf32>
    %cst_26 = arith.constant dense<0.000000e+00> : vector<8x8xf32>
    %47 = tpu.matmul %44, %46, %cst_26 {dimension_numbers = #tpu.dot_dimension_numbers<[1], [0], [0], [1], [0, 0, 1, 1], [], []>} : vector<8x32xf32>, vector<32x8xf32>, vector<8x8xf32> -> vector<8x8xf32>
    %cst_27 = arith.constant dense<0xFF800000> : vector<8xf32>
    %48 = vector.multi_reduction <maximumf>, %47, %cst_27 [1] : vector<8x8xf32> to vector<8xf32>
    %49 = vector.shape_cast %48 : vector<8xf32> to vector<8x1xf32>
    %50 = vector.broadcast %49 : vector<8x1xf32> to vector<8x8xf32>
    %51 = arith.subf %47, %50 : vector<8x8xf32>
    %52 = math.exp %51 : vector<8x8xf32>
    %cst_28 = arith.constant dense<0.000000e+00> : vector<8xf32>
    %53 = vector.multi_reduction <add>, %52, %cst_28 [1] : vector<8x8xf32> to vector<8xf32>
    %54 = vector.shape_cast %53 : vector<8xf32> to vector<8x1xf32>
    %55 = tpu.reciprocal %54 {approx = true} : vector<8x1xf32> -> vector<8x1xf32>
    %56 = vector.broadcast %55 : vector<8x1xf32> to vector<8x8xf32>
    %57 = arith.mulf %52, %56 : vector<8x8xf32>
    %58 = vector.extract_strided_slice %21 {offsets = [0, 32], sizes = [8, 32], strides = [1, 1]} : vector<8x128xf32> to vector<8x32xf32>
    %cst_29 = arith.constant dense<0.000000e+00> : vector<8x32xf32>
    %59 = tpu.matmul %57, %58, %cst_29 {dimension_numbers = #tpu.dot_dimension_numbers<[1], [0], [0], [1], [0, 0, 1, 1], [], []>} : vector<8x8xf32>, vector<8x32xf32>, vector<8x32xf32> -> vector<8x32xf32>
    %60 = arith.truncf %59 : vector<8x32xf32> to vector<8x32xbf16>
    %61 = vector.extract_strided_slice %15 {offsets = [32, 0], sizes = [32, 128], strides = [1, 1]} : vector<128x128xbf16> to vector<32x128xbf16>
    %cst_30 = arith.constant dense<0.000000e+00> : vector<8x128xf32>
    %62 = tpu.matmul %60, %61, %cst_30 {dimension_numbers = #tpu.dot_dimension_numbers<[1], [0], [0], [1], [0, 0, 1, 1], [], []>} : vector<8x32xbf16>, vector<32x128xbf16>, vector<8x128xf32> -> vector<8x128xf32>
    %63 = arith.addf %43, %62 : vector<8x128xf32>
    %64 = vector.extract_strided_slice %19 {offsets = [0, 64], sizes = [8, 32], strides = [1, 1]} : vector<8x128xf32> to vector<8x32xf32>
    %65 = vector.extract_strided_slice %20 {offsets = [0, 64], sizes = [8, 32], strides = [1, 1]} : vector<8x128xf32> to vector<8x32xf32>
    %66 = tpu.transpose %65, [1, 0] : vector<8x32xf32> -> vector<32x8xf32>
    %cst_31 = arith.constant dense<0.000000e+00> : vector<8x8xf32>
    %67 = tpu.matmul %64, %66, %cst_31 {dimension_numbers = #tpu.dot_dimension_numbers<[1], [0], [0], [1], [0, 0, 1, 1], [], []>} : vector<8x32xf32>, vector<32x8xf32>, vector<8x8xf32> -> vector<8x8xf32>
    %cst_32 = arith.constant dense<0xFF800000> : vector<8xf32>
    %68 = vector.multi_reduction <maximumf>, %67, %cst_32 [1] : vector<8x8xf32> to vector<8xf32>
    %69 = vector.shape_cast %68 : vector<8xf32> to vector<8x1xf32>
    %70 = vector.broadcast %69 : vector<8x1xf32> to vector<8x8xf32>
    %71 = arith.subf %67, %70 : vector<8x8xf32>
    %72 = math.exp %71 : vector<8x8xf32>
    %cst_33 = arith.constant dense<0.000000e+00> : vector<8xf32>
    %73 = vector.multi_reduction <add>, %72, %cst_33 [1] : vector<8x8xf32> to vector<8xf32>
    %74 = vector.shape_cast %73 : vector<8xf32> to vector<8x1xf32>
    %75 = tpu.reciprocal %74 {approx = true} : vector<8x1xf32> -> vector<8x1xf32>
    %76 = vector.broadcast %75 : vector<8x1xf32> to vector<8x8xf32>
    %77 = arith.mulf %72, %76 : vector<8x8xf32>
    %78 = vector.extract_strided_slice %21 {offsets = [0, 64], sizes = [8, 32], strides = [1, 1]} : vector<8x128xf32> to vector<8x32xf32>
    %cst_34 = arith.constant dense<0.000000e+00> : vector<8x32xf32>
    %79 = tpu.matmul %77, %78, %cst_34 {dimension_numbers = #tpu.dot_dimension_numbers<[1], [0], [0], [1], [0, 0, 1, 1], [], []>} : vector<8x8xf32>, vector<8x32xf32>, vector<8x32xf32> -> vector<8x32xf32>
    %80 = arith.truncf %79 : vector<8x32xf32> to vector<8x32xbf16>
    %81 = vector.extract_strided_slice %15 {offsets = [64, 0], sizes = [32, 128], strides = [1, 1]} : vector<128x128xbf16> to vector<32x128xbf16>
    %cst_35 = arith.constant dense<0.000000e+00> : vector<8x128xf32>
    %82 = tpu.matmul %80, %81, %cst_35 {dimension_numbers = #tpu.dot_dimension_numbers<[1], [0], [0], [1], [0, 0, 1, 1], [], []>} : vector<8x32xbf16>, vector<32x128xbf16>, vector<8x128xf32> -> vector<8x128xf32>
    %83 = arith.addf %63, %82 : vector<8x128xf32>
    %84 = vector.extract_strided_slice %19 {offsets = [0, 96], sizes = [8, 32], strides = [1, 1]} : vector<8x128xf32> to vector<8x32xf32>
    %85 = vector.extract_strided_slice %20 {offsets = [0, 96], sizes = [8, 32], strides = [1, 1]} : vector<8x128xf32> to vector<8x32xf32>
    %86 = tpu.transpose %85, [1, 0] : vector<8x32xf32> -> vector<32x8xf32>
    %cst_36 = arith.constant dense<0.000000e+00> : vector<8x8xf32>
    %87 = tpu.matmul %84, %86, %cst_36 {dimension_numbers = #tpu.dot_dimension_numbers<[1], [0], [0], [1], [0, 0, 1, 1], [], []>} : vector<8x32xf32>, vector<32x8xf32>, vector<8x8xf32> -> vector<8x8xf32>
    %cst_37 = arith.constant dense<0xFF800000> : vector<8xf32>
    %88 = vector.multi_reduction <maximumf>, %87, %cst_37 [1] : vector<8x8xf32> to vector<8xf32>
    %89 = vector.shape_cast %88 : vector<8xf32> to vector<8x1xf32>
    %90 = vector.broadcast %89 : vector<8x1xf32> to vector<8x8xf32>
    %91 = arith.subf %87, %90 : vector<8x8xf32>
    %92 = math.exp %91 : vector<8x8xf32>
    %cst_38 = arith.constant dense<0.000000e+00> : vector<8xf32>
    %93 = vector.multi_reduction <add>, %92, %cst_38 [1] : vector<8x8xf32> to vector<8xf32>
    %94 = vector.shape_cast %93 : vector<8xf32> to vector<8x1xf32>
    %95 = tpu.reciprocal %94 {approx = true} : vector<8x1xf32> -> vector<8x1xf32>
    %96 = vector.broadcast %95 : vector<8x1xf32> to vector<8x8xf32>
    %97 = arith.mulf %92, %96 : vector<8x8xf32>
    %98 = vector.extract_strided_slice %21 {offsets = [0, 96], sizes = [8, 32], strides = [1, 1]} : vector<8x128xf32> to vector<8x32xf32>
    %cst_39 = arith.constant dense<0.000000e+00> : vector<8x32xf32>
    %99 = tpu.matmul %97, %98, %cst_39 {dimension_numbers = #tpu.dot_dimension_numbers<[1], [0], [0], [1], [0, 0, 1, 1], [], []>} : vector<8x8xf32>, vector<8x32xf32>, vector<8x32xf32> -> vector<8x32xf32>
    %100 = arith.truncf %99 : vector<8x32xf32> to vector<8x32xbf16>
    %101 = vector.extract_strided_slice %15 {offsets = [96, 0], sizes = [32, 128], strides = [1, 1]} : vector<128x128xbf16> to vector<32x128xbf16>
    %cst_40 = arith.constant dense<0.000000e+00> : vector<8x128xf32>
    %102 = tpu.matmul %100, %101, %cst_40 {dimension_numbers = #tpu.dot_dimension_numbers<[1], [0], [0], [1], [0, 0, 1, 1], [], []>} : vector<8x32xbf16>, vector<32x128xbf16>, vector<8x128xf32> -> vector<8x128xf32>
    %103 = arith.addf %83, %102 : vector<8x128xf32>
    %cst_41 = arith.constant dense<0.000000e+00> : vector<128xf32>
    %104 = vector.multi_reduction <add>, %103, %cst_41 [0] : vector<8x128xf32> to vector<128xf32>
    %105 = vector.shape_cast %104 : vector<128xf32> to vector<1x128xf32>
    %cst_42 = arith.constant 8.000000e+00 : f32
    %106 = vector.broadcast %cst_42 : f32 to vector<1x128xf32>
    %107 = arith.divf %105, %106 : vector<1x128xf32>
    %108 = arith.truncf %107 : vector<1x128xf32> to vector<1x128xbf16>
    %c0_43 = arith.constant 0 : index
    %c0_44 = arith.constant 0 : index
    %109 = vector.load %arg9[%c0_43, %c0_44] : memref<128x768xbf16, #tpu.memory_space<vmem>>, vector<128x768xbf16>
    %cst_45 = arith.constant dense<0.000000e+00> : vector<1x768xf32>
    %110 = tpu.matmul %108, %109, %cst_45 {dimension_numbers = #tpu.dot_dimension_numbers<[1], [0], [0], [1], [0, 0, 1, 1], [], []>} : vector<1x128xbf16>, vector<128x768xbf16>, vector<1x768xf32> -> vector<1x768xf32>
    %c0_46 = arith.constant 0 : index
    %c0_47 = arith.constant 0 : index
    %111 = vector.load %arg10[%c0_46, %c0_47] : memref<1x768xf32, #tpu.memory_space<vmem>>, vector<1x768xf32>
    %112 = arith.addf %110, %111 : vector<1x768xf32>
    %113 = vector.broadcast %112 : vector<1x768xf32> to vector<8x768xf32>
    %114 = arith.addf %14, %113 : vector<8x768xf32>
    %115 = vector.extract_strided_slice %114 {offsets = [0, 0], sizes = [8, 256], strides = [1, 1]} : vector<8x768xf32> to vector<8x256xf32>
    %116 = vector.extract_strided_slice %114 {offsets = [0, 256], sizes = [8, 256], strides = [1, 1]} : vector<8x768xf32> to vector<8x256xf32>
    %117 = vector.extract_strided_slice %114 {offsets = [0, 512], sizes = [8, 256], strides = [1, 1]} : vector<8x768xf32> to vector<8x256xf32>
    %118 = vector.shape_cast %18 : vector<1x256xf32> to vector<1x256xf32>
    %119 = vector.broadcast %118 : vector<1x256xf32> to vector<8x256xf32>
    %120 = vector.extract_strided_slice %115 {offsets = [0, 0], sizes = [8, 64], strides = [1, 1]} : vector<8x256xf32> to vector<8x64xf32>
    %121 = vector.extract_strided_slice %116 {offsets = [0, 0], sizes = [8, 64], strides = [1, 1]} : vector<8x256xf32> to vector<8x64xf32>
    %122 = tpu.transpose %121, [1, 0] : vector<8x64xf32> -> vector<64x8xf32>
    %cst_48 = arith.constant dense<0.000000e+00> : vector<8x8xf32>
    %123 = tpu.matmul %120, %122, %cst_48 {dimension_numbers = #tpu.dot_dimension_numbers<[1], [0], [0], [1], [0, 0, 1, 1], [], []>} : vector<8x64xf32>, vector<64x8xf32>, vector<8x8xf32> -> vector<8x8xf32>
    %cst_49 = arith.constant dense<0xFF800000> : vector<8xf32>
    %124 = vector.multi_reduction <maximumf>, %123, %cst_49 [1] : vector<8x8xf32> to vector<8xf32>
    %125 = vector.shape_cast %124 : vector<8xf32> to vector<8x1xf32>
    %126 = vector.broadcast %125 : vector<8x1xf32> to vector<8x8xf32>
    %127 = arith.subf %123, %126 : vector<8x8xf32>
    %128 = math.exp %127 : vector<8x8xf32>
    %cst_50 = arith.constant dense<0.000000e+00> : vector<8xf32>
    %129 = vector.multi_reduction <add>, %128, %cst_50 [1] : vector<8x8xf32> to vector<8xf32>
    %130 = vector.shape_cast %129 : vector<8xf32> to vector<8x1xf32>
    %131 = tpu.reciprocal %130 {approx = true} : vector<8x1xf32> -> vector<8x1xf32>
    %132 = vector.broadcast %131 : vector<8x1xf32> to vector<8x8xf32>
    %133 = arith.mulf %128, %132 : vector<8x8xf32>
    %134 = vector.extract_strided_slice %117 {offsets = [0, 0], sizes = [8, 64], strides = [1, 1]} : vector<8x256xf32> to vector<8x64xf32>
    %cst_51 = arith.constant dense<0.000000e+00> : vector<8x64xf32>
    %135 = tpu.matmul %133, %134, %cst_51 {dimension_numbers = #tpu.dot_dimension_numbers<[1], [0], [0], [1], [0, 0, 1, 1], [], []>} : vector<8x8xf32>, vector<8x64xf32>, vector<8x64xf32> -> vector<8x64xf32>
    %136 = arith.truncf %135 : vector<8x64xf32> to vector<8x64xbf16>
    %137 = vector.extract_strided_slice %17 {offsets = [0, 0], sizes = [64, 256], strides = [1, 1]} : vector<256x256xbf16> to vector<64x256xbf16>
    %cst_52 = arith.constant dense<0.000000e+00> : vector<8x256xf32>
    %138 = tpu.matmul %136, %137, %cst_52 {dimension_numbers = #tpu.dot_dimension_numbers<[1], [0], [0], [1], [0, 0, 1, 1], [], []>} : vector<8x64xbf16>, vector<64x256xbf16>, vector<8x256xf32> -> vector<8x256xf32>
    %139 = arith.addf %119, %138 : vector<8x256xf32>
    %140 = vector.extract_strided_slice %115 {offsets = [0, 64], sizes = [8, 64], strides = [1, 1]} : vector<8x256xf32> to vector<8x64xf32>
    %141 = vector.extract_strided_slice %116 {offsets = [0, 64], sizes = [8, 64], strides = [1, 1]} : vector<8x256xf32> to vector<8x64xf32>
    %142 = tpu.transpose %141, [1, 0] : vector<8x64xf32> -> vector<64x8xf32>
    %cst_53 = arith.constant dense<0.000000e+00> : vector<8x8xf32>
    %143 = tpu.matmul %140, %142, %cst_53 {dimension_numbers = #tpu.dot_dimension_numbers<[1], [0], [0], [1], [0, 0, 1, 1], [], []>} : vector<8x64xf32>, vector<64x8xf32>, vector<8x8xf32> -> vector<8x8xf32>
    %cst_54 = arith.constant dense<0xFF800000> : vector<8xf32>
    %144 = vector.multi_reduction <maximumf>, %143, %cst_54 [1] : vector<8x8xf32> to vector<8xf32>
    %145 = vector.shape_cast %144 : vector<8xf32> to vector<8x1xf32>
    %146 = vector.broadcast %145 : vector<8x1xf32> to vector<8x8xf32>
    %147 = arith.subf %143, %146 : vector<8x8xf32>
    %148 = math.exp %147 : vector<8x8xf32>
    %cst_55 = arith.constant dense<0.000000e+00> : vector<8xf32>
    %149 = vector.multi_reduction <add>, %148, %cst_55 [1] : vector<8x8xf32> to vector<8xf32>
    %150 = vector.shape_cast %149 : vector<8xf32> to vector<8x1xf32>
    %151 = tpu.reciprocal %150 {approx = true} : vector<8x1xf32> -> vector<8x1xf32>
    %152 = vector.broadcast %151 : vector<8x1xf32> to vector<8x8xf32>
    %153 = arith.mulf %148, %152 : vector<8x8xf32>
    %154 = vector.extract_strided_slice %117 {offsets = [0, 64], sizes = [8, 64], strides = [1, 1]} : vector<8x256xf32> to vector<8x64xf32>
    %cst_56 = arith.constant dense<0.000000e+00> : vector<8x64xf32>
    %155 = tpu.matmul %153, %154, %cst_56 {dimension_numbers = #tpu.dot_dimension_numbers<[1], [0], [0], [1], [0, 0, 1, 1], [], []>} : vector<8x8xf32>, vector<8x64xf32>, vector<8x64xf32> -> vector<8x64xf32>
    %156 = arith.truncf %155 : vector<8x64xf32> to vector<8x64xbf16>
    %157 = vector.extract_strided_slice %17 {offsets = [64, 0], sizes = [64, 256], strides = [1, 1]} : vector<256x256xbf16> to vector<64x256xbf16>
    %cst_57 = arith.constant dense<0.000000e+00> : vector<8x256xf32>
    %158 = tpu.matmul %156, %157, %cst_57 {dimension_numbers = #tpu.dot_dimension_numbers<[1], [0], [0], [1], [0, 0, 1, 1], [], []>} : vector<8x64xbf16>, vector<64x256xbf16>, vector<8x256xf32> -> vector<8x256xf32>
    %159 = arith.addf %139, %158 : vector<8x256xf32>
    %160 = vector.extract_strided_slice %115 {offsets = [0, 128], sizes = [8, 64], strides = [1, 1]} : vector<8x256xf32> to vector<8x64xf32>
    %161 = vector.extract_strided_slice %116 {offsets = [0, 128], sizes = [8, 64], strides = [1, 1]} : vector<8x256xf32> to vector<8x64xf32>
    %162 = tpu.transpose %161, [1, 0] : vector<8x64xf32> -> vector<64x8xf32>
    %cst_58 = arith.constant dense<0.000000e+00> : vector<8x8xf32>
    %163 = tpu.matmul %160, %162, %cst_58 {dimension_numbers = #tpu.dot_dimension_numbers<[1], [0], [0], [1], [0, 0, 1, 1], [], []>} : vector<8x64xf32>, vector<64x8xf32>, vector<8x8xf32> -> vector<8x8xf32>
    %cst_59 = arith.constant dense<0xFF800000> : vector<8xf32>
    %164 = vector.multi_reduction <maximumf>, %163, %cst_59 [1] : vector<8x8xf32> to vector<8xf32>
    %165 = vector.shape_cast %164 : vector<8xf32> to vector<8x1xf32>
    %166 = vector.broadcast %165 : vector<8x1xf32> to vector<8x8xf32>
    %167 = arith.subf %163, %166 : vector<8x8xf32>
    %168 = math.exp %167 : vector<8x8xf32>
    %cst_60 = arith.constant dense<0.000000e+00> : vector<8xf32>
    %169 = vector.multi_reduction <add>, %168, %cst_60 [1] : vector<8x8xf32> to vector<8xf32>
    %170 = vector.shape_cast %169 : vector<8xf32> to vector<8x1xf32>
    %171 = tpu.reciprocal %170 {approx = true} : vector<8x1xf32> -> vector<8x1xf32>
    %172 = vector.broadcast %171 : vector<8x1xf32> to vector<8x8xf32>
    %173 = arith.mulf %168, %172 : vector<8x8xf32>
    %174 = vector.extract_strided_slice %117 {offsets = [0, 128], sizes = [8, 64], strides = [1, 1]} : vector<8x256xf32> to vector<8x64xf32>
    %cst_61 = arith.constant dense<0.000000e+00> : vector<8x64xf32>
    %175 = tpu.matmul %173, %174, %cst_61 {dimension_numbers = #tpu.dot_dimension_numbers<[1], [0], [0], [1], [0, 0, 1, 1], [], []>} : vector<8x8xf32>, vector<8x64xf32>, vector<8x64xf32> -> vector<8x64xf32>
    %176 = arith.truncf %175 : vector<8x64xf32> to vector<8x64xbf16>
    %177 = vector.extract_strided_slice %17 {offsets = [128, 0], sizes = [64, 256], strides = [1, 1]} : vector<256x256xbf16> to vector<64x256xbf16>
    %cst_62 = arith.constant dense<0.000000e+00> : vector<8x256xf32>
    %178 = tpu.matmul %176, %177, %cst_62 {dimension_numbers = #tpu.dot_dimension_numbers<[1], [0], [0], [1], [0, 0, 1, 1], [], []>} : vector<8x64xbf16>, vector<64x256xbf16>, vector<8x256xf32> -> vector<8x256xf32>
    %179 = arith.addf %159, %178 : vector<8x256xf32>
    %180 = vector.extract_strided_slice %115 {offsets = [0, 192], sizes = [8, 64], strides = [1, 1]} : vector<8x256xf32> to vector<8x64xf32>
    %181 = vector.extract_strided_slice %116 {offsets = [0, 192], sizes = [8, 64], strides = [1, 1]} : vector<8x256xf32> to vector<8x64xf32>
    %182 = tpu.transpose %181, [1, 0] : vector<8x64xf32> -> vector<64x8xf32>
    %cst_63 = arith.constant dense<0.000000e+00> : vector<8x8xf32>
    %183 = tpu.matmul %180, %182, %cst_63 {dimension_numbers = #tpu.dot_dimension_numbers<[1], [0], [0], [1], [0, 0, 1, 1], [], []>} : vector<8x64xf32>, vector<64x8xf32>, vector<8x8xf32> -> vector<8x8xf32>
    %cst_64 = arith.constant dense<0xFF800000> : vector<8xf32>
    %184 = vector.multi_reduction <maximumf>, %183, %cst_64 [1] : vector<8x8xf32> to vector<8xf32>
    %185 = vector.shape_cast %184 : vector<8xf32> to vector<8x1xf32>
    %186 = vector.broadcast %185 : vector<8x1xf32> to vector<8x8xf32>
    %187 = arith.subf %183, %186 : vector<8x8xf32>
    %188 = math.exp %187 : vector<8x8xf32>
    %cst_65 = arith.constant dense<0.000000e+00> : vector<8xf32>
    %189 = vector.multi_reduction <add>, %188, %cst_65 [1] : vector<8x8xf32> to vector<8xf32>
    %190 = vector.shape_cast %189 : vector<8xf32> to vector<8x1xf32>
    %191 = tpu.reciprocal %190 {approx = true} : vector<8x1xf32> -> vector<8x1xf32>
    %192 = vector.broadcast %191 : vector<8x1xf32> to vector<8x8xf32>
    %193 = arith.mulf %188, %192 : vector<8x8xf32>
    %194 = vector.extract_strided_slice %117 {offsets = [0, 192], sizes = [8, 64], strides = [1, 1]} : vector<8x256xf32> to vector<8x64xf32>
    %cst_66 = arith.constant dense<0.000000e+00> : vector<8x64xf32>
    %195 = tpu.matmul %193, %194, %cst_66 {dimension_numbers = #tpu.dot_dimension_numbers<[1], [0], [0], [1], [0, 0, 1, 1], [], []>} : vector<8x8xf32>, vector<8x64xf32>, vector<8x64xf32> -> vector<8x64xf32>
    %196 = arith.truncf %195 : vector<8x64xf32> to vector<8x64xbf16>
    %197 = vector.extract_strided_slice %17 {offsets = [192, 0], sizes = [64, 256], strides = [1, 1]} : vector<256x256xbf16> to vector<64x256xbf16>
    %cst_67 = arith.constant dense<0.000000e+00> : vector<8x256xf32>
    %198 = tpu.matmul %196, %197, %cst_67 {dimension_numbers = #tpu.dot_dimension_numbers<[1], [0], [0], [1], [0, 0, 1, 1], [], []>} : vector<8x64xbf16>, vector<64x256xbf16>, vector<8x256xf32> -> vector<8x256xf32>
    %199 = arith.addf %179, %198 : vector<8x256xf32>
    %200 = arith.truncf %199 : vector<8x256xf32> to vector<8x256xbf16>
    %c0_68 = arith.constant 0 : index
    %c0_69 = arith.constant 0 : index
    %201 = vector.load %arg13[%c0_68, %c0_69] : memref<256x128xbf16, #tpu.memory_space<vmem>>, vector<256x128xbf16>
    %cst_70 = arith.constant dense<0.000000e+00> : vector<8x128xf32>
    %202 = tpu.matmul %200, %201, %cst_70 {dimension_numbers = #tpu.dot_dimension_numbers<[1], [0], [0], [1], [0, 0, 1, 1], [], []>} : vector<8x256xbf16>, vector<256x128xbf16>, vector<8x128xf32> -> vector<8x128xf32>
    %c0_71 = arith.constant 0 : index
    %c0_72 = arith.constant 0 : index
    %203 = vector.load %arg14[%c0_71, %c0_72] : memref<1x128xf32, #tpu.memory_space<vmem>>, vector<1x128xf32>
    %204 = vector.broadcast %203 : vector<1x128xf32> to vector<8x128xf32>
    %205 = arith.addf %202, %204 : vector<8x128xf32>
    %206 = arith.mulf %205, %6 : vector<8x128xf32>
    %207 = arith.truncf %206 : vector<8x128xf32> to vector<8x128xbf16>
    %c0_73 = arith.constant 0 : index
    %c0_74 = arith.constant 0 : index
    %208 = vector.load %arg15[%c0_73, %c0_74] : memref<128x128xbf16, #tpu.memory_space<vmem>>, vector<128x128xbf16>
    %cst_75 = arith.constant dense<0.000000e+00> : vector<8x128xf32>
    %209 = tpu.matmul %207, %208, %cst_75 {dimension_numbers = #tpu.dot_dimension_numbers<[1], [0], [0], [1], [0, 0, 1, 1], [], []>} : vector<8x128xbf16>, vector<128x128xbf16>, vector<8x128xf32> -> vector<8x128xf32>
    %c0_76 = arith.constant 0 : index
    %c0_77 = arith.constant 0 : index
    %210 = vector.load %arg16[%c0_76, %c0_77] : memref<1x128xf32, #tpu.memory_space<vmem>>, vector<1x128xf32>
    %211 = vector.broadcast %210 : vector<1x128xf32> to vector<8x128xf32>
    %212 = arith.addf %209, %211 : vector<8x128xf32>
    %cst_78 = arith.constant 0.000000e+00 : f32
    %213 = vector.broadcast %cst_78 : f32 to vector<8x128xf32>
    %214 = arith.maximumf %212, %213 : vector<8x128xf32>
    %c0_79 = arith.constant 0 : index
    %c0_80 = arith.constant 0 : index
    %215 = vector.load %arg17[%c0_79, %c0_80] : memref<8x128xf32, #tpu.memory_space<vmem>>, vector<8x128xf32>
    tpu.vector_store %arg17[%c0_79, %c0_80], %214 {strides = array<i32>} : memref<8x128xf32, #tpu.memory_space<vmem>>, vector<8x128xf32>,
    return
  }
  func.func @transform_0(%arg0: i32) -> (i32, i32) {
    %c0_i32 = arith.constant 0 : i32
    %c0_i32_0 = arith.constant 0 : i32
    return %arg0, %c0_i32 : i32, i32
  }
  func.func @transform_1(%arg0: i32) -> (i32, i32) {
    %c0_i32 = arith.constant 0 : i32
    %c0_i32_0 = arith.constant 0 : i32
    %c0_i32_1 = arith.constant 0 : i32
    return %c0_i32, %c0_i32_0 : i32, i32
  }
  func.func @transform_2(%arg0: i32) -> (i32, i32) {
    %c0_i32 = arith.constant 0 : i32
    %c0_i32_0 = arith.constant 0 : i32
    %c0_i32_1 = arith.constant 0 : i32
    return %c0_i32, %c0_i32_0 : i32, i32
  }
  func.func @transform_3(%arg0: i32) -> (i32, i32) {
    %c0_i32 = arith.constant 0 : i32
    %c0_i32_0 = arith.constant 0 : i32
    %c0_i32_1 = arith.constant 0 : i32
    return %c0_i32, %c0_i32_0 : i32, i32
  }
  func.func @transform_4(%arg0: i32) -> (i32, i32) {
    %c0_i32 = arith.constant 0 : i32
    %c0_i32_0 = arith.constant 0 : i32
    %c0_i32_1 = arith.constant 0 : i32
    return %c0_i32, %c0_i32_0 : i32, i32
  }
  func.func @transform_5(%arg0: i32) -> (i32, i32) {
    %c0_i32 = arith.constant 0 : i32
    %c0_i32_0 = arith.constant 0 : i32
    %c0_i32_1 = arith.constant 0 : i32
    return %c0_i32, %c0_i32_0 : i32, i32
  }
  func.func @transform_6(%arg0: i32) -> (i32, i32) {
    %c0_i32 = arith.constant 0 : i32
    %c0_i32_0 = arith.constant 0 : i32
    %c0_i32_1 = arith.constant 0 : i32
    return %c0_i32, %c0_i32_0 : i32, i32
  }
  func.func @transform_7(%arg0: i32) -> (i32, i32) {
    %c0_i32 = arith.constant 0 : i32
    %c0_i32_0 = arith.constant 0 : i32
    %c0_i32_1 = arith.constant 0 : i32
    return %c0_i32, %c0_i32_0 : i32, i32
  }
  func.func @transform_8(%arg0: i32) -> (i32, i32) {
    %c0_i32 = arith.constant 0 : i32
    %c0_i32_0 = arith.constant 0 : i32
    %c0_i32_1 = arith.constant 0 : i32
    return %c0_i32, %c0_i32_0 : i32, i32
  }
  func.func @transform_9(%arg0: i32) -> (i32, i32) {
    %c0_i32 = arith.constant 0 : i32
    %c0_i32_0 = arith.constant 0 : i32
    %c0_i32_1 = arith.constant 0 : i32
    return %c0_i32, %c0_i32_0 : i32, i32
  }
  func.func @transform_10(%arg0: i32) -> (i32, i32) {
    %c0_i32 = arith.constant 0 : i32
    %c0_i32_0 = arith.constant 0 : i32
    %c0_i32_1 = arith.constant 0 : i32
    return %c0_i32, %c0_i32_0 : i32, i32
  }
  func.func @transform_11(%arg0: i32) -> (i32, i32) {
    %c0_i32 = arith.constant 0 : i32
    %c0_i32_0 = arith.constant 0 : i32
    %c0_i32_1 = arith.constant 0 : i32
    return %c0_i32, %c0_i32_0 : i32, i32
  }
  func.func @transform_12(%arg0: i32) -> (i32, i32) {
    %c0_i32 = arith.constant 0 : i32
    %c0_i32_0 = arith.constant 0 : i32
    %c0_i32_1 = arith.constant 0 : i32
    return %c0_i32, %c0_i32_0 : i32, i32
  }
  func.func @transform_13(%arg0: i32) -> (i32, i32) {
    %c0_i32 = arith.constant 0 : i32
    %c0_i32_0 = arith.constant 0 : i32
    %c0_i32_1 = arith.constant 0 : i32
    return %c0_i32, %c0_i32_0 : i32, i32
  }
  func.func @transform_14(%arg0: i32) -> (i32, i32) {
    %c0_i32 = arith.constant 0 : i32
    %c0_i32_0 = arith.constant 0 : i32
    %c0_i32_1 = arith.constant 0 : i32
    return %c0_i32, %c0_i32_0 : i32, i32
  }
  func.func @transform_15(%arg0: i32) -> (i32, i32) {
    %c0_i32 = arith.constant 0 : i32
    %c0_i32_0 = arith.constant 0 : i32
    %c0_i32_1 = arith.constant 0 : i32
    return %c0_i32, %c0_i32_0 : i32, i32
  }
  func.func @transform_16(%arg0: i32) -> (i32, i32) {
    %c0_i32 = arith.constant 0 : i32
    %c0_i32_0 = arith.constant 0 : i32
    return %arg0, %c0_i32 : i32, i32
  }
}

</mosaic_0001>

<llo_original>
// kernel: tpu_custom_call.1
$region0: #{tpu_custom_call.1}
  #allocation0 [shape = 'u32[]', space=smem, size = 0x4, offset = 0x4, fixed_abs, tag = 'smem constant byte address 0x4 - core index']
  #allocation1 [shape = 'u32[144,128]{1,0:T(1,128)}', space=vmem, size = 0x12000, scoped, tag = 'internal scratch']
  %s0 = inlined_call_operand.hbm [shape: f32[16,32], index: 0, kind: input, shape index: {}]
  %s1 = inlined_call_operand.hbm [shape: bf16[32,128], index: 1, kind: input, shape index: {}]
  %s2 = inlined_call_operand.hbm [shape: f32[1,128], index: 2, kind: input, shape index: {}]
  %s3 = inlined_call_operand.hbm [shape: bf16[128,384], index: 3, kind: input, shape index: {}]
  %s4 = inlined_call_operand.vmem [shape: f32[1,384], index: 4, kind: input, shape index: {}]
  %s5 = inlined_call_operand.hbm [shape: bf16[128,128], index: 5, kind: input, shape index: {}]
  %s6 = inlined_call_operand.vmem [shape: f32[1,128], index: 6, kind: input, shape index: {}]
  %s7 = inlined_call_operand.hbm [shape: bf16[128,768], index: 7, kind: input, shape index: {}]
  %s8 = inlined_call_operand.hbm [shape: bf16[128,768], index: 8, kind: input, shape index: {}]
  %s9 = inlined_call_operand.vmem [shape: f32[1,768], index: 9, kind: input, shape index: {}]
  %s10 = inlined_call_operand.hbm [shape: bf16[256,256], index: 10, kind: input, shape index: {}]
  %s11 = inlined_call_operand.vmem [shape: f32[1,256], index: 11, kind: input, shape index: {}]
  %s12 = inlined_call_operand.hbm [shape: bf16[256,128], index: 12, kind: input, shape index: {}]
  %s13 = inlined_call_operand.vmem [shape: f32[1,128], index: 13, kind: input, shape index: {}]
  %s14 = inlined_call_operand.hbm [shape: bf16[128,128], index: 14, kind: input, shape index: {}]
  %s15 = inlined_call_operand.vmem [shape: f32[1,128], index: 15, kind: input, shape index: {}]
  %s16 = inlined_call_operand.hbm [shape: f32[16,128], index: 16, kind: output, shape index: {}]
  %s17 = sld [smem:[#allocation0]]
  $region137: #{tpu_custom_call.1} parent=0
    _
  %s19 = ssub.s32 1, %s17
  %s20 = scalar_select 0, %s19, %s17
  $region1: #{tpu_custom_call.1} parent=0
    #allocation2 [shape = 'u8[8192]{0}', space=vmem, size = 0x2000, scoped, tag = 'input window, operand 0']
    #allocation3 [shape = 's32[2]{0}', space=sflag, size = 0x8, scoped, tag = 'scoped memory for tpu_custom_call.1']
    #allocation4 [shape = 's32[2]{0}', space=sflag, size = 0x8, scoped, tag = 'scoped memory for tpu_custom_call.1']
    #allocation5 [shape = 'u8[8192]{0}', space=vmem, size = 0x2000, scoped, tag = 'input window, operand 1, single buffered']
    #allocation6 [shape = 's32[1]{0}', space=sflag, size = 0x4, scoped, tag = 'scoped memory for tpu_custom_call.1']
    #allocation7 [shape = 'u8[512]{0}', space=vmem, size = 0x400, scoped, tag = 'input window, operand 2, single buffered']
    #allocation8 [shape = 'u8[98304]{0}', space=vmem, size = 0x18000, scoped, tag = 'input window, operand 3, single buffered']
    #allocation9 [shape = 's32[1]{0}', space=sflag, size = 0x4, scoped, tag = 'scoped memory for tpu_custom_call.1']
    #allocation10 [shape = 'u8[32768]{0}', space=vmem, size = 0x8000, scoped, tag = 'input window, operand 5, single buffered']
    #allocation11 [shape = 'u8[196608]{0}', space=vmem, size = 0x30000, scoped, tag = 'input window, operand 7, single buffered']
    #allocation12 [shape = 's32[1]{0}', space=sflag, size = 0x4, scoped, tag = 'scoped memory for tpu_custom_call.1']
    #allocation13 [shape = 'u8[196608]{0}', space=vmem, size = 0x30000, scoped, tag = 'input window, operand 8, single buffered']
    #allocation14 [shape = 'u8[131072]{0}', space=vmem, size = 0x20000, scoped, tag = 'input window, operand 10, single buffered']
    #allocation15 [shape = 's32[1]{0}', space=sflag, size = 0x4, scoped, tag = 'scoped memory for tpu_custom_call.1']
    #allocation16 [shape = 'u8[65536]{0}', space=vmem, size = 0x10000, scoped, tag = 'input window, operand 12, single buffered']
    #allocation17 [shape = 'u8[32768]{0}', space=vmem, size = 0x8000, scoped, tag = 'input window, operand 14, single buffered']
    #allocation18 [shape = 's32[1]{0}', space=sflag, size = 0x4, scoped, tag = 'scoped memory for tpu_custom_call.1']
    #allocation19 [shape = 'u8[8192]{0}', space=vmem, size = 0x2000, scoped, tag = 'output window, operand 0']
    %21 = vsyncpa [#allocation3], 0
    %s22 = scalar_lea.sflag [#allocation3], 1
    %23 = vsyncpa %s22, 0
    %24 = vsyncpa [#allocation6], 0
    %25 = vsyncpa [#allocation9], 0
    %26 = vsyncpa [#allocation12], 0
    %27 = vsyncpa [#allocation15], 0
    %28 = vsyncpa [#allocation18], 0
    %29 = vsyncpa [#allocation4], 0
    %s30 = scalar_lea.sflag [#allocation4], 1
    %31 = vsyncpa %s30, 0
    loop: start=0, step=1, limit=4
    $region2: #{tpu_custom_call.1} parent=1 // loop_pre_header
      _
    $region3: #{tpu_custom_call.1} parent=1 // loop_header
      %s33 = sphi 0, %s37
      %p34 = scmp.ge.s32.totalorder %s33, 4
      %s43 = sphi 0, %s45
      %s46 = sphi 0, %s43
      %s47 = sphi 0, %s46
      %s63 = sphi 0, %s47
      %s67 = sphi 0, %s67
      %s69 = sphi 0, %s67
      %s70 = sphi 0, %s69
      %s84 = sphi 0, %s70
      %s88 = sphi 0, %s88
      %s90 = sphi 0, %s88
      %s91 = sphi 0, %s90
      %s105 = sphi 0, %s91
      %s109 = sphi 0, %s109
      %s111 = sphi 0, %s109
      %s112 = sphi 0, %s111
      %s126 = sphi 0, %s112
      %s130 = sphi 0, %s130
      %s132 = sphi 0, %s130
      %s133 = sphi 0, %s132
      %s147 = sphi 0, %s133
      %s151 = sphi 0, %s151
      %s153 = sphi 0, %s151
      %s154 = sphi 0, %s153
      %s168 = sphi 0, %s154
      %s172 = sphi 0, %s172
      %s174 = sphi 0, %s172
      %s175 = sphi 0, %s174
      %s189 = sphi 0, %s175
      %s193 = sphi 0, %s193
      %s195 = sphi 0, %s193
      %s196 = sphi 0, %s195
      %s210 = sphi 0, %s196
      %s214 = sphi 0, %s214
      %s216 = sphi 0, %s214
      %s217 = sphi 0, %s216
      %s231 = sphi 0, %s217
      %s235 = sphi 0, %s235
      %s237 = sphi 0, %s235
      %s238 = sphi 0, %s237
      %s252 = sphi 0, %s238
      %s256 = sphi 0, %s256
      %s258 = sphi 0, %s256
      %s259 = sphi 0, %s258
      %s273 = sphi 0, %s259
      %s277 = sphi 0, %s277
      %s279 = sphi 0, %s277
      %s280 = sphi 0, %s279
      %s294 = sphi 0, %s280
      %s298 = sphi 0, %s298
      %s300 = sphi 0, %s298
      %s301 = sphi 0, %s300
      %s315 = sphi 0, %s301
      %s319 = sphi 0, %s319
      %s321 = sphi 0, %s319
      %s322 = sphi 0, %s321
      %s336 = sphi 0, %s322
      %s340 = sphi 0, %s340
      %s342 = sphi 0, %s340
      %s343 = sphi 0, %s342
      %s357 = sphi 0, %s343
      %s361 = sphi 0, %s361
      %s363 = sphi 0, %s361
      %s364 = sphi 0, %s363
      %s378 = sphi 0, %s364
      %s384 = sphi 0, %s386
      %s387 = sphi 0, %s384
      %s388 = sphi 0, %s387
      %s404 = sphi 0, %s388
    $region4: #{tpu_custom_call.1} parent=1 // loop_header_branch
      %36 = sbr.rel (%p34) target = $region8
    $region5: #{tpu_custom_call.1} parent=1 // loop_body
      %s38 = ssub.s32 %s33, 1
      %s39 = ssub.s32 %s33, 2
      %s40 = sadd.s32 %s33, 1
      %s41 = ssub.s32 %s33, %s40
      %p42 = scmp.eq.s32.totalorder %s41, 0
      %s44 = sadd.s32 %s43, 1
      %s45 = scalar_select %p42, %s43, %s44
      %p48 = pneg %p42
      %p49 = scmp.eq.s32.totalorder %s33, 1
      %p50 = por %p48, %p49
      %p51 = scmp.ne.s32.totalorder %s43, %s46
      %p52 = scmp.eq.s32.totalorder %s33, 0
      %p53 = por %p51, %p52
      %p54 = scmp.ne.s32.totalorder %s43, %s46
      %p55 = scmp.eq.s32.totalorder %s38, 1
      %p56 = por %p54, %p55
      %p57 = scmp.ne.s32.totalorder %s46, %s47
      %p58 = scmp.eq.s32.totalorder %s38, 0
      %p59 = por %p57, %p58
      %p60 = scmp.ne.s32.totalorder %s46, %s47
      %p61 = scmp.eq.s32.totalorder %s39, 1
      %p62 = por %p60, %p61
      %p64 = scmp.ne.s32.totalorder %s47, %s63
      %p65 = scmp.eq.s32.totalorder %s39, 0
      %p66 = por %p64, %p65
      %s68 = sadd.s32 %s67, 1
      %p71 = scmp.eq.s32.totalorder %s33, 1
      %p72 = scmp.ne.s32.totalorder %s67, %s69
      %p73 = scmp.eq.s32.totalorder %s33, 0
      %p74 = por %p72, %p73
      %p75 = scmp.ne.s32.totalorder %s67, %s69
      %p76 = scmp.eq.s32.totalorder %s38, 1
      %p77 = por %p75, %p76
      %p78 = scmp.ne.s32.totalorder %s69, %s70
      %p79 = scmp.eq.s32.totalorder %s38, 0
      %p80 = por %p78, %p79
      %p81 = scmp.ne.s32.totalorder %s69, %s70
      %p82 = scmp.eq.s32.totalorder %s39, 1
      %p83 = por %p81, %p82
      %p85 = scmp.ne.s32.totalorder %s70, %s84
      %p86 = scmp.eq.s32.totalorder %s39, 0
      %p87 = por %p85, %p86
      %s89 = sadd.s32 %s88, 1
      %p92 = scmp.eq.s32.totalorder %s33, 1
      %p93 = scmp.ne.s32.totalorder %s88, %s90
      %p94 = scmp.eq.s32.totalorder %s33, 0
      %p95 = por %p93, %p94
      %p96 = scmp.ne.s32.totalorder %s88, %s90
      %p97 = scmp.eq.s32.totalorder %s38, 1
      %p98 = por %p96, %p97
      %p99 = scmp.ne.s32.totalorder %s90, %s91
      %p100 = scmp.eq.s32.totalorder %s38, 0
      %p101 = por %p99, %p100
      %p102 = scmp.ne.s32.totalorder %s90, %s91
      %p103 = scmp.eq.s32.totalorder %s39, 1
      %p104 = por %p102, %p103
      %p106 = scmp.ne.s32.totalorder %s91, %s105
      %p107 = scmp.eq.s32.totalorder %s39, 0
      %p108 = por %p106, %p107
      %s110 = sadd.s32 %s109, 1
      %p113 = scmp.eq.s32.totalorder %s33, 1
      %p114 = scmp.ne.s32.totalorder %s109, %s111
      %p115 = scmp.eq.s32.totalorder %s33, 0
      %p116 = por %p114, %p115
      %p117 = scmp.ne.s32.totalorder %s109, %s111
      %p118 = scmp.eq.s32.totalorder %s38, 1
      %p119 = por %p117, %p118
      %p120 = scmp.ne.s32.totalorder %s111, %s112
      %p121 = scmp.eq.s32.totalorder %s38, 0
      %p122 = por %p120, %p121
      %p123 = scmp.ne.s32.totalorder %s111, %s112
      %p124 = scmp.eq.s32.totalorder %s39, 1
      %p125 = por %p123, %p124
      %p127 = scmp.ne.s32.totalorder %s112, %s126
      %p128 = scmp.eq.s32.totalorder %s39, 0
      %p129 = por %p127, %p128
      %s131 = sadd.s32 %s130, 1
      %p134 = scmp.eq.s32.totalorder %s33, 1
      %p135 = scmp.ne.s32.totalorder %s130, %s132
      %p136 = scmp.eq.s32.totalorder %s33, 0
      %p137 = por %p135, %p136
      %p138 = scmp.ne.s32.totalorder %s130, %s132
      %p139 = scmp.eq.s32.totalorder %s38, 1
      %p140 = por %p138, %p139
      %p141 = scmp.ne.s32.totalorder %s132, %s133
      %p142 = scmp.eq.s32.totalorder %s38, 0
      %p143 = por %p141, %p142
      %p144 = scmp.ne.s32.totalorder %s132, %s133
      %p145 = scmp.eq.s32.totalorder %s39, 1
      %p146 = por %p144, %p145
      %p148 = scmp.ne.s32.totalorder %s133, %s147
      %p149 = scmp.eq.s32.totalorder %s39, 0
      %p150 = por %p148, %p149
      %s152 = sadd.s32 %s151, 1
      %p155 = scmp.eq.s32.totalorder %s33, 1
      %p156 = scmp.ne.s32.totalorder %s151, %s153
      %p157 = scmp.eq.s32.totalorder %s33, 0
      %p158 = por %p156, %p157
      %p159 = scmp.ne.s32.totalorder %s151, %s153
      %p160 = scmp.eq.s32.totalorder %s38, 1
      %p161 = por %p159, %p160
      %p162 = scmp.ne.s32.totalorder %s153, %s154
      %p163 = scmp.eq.s32.totalorder %s38, 0
      %p164 = por %p162, %p163
      %p165 = scmp.ne.s32.totalorder %s153, %s154
      %p166 = scmp.eq.s32.totalorder %s39, 1
      %p167 = por %p165, %p166
      %p169 = scmp.ne.s32.totalorder %s154, %s168
      %p170 = scmp.eq.s32.totalorder %s39, 0
      %p171 = por %p169, %p170
      %s173 = sadd.s32 %s172, 1
      %p176 = scmp.eq.s32.totalorder %s33, 1
      %p177 = scmp.ne.s32.totalorder %s172, %s174
      %p178 = scmp.eq.s32.totalorder %s33, 0
      %p179 = por %p177, %p178
      %p180 = scmp.ne.s32.totalorder %s172, %s174
      %p181 = scmp.eq.s32.totalorder %s38, 1
      %p182 = por %p180, %p181
      %p183 = scmp.ne.s32.totalorder %s174, %s175
      %p184 = scmp.eq.s32.totalorder %s38, 0
      %p185 = por %p183, %p184
      %p186 = scmp.ne.s32.totalorder %s174, %s175
      %p187 = scmp.eq.s32.totalorder %s39, 1
      %p188 = por %p186, %p187
      %p190 = scmp.ne.s32.totalorder %s175, %s189
      %p191 = scmp.eq.s32.totalorder %s39, 0
      %p192 = por %p190, %p191
      %s194 = sadd.s32 %s193, 1
      %p197 = scmp.eq.s32.totalorder %s33, 1
      %p198 = scmp.ne.s32.totalorder %s193, %s195
      %p199 = scmp.eq.s32.totalorder %s33, 0
      %p200 = por %p198, %p199
      %p201 = scmp.ne.s32.totalorder %s193, %s195
      %p202 = scmp.eq.s32.totalorder %s38, 1
      %p203 = por %p201, %p202
      %p204 = scmp.ne.s32.totalorder %s195, %s196
      %p205 = scmp.eq.s32.totalorder %s38, 0
      %p206 = por %p204, %p205
      %p207 = scmp.ne.s32.totalorder %s195, %s196
      %p208 = scmp.eq.s32.totalorder %s39, 1
      %p209 = por %p207, %p208
      %p211 = scmp.ne.s32.totalorder %s196, %s210
      %p212 = scmp.eq.s32.totalorder %s39, 0
      %p213 = por %p211, %p212
      %s215 = sadd.s32 %s214, 1
      %p218 = scmp.eq.s32.totalorder %s33, 1
      %p219 = scmp.ne.s32.totalorder %s214, %s216
      %p220 = scmp.eq.s32.totalorder %s33, 0
      %p221 = por %p219, %p220
      %p222 = scmp.ne.s32.totalorder %s214, %s216
      %p223 = scmp.eq.s32.totalorder %s38, 1
      %p224 = por %p222, %p223
      %p225 = scmp.ne.s32.totalorder %s216, %s217
      %p226 = scmp.eq.s32.totalorder %s38, 0
      %p227 = por %p225, %p226
      %p228 = scmp.ne.s32.totalorder %s216, %s217
      %p229 = scmp.eq.s32.totalorder %s39, 1
      %p230 = por %p228, %p229
      %p232 = scmp.ne.s32.totalorder %s217, %s231
      %p233 = scmp.eq.s32.totalorder %s39, 0
      %p234 = por %p232, %p233
      %s236 = sadd.s32 %s235, 1
      %p239 = scmp.eq.s32.totalorder %s33, 1
      %p240 = scmp.ne.s32.totalorder %s235, %s237
      %p241 = scmp.eq.s32.totalorder %s33, 0
      %p242 = por %p240, %p241
      %p243 = scmp.ne.s32.totalorder %s235, %s237
      %p244 = scmp.eq.s32.totalorder %s38, 1
      %p245 = por %p243, %p244
      %p246 = scmp.ne.s32.totalorder %s237, %s238
      %p247 = scmp.eq.s32.totalorder %s38, 0
      %p248 = por %p246, %p247
      %p249 = scmp.ne.s32.totalorder %s237, %s238
      %p250 = scmp.eq.s32.totalorder %s39, 1
      %p251 = por %p249, %p250
      %p253 = scmp.ne.s32.totalorder %s238, %s252
      %p254 = scmp.eq.s32.totalorder %s39, 0
      %p255 = por %p253, %p254
      %s257 = sadd.s32 %s256, 1
      %p260 = scmp.eq.s32.totalorder %s33, 1
      %p261 = scmp.ne.s32.totalorder %s256, %s258
      %p262 = scmp.eq.s32.totalorder %s33, 0
      %p263 = por %p261, %p262
      %p264 = scmp.ne.s32.totalorder %s256, %s258
      %p265 = scmp.eq.s32.totalorder %s38, 1
      %p266 = por %p264, %p265
      %p267 = scmp.ne.s32.totalorder %s258, %s259
      %p268 = scmp.eq.s32.totalorder %s38, 0
      %p269 = por %p267, %p268
      %p270 = scmp.ne.s32.totalorder %s258, %s259
      %p271 = scmp.eq.s32.totalorder %s39, 1
      %p272 = por %p270, %p271
      %p274 = scmp.ne.s32.totalorder %s259, %s273
      %p275 = scmp.eq.s32.totalorder %s39, 0
      %p276 = por %p274, %p275
      %s278 = sadd.s32 %s277, 1
      %p281 = scmp.eq.s32.totalorder %s33, 1
      %p282 = scmp.ne.s32.totalorder %s277, %s279
      %p283 = scmp.eq.s32.totalorder %s33, 0
      %p284 = por %p282, %p283
      %p285 = scmp.ne.s32.totalorder %s277, %s279
      %p286 = scmp.eq.s32.totalorder %s38, 1
      %p287 = por %p285, %p286
      %p288 = scmp.ne.s32.totalorder %s279, %s280
      %p289 = scmp.eq.s32.totalorder %s38, 0
      %p290 = por %p288, %p289
      %p291 = scmp.ne.s32.totalorder %s279, %s280
      %p292 = scmp.eq.s32.totalorder %s39, 1
      %p293 = por %p291, %p292
      %p295 = scmp.ne.s32.totalorder %s280, %s294
      %p296 = scmp.eq.s32.totalorder %s39, 0
      %p297 = por %p295, %p296
      %s299 = sadd.s32 %s298, 1
      %p302 = scmp.eq.s32.totalorder %s33, 1
      %p303 = scmp.ne.s32.totalorder %s298, %s300
      %p304 = scmp.eq.s32.totalorder %s33, 0
      %p305 = por %p303, %p304
      %p306 = scmp.ne.s32.totalorder %s298, %s300
      %p307 = scmp.eq.s32.totalorder %s38, 1
      %p308 = por %p306, %p307
      %p309 = scmp.ne.s32.totalorder %s300, %s301
      %p310 = scmp.eq.s32.totalorder %s38, 0
      %p311 = por %p309, %p310
      %p312 = scmp.ne.s32.totalorder %s300, %s301
      %p313 = scmp.eq.s32.totalorder %s39, 1
      %p314 = por %p312, %p313
      %p316 = scmp.ne.s32.totalorder %s301, %s315
      %p317 = scmp.eq.s32.totalorder %s39, 0
      %p318 = por %p316, %p317
      %s320 = sadd.s32 %s319, 1
      %p323 = scmp.eq.s32.totalorder %s33, 1
      %p324 = scmp.ne.s32.totalorder %s319, %s321
      %p325 = scmp.eq.s32.totalorder %s33, 0
      %p326 = por %p324, %p325
      %p327 = scmp.ne.s32.totalorder %s319, %s321
      %p328 = scmp.eq.s32.totalorder %s38, 1
      %p329 = por %p327, %p328
      %p330 = scmp.ne.s32.totalorder %s321, %s322
      %p331 = scmp.eq.s32.totalorder %s38, 0
      %p332 = por %p330, %p331
      %p333 = scmp.ne.s32.totalorder %s321, %s322
      %p334 = scmp.eq.s32.totalorder %s39, 1
      %p335 = por %p333, %p334
      %p337 = scmp.ne.s32.totalorder %s322, %s336
      %p338 = scmp.eq.s32.totalorder %s39, 0
      %p339 = por %p337, %p338
      %s341 = sadd.s32 %s340, 1
      %p344 = scmp.eq.s32.totalorder %s33, 1
      %p345 = scmp.ne.s32.totalorder %s340, %s342
      %p346 = scmp.eq.s32.totalorder %s33, 0
      %p347 = por %p345, %p346
      %p348 = scmp.ne.s32.totalorder %s340, %s342
      %p349 = scmp.eq.s32.totalorder %s38, 1
      %p350 = por %p348, %p349
      %p351 = scmp.ne.s32.totalorder %s342, %s343
      %p352 = scmp.eq.s32.totalorder %s38, 0
      %p353 = por %p351, %p352
      %p354 = scmp.ne.s32.totalorder %s342, %s343
      %p355 = scmp.eq.s32.totalorder %s39, 1
      %p356 = por %p354, %p355
      %p358 = scmp.ne.s32.totalorder %s343, %s357
      %p359 = scmp.eq.s32.totalorder %s39, 0
      %p360 = por %p358, %p359
      %s362 = sadd.s32 %s361, 1
      %p365 = scmp.eq.s32.totalorder %s33, 1
      %p366 = scmp.ne.s32.totalorder %s361, %s363
      %p367 = scmp.eq.s32.totalorder %s33, 0
      %p368 = por %p366, %p367
      %p369 = scmp.ne.s32.totalorder %s361, %s363
      %p370 = scmp.eq.s32.totalorder %s38, 1
      %p371 = por %p369, %p370
      %p372 = scmp.ne.s32.totalorder %s363, %s364
      %p373 = scmp.eq.s32.totalorder %s38, 0
      %p374 = por %p372, %p373
      %p375 = scmp.ne.s32.totalorder %s363, %s364
      %p376 = scmp.eq.s32.totalorder %s39, 1
      %p377 = por %p375, %p376
      %p379 = scmp.ne.s32.totalorder %s364, %s378
      %p380 = scmp.eq.s32.totalorder %s39, 0
      %p381 = por %p379, %p380
      %s382 = ssub.s32 %s33, %s40
      %p383 = scmp.eq.s32.totalorder %s382, 0
      %s385 = sadd.s32 %s384, 1
      %s386 = scalar_select %p383, %s384, %s385
      %p389 = pneg %p383
      %p390 = scmp.eq.s32.totalorder %s33, 1
      %p391 = por %p389, %p390
      %p392 = scmp.ne.s32.totalorder %s384, %s387
      %p393 = scmp.eq.s32.totalorder %s33, 0
      %p394 = por %p392, %p393
      %p395 = scmp.ne.s32.totalorder %s384, %s387
      %p396 = scmp.eq.s32.totalorder %s38, 1
      %p397 = por %p395, %p396
      %p398 = scmp.ne.s32.totalorder %s387, %s388
      %p399 = scmp.eq.s32.totalorder %s38, 0
      %p400 = por %p398, %p399
      %p401 = scmp.ne.s32.totalorder %s387, %s388
      %p402 = scmp.eq.s32.totalorder %s39, 1
      %p403 = por %p401, %p402
      %p405 = scmp.ne.s32.totalorder %s388, %s404
      %p406 = scmp.eq.s32.totalorder %s39, 0
      %p407 = por %p405, %p406
      %p408 = scmp.le.s32.totalorder 1, %s33
      %p409 = scmp.lt.s32.totalorder %s33, 3
      %p410 = pnand %p408, %p409
      %p411 = pneg %p410
      // Predicated region
      $region9: #{tpu_custom_call.1} parent=5 // pred_check
        _
      $region10: #{tpu_custom_call.1} parent=5 // pred_check_branch
        %413 = sbr.rel (%p410) target = $region12
      $region11: #{tpu_custom_call.1} parent=5 // pred_region
        %s414 = ssub.s32 %s33, 1
        // Predicated region
        $region13: #{tpu_custom_call.1} parent=11 // pred_check
          %p415 = pneg %p80
        $region14: #{tpu_custom_call.1} parent=11 // pred_check_branch
          %417 = sbr.rel (%p415) target = $region16
        $region15: #{tpu_custom_call.1} parent=11 // pred_region
          %s419 = ssub.s32 256, 256
          %420 = vsyncadd [#allocation6], %s419
          %s421 = sshll.u32 [#allocation5], 4
          %s422 = int_to_ptr.vmem [resolvable:$true] %s421
          %427 = dma.hbm_to_vmem [thread:$0]  %s1, 256, %s422, [#allocation6], 64, 64, 4
        $region16: #{tpu_custom_call.1} parent=11 // pred_fallthru
          _
        // Predicated region
        $region17: #{tpu_custom_call.1} parent=11 // pred_check
          %p428 = pneg %p101
        $region18: #{tpu_custom_call.1} parent=11 // pred_check_branch
          %430 = sbr.rel (%p428) target = $region20
        $region19: #{tpu_custom_call.1} parent=11 // pred_region
          %s432 = ssub.s32 16, 16
          %433 = vsyncadd [#allocation6], %s432
          %s435 = sshll.u32 [#allocation7], 4
          %s436 = int_to_ptr.vmem [resolvable:$true] %s435
          %438 = dma.hbm_to_vmem [thread:$0]  %s2, 16, %s436, [#allocation6]
        $region20: #{tpu_custom_call.1} parent=11 // pred_fallthru
          _
        // Predicated region
        $region21: #{tpu_custom_call.1} parent=11 // pred_check
          %p439 = pneg %p122
        $region22: #{tpu_custom_call.1} parent=11 // pred_check_branch
          %441 = sbr.rel (%p439) target = $region24
        $region23: #{tpu_custom_call.1} parent=11 // pred_region
          %s443 = ssub.s32 3072, 3072
          %444 = vsyncadd [#allocation9], %s443
          %s445 = sshll.u32 [#allocation8], 4
          %s446 = int_to_ptr.vmem [resolvable:$true] %s445
          %451 = dma.hbm_to_vmem [thread:$0]  %s3, 3072, %s446, [#allocation9], 192, 192, 12
        $region24: #{tpu_custom_call.1} parent=11 // pred_fallthru
          _
        // Predicated region
        $region25: #{tpu_custom_call.1} parent=11 // pred_check
          %p452 = pneg %p143
        $region26: #{tpu_custom_call.1} parent=11 // pred_check_branch
          %454 = sbr.rel (%p452) target = $region28
        $region27: #{tpu_custom_call.1} parent=11 // pred_region
          _
        $region28: #{tpu_custom_call.1} parent=11 // pred_fallthru
          _
        // Predicated region
        $region29: #{tpu_custom_call.1} parent=11 // pred_check
          %p455 = pneg %p164
        $region30: #{tpu_custom_call.1} parent=11 // pred_check_branch
          %457 = sbr.rel (%p455) target = $region32
        $region31: #{tpu_custom_call.1} parent=11 // pred_region
          %s459 = ssub.s32 1024, 1024
          %460 = vsyncadd [#allocation9], %s459
          %s461 = sshll.u32 [#allocation10], 4
          %s462 = int_to_ptr.vmem [resolvable:$true] %s461
          %467 = dma.hbm_to_vmem [thread:$0]  %s5, 1024, %s462, [#allocation9], 64, 64, 4
        $region32: #{tpu_custom_call.1} parent=11 // pred_fallthru
          _
        // Predicated region
        $region33: #{tpu_custom_call.1} parent=11 // pred_check
          %p468 = pneg %p185
        $region34: #{tpu_custom_call.1} parent=11 // pred_check_branch
          %470 = sbr.rel (%p468) target = $region36
        $region35: #{tpu_custom_call.1} parent=11 // pred_region
          _
        $region36: #{tpu_custom_call.1} parent=11 // pred_fallthru
          _
        // Predicated region
        $region37: #{tpu_custom_call.1} parent=11 // pred_check
          %p471 = pneg %p206
        $region38: #{tpu_custom_call.1} parent=11 // pred_check_branch
          %473 = sbr.rel (%p471) target = $region40
        $region39: #{tpu_custom_call.1} parent=11 // pred_region
          %s475 = ssub.s32 6144, 6144
          %476 = vsyncadd [#allocation12], %s475
          %s477 = sshll.u32 [#allocation11], 4
          %s478 = int_to_ptr.vmem [resolvable:$true] %s477
          %483 = dma.hbm_to_vmem [thread:$0]  %s7, 6144, %s478, [#allocation12], 384, 384, 24
        $region40: #{tpu_custom_call.1} parent=11 // pred_fallthru
          _
        // Predicated region
        $region41: #{tpu_custom_call.1} parent=11 // pred_check
          %p484 = pneg %p227
        $region42: #{tpu_custom_call.1} parent=11 // pred_check_branch
          %486 = sbr.rel (%p484) target = $region44
        $region43: #{tpu_custom_call.1} parent=11 // pred_region
          %s488 = ssub.s32 6144, 6144
          %489 = vsyncadd [#allocation12], %s488
          %s490 = sshll.u32 [#allocation13], 4
          %s491 = int_to_ptr.vmem [resolvable:$true] %s490
          %496 = dma.hbm_to_vmem [thread:$0]  %s8, 6144, %s491, [#allocation12], 384, 384, 24
        $region44: #{tpu_custom_call.1} parent=11 // pred_fallthru
          _
        // Predicated region
        $region45: #{tpu_custom_call.1} parent=11 // pred_check
          %p497 = pneg %p248
        $region46: #{tpu_custom_call.1} parent=11 // pred_check_branch
          %499 = sbr.rel (%p497) target = $region48
        $region47: #{tpu_custom_call.1} parent=11 // pred_region
          _
        $region48: #{tpu_custom_call.1} parent=11 // pred_fallthru
          _
        // Predicated region
        $region49: #{tpu_custom_call.1} parent=11 // pred_check
          %p500 = pneg %p269
        $region50: #{tpu_custom_call.1} parent=11 // pred_check_branch
          %502 = sbr.rel (%p500) target = $region52
        $region51: #{tpu_custom_call.1} parent=11 // pred_region
          %s504 = ssub.s32 4096, 4096
          %505 = vsyncadd [#allocation15], %s504
          %s506 = sshll.u32 [#allocation14], 4
          %s507 = int_to_ptr.vmem [resolvable:$true] %s506
          %512 = dma.hbm_to_vmem [thread:$0]  %s10, 4096, %s507, [#allocation15], 128, 128, 8
        $region52: #{tpu_custom_call.1} parent=11 // pred_fallthru
          _
        // Predicated region
        $region53: #{tpu_custom_call.1} parent=11 // pred_check
          %p513 = pneg %p290
        $region54: #{tpu_custom_call.1} parent=11 // pred_check_branch
          %515 = sbr.rel (%p513) target = $region56
        $region55: #{tpu_custom_call.1} parent=11 // pred_region
          _
        $region56: #{tpu_custom_call.1} parent=11 // pred_fallthru
          _
        // Predicated region
        $region57: #{tpu_custom_call.1} parent=11 // pred_check
          %p516 = pneg %p311
        $region58: #{tpu_custom_call.1} parent=11 // pred_check_branch
          %518 = sbr.rel (%p516) target = $region60
        $region59: #{tpu_custom_call.1} parent=11 // pred_region
          %s520 = ssub.s32 2048, 2048
          %521 = vsyncadd [#allocation15], %s520
          %s522 = sshll.u32 [#allocation16], 4
          %s523 = int_to_ptr.vmem [resolvable:$true] %s522
          %528 = dma.hbm_to_vmem [thread:$0]  %s12, 2048, %s523, [#allocation15], 64, 64, 4
        $region60: #{tpu_custom_call.1} parent=11 // pred_fallthru
          _
        // Predicated region
        $region61: #{tpu_custom_call.1} parent=11 // pred_check
          %p529 = pneg %p332
        $region62: #{tpu_custom_call.1} parent=11 // pred_check_branch
          %531 = sbr.rel (%p529) target = $region64
        $region63: #{tpu_custom_call.1} parent=11 // pred_region
          _
        $region64: #{tpu_custom_call.1} parent=11 // pred_fallthru
          _
        // Predicated region
        $region65: #{tpu_custom_call.1} parent=11 // pred_check
          %p532 = pneg %p353
        $region66: #{tpu_custom_call.1} parent=11 // pred_check_branch
          %534 = sbr.rel (%p532) target = $region68
        $region67: #{tpu_custom_call.1} parent=11 // pred_region
          %s536 = ssub.s32 1024, 1024
          %537 = vsyncadd [#allocation18], %s536
          %s538 = sshll.u32 [#allocation17], 4
          %s539 = int_to_ptr.vmem [resolvable:$true] %s538
          %544 = dma.hbm_to_vmem [thread:$0]  %s14, 1024, %s539, [#allocation18], 64, 64, 4
        $region68: #{tpu_custom_call.1} parent=11 // pred_fallthru
          _
        // Predicated region
        $region69: #{tpu_custom_call.1} parent=11 // pred_check
          %p545 = pneg %p374
        $region70: #{tpu_custom_call.1} parent=11 // pred_check_branch
          %547 = sbr.rel (%p545) target = $region72
        $region71: #{tpu_custom_call.1} parent=11 // pred_region
          _
        $region72: #{tpu_custom_call.1} parent=11 // pred_fallthru
          _
      $region12: #{tpu_custom_call.1} parent=5 // pred_fallthru
        _
      %p548 = scmp.lt.s32.totalorder %s33, 2
      // Predicated region
      $region73: #{tpu_custom_call.1} parent=5 // pred_check
        %p549 = pneg %p548
      $region74: #{tpu_custom_call.1} parent=5 // pred_check_branch
        %551 = sbr.rel (%p549) target = $region76
      $region75: #{tpu_custom_call.1} parent=5 // pred_region
        // Predicated region
        $region77: #{tpu_custom_call.1} parent=75 // pred_check
          %p552 = pneg %p53
        $region78: #{tpu_custom_call.1} parent=75 // pred_check_branch
          %554 = sbr.rel (%p552) target = $region80
        $region79: #{tpu_custom_call.1} parent=75 // pred_region
          %s555 = sand.u32 %s43, 1
          %s556 = scalar_lea.sflag [#allocation3], %s555
          %s557 = sand.u32 %s43, 1
          %s558 = smul.addr %s557, 8
          %s559 = scalar_lea.vmem [#allocation2], %s558
          %s561 = ssub.s32 128, 128
          %562 = vsyncadd %s556, %s561
          %s563 = smul.addr %s33, 128
          %s564 = scalar_lea.hbm %s0, %s563
          %s566 = sshll.u32 %s559, 4
          %s567 = int_to_ptr.vmem [resolvable:$true] %s566
          %569 = dma.hbm_to_vmem [thread:$0]  %s564, 128, %s567, %s556
        $region80: #{tpu_custom_call.1} parent=75 // pred_fallthru
          _
      $region76: #{tpu_custom_call.1} parent=5 // pred_fallthru
        _
      %p570 = scmp.le.s32.totalorder 1, %s33
      %p571 = scmp.lt.s32.totalorder %s33, 3
      %p572 = pnand %p570, %p571
      %p573 = pneg %p572
      // Predicated region
      $region81: #{tpu_custom_call.1} parent=5 // pred_check
        _
      $region82: #{tpu_custom_call.1} parent=5 // pred_check_branch
        %575 = sbr.rel (%p572) target = $region84
      $region83: #{tpu_custom_call.1} parent=5 // pred_region
        %s576 = ssub.s32 %s33, 1
        %s577 = sand.u32 %s46, 1
        %s578 = scalar_lea.sflag [#allocation3], %s577
        %s579 = sand.u32 %s46, 1
        %s580 = smul.addr %s579, 8
        %s581 = scalar_lea.vmem [#allocation2], %s580
        // Predicated region
        $region85: #{tpu_custom_call.1} parent=83 // pred_check
          %p582 = pneg %p59
        $region86: #{tpu_custom_call.1} parent=83 // pred_check_branch
          %584 = sbr.rel (%p582) target = $region88
        $region87: #{tpu_custom_call.1} parent=83 // pred_region
          %585 = dma.done %s578, 128
        $region88: #{tpu_custom_call.1} parent=83 // pred_fallthru
          _
        // Predicated region
        $region89: #{tpu_custom_call.1} parent=83 // pred_check
          %p586 = pneg %p80
        $region90: #{tpu_custom_call.1} parent=83 // pred_check_branch
          %588 = sbr.rel (%p586) target = $region92
        $region91: #{tpu_custom_call.1} parent=83 // pred_region
          %589 = dma.done [#allocation6], 256
        $region92: #{tpu_custom_call.1} parent=83 // pred_fallthru
          _
        // Predicated region
        $region93: #{tpu_custom_call.1} parent=83 // pred_check
          %p590 = pneg %p101
        $region94: #{tpu_custom_call.1} parent=83 // pred_check_branch
          %592 = sbr.rel (%p590) target = $region96
        $region95: #{tpu_custom_call.1} parent=83 // pred_region
          %593 = dma.done [#allocation6], 16
        $region96: #{tpu_custom_call.1} parent=83 // pred_fallthru
          _
        // Predicated region
        $region97: #{tpu_custom_call.1} parent=83 // pred_check
          %p594 = pneg %p122
        $region98: #{tpu_custom_call.1} parent=83 // pred_check_branch
          %596 = sbr.rel (%p594) target = $region100
        $region99: #{tpu_custom_call.1} parent=83 // pred_region
          %597 = dma.done [#allocation9], 3072
        $region100: #{tpu_custom_call.1} parent=83 // pred_fallthru
          _
        // Predicated region
        $region101: #{tpu_custom_call.1} parent=83 // pred_check
          %p598 = pneg %p164
        $region102: #{tpu_custom_call.1} parent=83 // pred_check_branch
          %600 = sbr.rel (%p598) target = $region104
        $region103: #{tpu_custom_call.1} parent=83 // pred_region
          %601 = dma.done [#allocation9], 1024
        $region104: #{tpu_custom_call.1} parent=83 // pred_fallthru
          _
        // Predicated region
        $region105: #{tpu_custom_call.1} parent=83 // pred_check
          %p602 = pneg %p206
        $region106: #{tpu_custom_call.1} parent=83 // pred_check_branch
          %604 = sbr.rel (%p602) target = $region108
        $region107: #{tpu_custom_call.1} parent=83 // pred_region
          %605 = dma.done [#allocation12], 6144
        $region108: #{tpu_custom_call.1} parent=83 // pred_fallthru
          _
        // Predicated region
        $region109: #{tpu_custom_call.1} parent=83 // pred_check
          %p606 = pneg %p227
        $region110: #{tpu_custom_call.1} parent=83 // pred_check_branch
          %608 = sbr.rel (%p606) target = $region112
        $region111: #{tpu_custom_call.1} parent=83 // pred_region
          %609 = dma.done [#allocation12], 6144
        $region112: #{tpu_custom_call.1} parent=83 // pred_fallthru
          _
        // Predicated region
        $region113: #{tpu_custom_call.1} parent=83 // pred_check
          %p610 = pneg %p269
        $region114: #{tpu_custom_call.1} parent=83 // pred_check_branch
          %612 = sbr.rel (%p610) target = $region116
        $region115: #{tpu_custom_call.1} parent=83 // pred_region
          %613 = dma.done [#allocation15], 4096
        $region116: #{tpu_custom_call.1} parent=83 // pred_fallthru
          _
        // Predicated region
        $region117: #{tpu_custom_call.1} parent=83 // pred_check
          %p614 = pneg %p311
        $region118: #{tpu_custom_call.1} parent=83 // pred_check_branch
          %616 = sbr.rel (%p614) target = $region120
        $region119: #{tpu_custom_call.1} parent=83 // pred_region
          %617 = dma.done [#allocation15], 2048
        $region120: #{tpu_custom_call.1} parent=83 // pred_fallthru
          _
        // Predicated region
        $region121: #{tpu_custom_call.1} parent=83 // pred_check
          %p618 = pneg %p353
        $region122: #{tpu_custom_call.1} parent=83 // pred_check_branch
          %620 = sbr.rel (%p618) target = $region124
        $region123: #{tpu_custom_call.1} parent=83 // pred_region
          %621 = dma.done [#allocation18], 1024
        $region124: #{tpu_custom_call.1} parent=83 // pred_fallthru
          _
        %s622 = sand.u32 %s46, 1
        %s623 = scalar_lea.sflag [#allocation3], %s622
        %s624 = sand.u32 %s46, 1
        %s625 = smul.addr %s624, 8
        %s626 = scalar_lea.vmem [#allocation2], %s625
        %p627 = pneg %p59
        %p628 = pneg %p56
        %p629 = pneg %p80
        %p630 = pneg %p77
        %p631 = pneg %p101
        %p632 = pneg %p98
        %p633 = pneg %p122
        %p634 = pneg %p119
        %p635 = pneg %p143
        %p636 = pneg %p140
        %p637 = pneg %p164
        %p638 = pneg %p161
        %p639 = pneg %p185
        %p640 = pneg %p182
        %p641 = pneg %p206
        %p642 = pneg %p203
        %p643 = pneg %p227
        %p644 = pneg %p224
        %p645 = pneg %p248
        %p646 = pneg %p245
        %p647 = pneg %p269
        %p648 = pneg %p266
        %p649 = pneg %p290
        %p650 = pneg %p287
        %p651 = pneg %p311
        %p652 = pneg %p308
        %p653 = pneg %p332
        %p654 = pneg %p329
        %p655 = pneg %p353
        %p656 = pneg %p350
        %p657 = pneg %p374
        %p658 = pneg %p371
        %p659 = pneg %p400
        %p660 = pneg %p397
        %s661 = sand.u32 %s387, 1
        %s662 = scalar_lea.sflag [#allocation4], %s661
        %s663 = sand.u32 %s387, 1
        %s664 = smul.addr %s663, 8
        %s665 = scalar_lea.vmem [#allocation19], %s664
        %v667 = vld [vmem:[%s581] sm:$0xff]
        %v668 = vpack.c.bf16 %v667, %v667
        %v669 = vld [vmem:[#allocation5] sm:$0xf]
        %v670 = vld [vmem:[#allocation5 + $0x4] sm:$0xf]
        %v671 = vld [vmem:[#allocation5 + $0x8] sm:$0xf]
        %v672 = vld [vmem:[#allocation5 + $0xc] sm:$0xf]
        %v673 = vld [vmem:[#allocation7] sm:$0x1]
        %v675 = vlaneseq
        %v676 = vshrl.u32 %v675, 7
        %v677 = vsub.s32 0, %v676
        %v678 = vrot.slane %v673, %v677
        %v684 = vunpack.c.l.b16 %v669
        %v685 = vunpack.c.l.b16 %v670
        %v686 = vunpack.c.l.b16 %v671
        %v687 = vunpack.c.l.b16 %v672
        %v688 = vpack.c.b16 %v685, %v684
        %v689 = vpack.c.b16 %v687, %v686
        %vm692 = vcmask 261120
        %v694 = vsel %vm692, %v668, 0
        %696 = vmatprep.subr.bf16.mxu0 0
        %697 = vmatpush1.bf16.msra.mxu0 %v688
        %698 = vmatprep.subr.bf16.mxu0 0
        %699 = vmatpush1.bf16.msra.mxu0 %v689
        %700 = vmatprep.subr.bf16.mxu0 0
        %701 = vmatpush1.bf16.msra.mxu0 0
        %702 = vmatprep.subr.bf16.mxu0 0
        %703 = vmatpush1.bf16.msra.mxu0 0
        %704 = vmatprep.subr.bf16.mxu0 0
        %705 = vmatpush1.bf16.msra.mxu0 0
        %706 = vmatprep.subr.bf16.mxu0 0
        %707 = vmatpush1.bf16.msra.mxu0 0
        %708 = vmatprep.subr.bf16.mxu0 0
        %709 = vmatpush1.bf16.msra.mxu0 0
        %710 = vmatprep.subr.bf16.mxu0 0
        %711 = vmatpush1.bf16.msra.mxu0 0
        %712 = vmatprep.subr.bf16.mxu0 0
        %713 = vmatpush1.bf16.msra.mxu0 0
        %714 = vmatprep.subr.bf16.mxu0 0
        %715 = vmatpush1.bf16.msra.mxu0 0
        %716 = vmatprep.subr.bf16.mxu0 0
        %717 = vmatpush1.bf16.msra.mxu0 0
        %718 = vmatprep.subr.bf16.mxu0 0
        %719 = vmatpush1.bf16.msra.mxu0 0
        %720 = vmatprep.subr.bf16.mxu0 0
        %721 = vmatpush1.bf16.msra.mxu0 0
        %722 = vmatprep.subr.bf16.mxu0 0
        %723 = vmatpush1.bf16.msra.mxu0 0
        %724 = vmatprep.subr.bf16.mxu0 0
        %725 = vmatpush1.bf16.msra.mxu0 0
        %726 = vmatprep.subr.bf16.mxu0 0
        %727 = vmatpush1.bf16.msra.mxu0 0
        %728 = vmatprep.mubr.bf16.mxu0 0
        %729 = vmatmul.mubr.bf16.gmra.mrb[0].mxu0 %v694
        %v730 = vpop.f32.mrb[0].mxu0
        %v731 = vadd.f32 %v678, %v730
        %v732 = vpop.f32.mrb[0].mxu0
        %v733 = vpop.f32.mrb[0].mxu0
        %v734 = vpop.f32.mrb[0].mxu0
        %735 = vdwg.mxu0
        %v736 = vpack.c.bf16 %v731, %v731
        %v737 = vld [vmem:[#allocation8] sm:$0xff]
        %v738 = vld [vmem:[#allocation8 + $0x8] sm:$0xf]
        %v739 = vld [vmem:[#allocation8 + $0xc] sm:$0xff]
        %v740 = vld [vmem:[#allocation8 + $0x14] sm:$0xf]
        %v741 = vld [vmem:[#allocation8 + $0x18] sm:$0xff]
        %v742 = vld [vmem:[#allocation8 + $0x20] sm:$0xf]
        %v743 = vld [vmem:[#allocation8 + $0x24] sm:$0xff]
        %v744 = vld [vmem:[#allocation8 + $0x2c] sm:$0xf]
        %v745 = vld [vmem:[#allocation8 + $0x30] sm:$0xff]
        %v746 = vld [vmem:[#allocation8 + $0x38] sm:$0xf]
        %v747 = vld [vmem:[#allocation8 + $0x3c] sm:$0xff]
        %v748 = vld [vmem:[#allocation8 + $0x44] sm:$0xf]
        %v749 = vld [vmem:[#allocation8 + $0x48] sm:$0xff]
        %v750 = vld [vmem:[#allocation8 + $0x50] sm:$0xf]
        %v751 = vld [vmem:[#allocation8 + $0x54] sm:$0xff]
        %v752 = vld [vmem:[#allocation8 + $0x5c] sm:$0xf]
        %v753 = vld [vmem:[#allocation8 + $0x60] sm:$0xff]
        %v754 = vld [vmem:[#allocation8 + $0x68] sm:$0xf]
        %v755 = vld [vmem:[#allocation8 + $0x6c] sm:$0xff]
        %v756 = vld [vmem:[#allocation8 + $0x74] sm:$0xf]
        %v757 = vld [vmem:[#allocation8 + $0x78] sm:$0xff]
        %v758 = vld [vmem:[#allocation8 + $0x80] sm:$0xf]
        %v759 = vld [vmem:[#allocation8 + $0x84] sm:$0xff]
        %v760 = vld [vmem:[#allocation8 + $0x8c] sm:$0xf]
        %v761 = vld [vmem:[#allocation8 + $0x90] sm:$0xff]
        %v762 = vld [vmem:[#allocation8 + $0x98] sm:$0xf]
        %v763 = vld [vmem:[#allocation8 + $0x9c] sm:$0xff]
        %v764 = vld [vmem:[#allocation8 + $0xa4] sm:$0xf]
        %v765 = vld [vmem:[#allocation8 + $0xa8] sm:$0xff]
        %v766 = vld [vmem:[#allocation8 + $0xb0] sm:$0xf]
        %v767 = vld [vmem:[#allocation8 + $0xb4] sm:$0xff]
        %v768 = vld [vmem:[#allocation8 + $0xbc] sm:$0xf]
        %v769 = vld [vmem:[%s4] sm:$0x7]
        %v771 = vlaneseq
        %v772 = vshrl.u32 %v771, 7
        %v773 = vsub.s32 0, %v772
        %v774 = vrot.slane %v769, %v773
        %v775 = vlaneseq
        %v776 = vshrl.u32 %v775, 7
        %v777 = vsub.s32 1, %v776
        %v778 = vrot.slane %v769, %v777
        %v779 = vlaneseq
        %v780 = vshrl.u32 %v779, 7
        %v781 = vsub.s32 2, %v780
        %v782 = vrot.slane %v769, %v781
        %v818 = vunpack.c.l.b16 %v737
        %v819 = vunpack.c.h.b16 %v737
        %v820 = vunpack.c.l.b16 %v738
        %v821 = vunpack.c.l.b16 %v739
        %v822 = vunpack.c.h.b16 %v739
        %v823 = vunpack.c.l.b16 %v740
        %v824 = vunpack.c.l.b16 %v741
        %v825 = vunpack.c.h.b16 %v741
        %v826 = vunpack.c.l.b16 %v742
        %v827 = vunpack.c.l.b16 %v743
        %v828 = vunpack.c.h.b16 %v743
        %v829 = vunpack.c.l.b16 %v744
        %v830 = vunpack.c.l.b16 %v745
        %v831 = vunpack.c.h.b16 %v745
        %v832 = vunpack.c.l.b16 %v746
        %v833 = vunpack.c.l.b16 %v747
        %v834 = vunpack.c.h.b16 %v747
        %v835 = vunpack.c.l.b16 %v748
        %v836 = vunpack.c.l.b16 %v749
        %v837 = vunpack.c.h.b16 %v749
        %v838 = vunpack.c.l.b16 %v750
        %v839 = vunpack.c.l.b16 %v751
        %v840 = vunpack.c.h.b16 %v751
        %v841 = vunpack.c.l.b16 %v752
        %v842 = vunpack.c.l.b16 %v753
        %v843 = vunpack.c.h.b16 %v753
        %v844 = vunpack.c.l.b16 %v754
        %v845 = vunpack.c.l.b16 %v755
        %v846 = vunpack.c.h.b16 %v755
        %v847 = vunpack.c.l.b16 %v756
        %v848 = vunpack.c.l.b16 %v757
        %v849 = vunpack.c.h.b16 %v757
        %v850 = vunpack.c.l.b16 %v758
        %v851 = vunpack.c.l.b16 %v759
        %v852 = vunpack.c.h.b16 %v759
        %v853 = vunpack.c.l.b16 %v760
        %v854 = vunpack.c.l.b16 %v761
        %v855 = vunpack.c.h.b16 %v761
        %v856 = vunpack.c.l.b16 %v762
        %v857 = vunpack.c.l.b16 %v763
        %v858 = vunpack.c.h.b16 %v763
        %v859 = vunpack.c.l.b16 %v764
        %v860 = vunpack.c.l.b16 %v765
        %v861 = vunpack.c.h.b16 %v765
        %v862 = vunpack.c.l.b16 %v766
        %v863 = vunpack.c.l.b16 %v767
        %v864 = vunpack.c.h.b16 %v767
        %v865 = vunpack.c.l.b16 %v768
        %v866 = vpack.c.b16 %v821, %v818
        %v867 = vpack.c.b16 %v822, %v819
        %v868 = vpack.c.b16 %v823, %v820
        %v869 = vpack.c.b16 %v827, %v824
        %v870 = vpack.c.b16 %v828, %v825
        %v871 = vpack.c.b16 %v829, %v826
        %v872 = vpack.c.b16 %v833, %v830
        %v873 = vpack.c.b16 %v834, %v831
        %v874 = vpack.c.b16 %v835, %v832
        %v875 = vpack.c.b16 %v839, %v836
        %v876 = vpack.c.b16 %v840, %v837
        %v877 = vpack.c.b16 %v841, %v838
        %v878 = vpack.c.b16 %v845, %v842
        %v879 = vpack.c.b16 %v846, %v843
        %v880 = vpack.c.b16 %v847, %v844
        %v881 = vpack.c.b16 %v851, %v848
        %v882 = vpack.c.b16 %v852, %v849
        %v883 = vpack.c.b16 %v853, %v850
        %v884 = vpack.c.b16 %v857, %v854
        %v885 = vpack.c.b16 %v858, %v855
        %v886 = vpack.c.b16 %v859, %v856
        %v887 = vpack.c.b16 %v863, %v860
        %v888 = vpack.c.b16 %v864, %v861
        %v889 = vpack.c.b16 %v865, %v862
        %914 = vmatprep.subr.bf16.mxu0 %v867
        %915 = vmatpush1.bf16.msra.mxu0 %v866
        %916 = vmatprep.subr.bf16.mxu0 %v870
        %917 = vmatpush1.bf16.msra.mxu0 %v869
        %918 = vmatprep.subr.bf16.mxu0 %v873
        %919 = vmatpush1.bf16.msra.mxu0 %v872
        %920 = vmatprep.subr.bf16.mxu0 %v876
        %921 = vmatpush1.bf16.msra.mxu0 %v875
        %922 = vmatprep.subr.bf16.mxu0 %v879
        %923 = vmatpush1.bf16.msra.mxu0 %v878
        %924 = vmatprep.subr.bf16.mxu0 %v882
        %925 = vmatpush1.bf16.msra.mxu0 %v881
        %926 = vmatprep.subr.bf16.mxu0 %v885
        %927 = vmatpush1.bf16.msra.mxu0 %v884
        %928 = vmatprep.subr.bf16.mxu0 %v888
        %929 = vmatpush1.bf16.msra.mxu0 %v887
        %930 = vmatprep.subr.bf16.mxu0 0
        %931 = vmatpush1.bf16.msra.mxu0 0
        %932 = vmatprep.subr.bf16.mxu0 0
        %933 = vmatpush1.bf16.msra.mxu0 0
        %934 = vmatprep.subr.bf16.mxu0 0
        %935 = vmatpush1.bf16.msra.mxu0 0
        %936 = vmatprep.subr.bf16.mxu0 0
        %937 = vmatpush1.bf16.msra.mxu0 0
        %938 = vmatprep.subr.bf16.mxu0 0
        %939 = vmatpush1.bf16.msra.mxu0 0
        %940 = vmatprep.subr.bf16.mxu0 0
        %941 = vmatpush1.bf16.msra.mxu0 0
        %942 = vmatprep.subr.bf16.mxu0 0
        %943 = vmatpush1.bf16.msra.mxu0 0
        %944 = vmatprep.subr.bf16.mxu0 0
        %945 = vmatpush1.bf16.msra.mxu0 0
        %946 = vmatprep.mubr.bf16.mxu0 0
        %947 = vmatmul.mubr.bf16.gmra.mrb[0].mxu0 %v736
        %v948 = vpop.f32.mrb[0].mxu0
        %v949 = vadd.f32 %v774, %v948
        %v950 = vpop.f32.mrb[0].mxu0
        %v951 = vadd.f32 %v778, %v950
        %v952 = vpop.f32.mrb[0].mxu0
        %v953 = vpop.f32.mrb[0].mxu0
        %954 = vdwg.mxu0
        %955 = vmatprep.subr.bf16.mxu0 0
        %956 = vmatpush1.bf16.msra.mxu0 %v868
        %957 = vmatprep.subr.bf16.mxu0 0
        %958 = vmatpush1.bf16.msra.mxu0 %v871
        %959 = vmatprep.subr.bf16.mxu0 0
        %960 = vmatpush1.bf16.msra.mxu0 %v874
        %961 = vmatprep.subr.bf16.mxu0 0
        %962 = vmatpush1.bf16.msra.mxu0 %v877
        %963 = vmatprep.subr.bf16.mxu0 0
        %964 = vmatpush1.bf16.msra.mxu0 %v880
        %965 = vmatprep.subr.bf16.mxu0 0
        %966 = vmatpush1.bf16.msra.mxu0 %v883
        %967 = vmatprep.subr.bf16.mxu0 0
        %968 = vmatpush1.bf16.msra.mxu0 %v886
        %969 = vmatprep.subr.bf16.mxu0 0
        %970 = vmatpush1.bf16.msra.mxu0 %v889
        %971 = vmatprep.subr.bf16.mxu0 0
        %972 = vmatpush1.bf16.msra.mxu0 0
        %973 = vmatprep.subr.bf16.mxu0 0
        %974 = vmatpush1.bf16.msra.mxu0 0
        %975 = vmatprep.subr.bf16.mxu0 0
        %976 = vmatpush1.bf16.msra.mxu0 0
        %977 = vmatprep.subr.bf16.mxu0 0
        %978 = vmatpush1.bf16.msra.mxu0 0
        %979 = vmatprep.subr.bf16.mxu0 0
        %980 = vmatpush1.bf16.msra.mxu0 0
        %981 = vmatprep.subr.bf16.mxu0 0
        %982 = vmatpush1.bf16.msra.mxu0 0
        %983 = vmatprep.subr.bf16.mxu0 0
        %984 = vmatpush1.bf16.msra.mxu0 0
        %985 = vmatprep.subr.bf16.mxu0 0
        %986 = vmatpush1.bf16.msra.mxu0 0
        %987 = vmatprep.mubr.bf16.mxu0 0
        %988 = vmatmul.mubr.bf16.gmra.mrb[0].mxu0 %v736
        %v989 = vpop.f32.mrb[0].mxu0
        %v990 = vadd.f32 %v782, %v989
        %v991 = vpop.f32.mrb[0].mxu0
        %v992 = vpop.f32.mrb[0].mxu0
        %v993 = vpop.f32.mrb[0].mxu0
        %994 = vdwg.mxu0
        %v995 = vld [vmem:[#allocation11] sm:$0xff]
        %v996 = vld [vmem:[#allocation11 + $0x8] sm:$0xff]
        %v997 = vld [vmem:[#allocation11 + $0x10] sm:$0xff]
        %v998 = vld [vmem:[#allocation11 + $0x18] sm:$0xff]
        %v999 = vld [vmem:[#allocation11 + $0x20] sm:$0xff]
        %v1000 = vld [vmem:[#allocation11 + $0x28] sm:$0xff]
        %v1001 = vld [vmem:[#allocation11 + $0x30] sm:$0xff]
        %v1002 = vld [vmem:[#allocation11 + $0x38] sm:$0xff]
        %v1003 = vld [vmem:[#allocation11 + $0x40] sm:$0xff]
        %v1004 = vld [vmem:[#allocation11 + $0x48] sm:$0xff]
        %v1005 = vld [vmem:[#allocation11 + $0x50] sm:$0xff]
        %v1006 = vld [vmem:[#allocation11 + $0x58] sm:$0xff]
        %v1007 = vld [vmem:[#allocation11 + $0x60] sm:$0xff]
        %v1008 = vld [vmem:[#allocation11 + $0x68] sm:$0xff]
        %v1009 = vld [vmem:[#allocation11 + $0x70] sm:$0xff]
        %v1010 = vld [vmem:[#allocation11 + $0x78] sm:$0xff]
        %v1011 = vld [vmem:[#allocation11 + $0x80] sm:$0xff]
        %v1012 = vld [vmem:[#allocation11 + $0x88] sm:$0xff]
        %v1013 = vld [vmem:[#allocation11 + $0x90] sm:$0xff]
        %v1014 = vld [vmem:[#allocation11 + $0x98] sm:$0xff]
        %v1015 = vld [vmem:[#allocation11 + $0xa0] sm:$0xff]
        %v1016 = vld [vmem:[#allocation11 + $0xa8] sm:$0xff]
        %v1017 = vld [vmem:[#allocation11 + $0xb0] sm:$0xff]
        %v1018 = vld [vmem:[#allocation11 + $0xb8] sm:$0xff]
        %v1019 = vld [vmem:[#allocation11 + $0xc0] sm:$0xff]
        %v1020 = vld [vmem:[#allocation11 + $0xc8] sm:$0xff]
        %v1021 = vld [vmem:[#allocation11 + $0xd0] sm:$0xff]
        %v1022 = vld [vmem:[#allocation11 + $0xd8] sm:$0xff]
        %v1023 = vld [vmem:[#allocation11 + $0xe0] sm:$0xff]
        %v1024 = vld [vmem:[#allocation11 + $0xe8] sm:$0xff]
        %v1025 = vld [vmem:[#allocation11 + $0xf0] sm:$0xff]
        %v1026 = vld [vmem:[#allocation11 + $0xf8] sm:$0xff]
        %v1027 = vld [vmem:[#allocation11 + $0x100] sm:$0xff]
        %v1028 = vld [vmem:[#allocation11 + $0x108] sm:$0xff]
        %v1029 = vld [vmem:[#allocation11 + $0x110] sm:$0xff]
        %v1030 = vld [vmem:[#allocation11 + $0x118] sm:$0xff]
        %v1031 = vld [vmem:[#allocation11 + $0x120] sm:$0xff]
        %v1032 = vld [vmem:[#allocation11 + $0x128] sm:$0xff]
        %v1033 = vld [vmem:[#allocation11 + $0x130] sm:$0xff]
        %v1034 = vld [vmem:[#allocation11 + $0x138] sm:$0xff]
        %v1035 = vld [vmem:[#allocation11 + $0x140] sm:$0xff]
        %v1036 = vld [vmem:[#allocation11 + $0x148] sm:$0xff]
        %v1037 = vld [vmem:[#allocation11 + $0x150] sm:$0xff]
        %v1038 = vld [vmem:[#allocation11 + $0x158] sm:$0xff]
        %v1039 = vld [vmem:[#allocation11 + $0x160] sm:$0xff]
        %v1040 = vld [vmem:[#allocation11 + $0x168] sm:$0xff]
        %v1041 = vld [vmem:[#allocation11 + $0x170] sm:$0xff]
        %v1042 = vld [vmem:[#allocation11 + $0x178] sm:$0xff]
        %v1043 = vld [vmem:[#allocation10] sm:$0xf]
        %v1044 = vld [vmem:[#allocation10 + $0x4] sm:$0xf]
        %v1045 = vld [vmem:[#allocation10 + $0x8] sm:$0xf]
        %v1046 = vld [vmem:[#allocation10 + $0xc] sm:$0xf]
        %v1047 = vld [vmem:[#allocation10 + $0x10] sm:$0xf]
        %v1048 = vld [vmem:[#allocation10 + $0x14] sm:$0xf]
        %v1049 = vld [vmem:[#allocation10 + $0x18] sm:$0xf]
        %v1050 = vld [vmem:[#allocation10 + $0x1c] sm:$0xf]
        %v1051 = vld [vmem:[#allocation10 + $0x20] sm:$0xf]
        %v1052 = vld [vmem:[#allocation10 + $0x24] sm:$0xf]
        %v1053 = vld [vmem:[#allocation10 + $0x28] sm:$0xf]
        %v1054 = vld [vmem:[#allocation10 + $0x2c] sm:$0xf]
        %v1055 = vld [vmem:[#allocation10 + $0x30] sm:$0xf]
        %v1056 = vld [vmem:[#allocation10 + $0x34] sm:$0xf]
        %v1057 = vld [vmem:[#allocation10 + $0x38] sm:$0xf]
        %v1058 = vld [vmem:[#allocation10 + $0x3c] sm:$0xf]
        %v1059 = vld [vmem:[%s6] sm:$0x1]
        %v1060 = vld [vmem:[#allocation14] sm:$0xff]
        %v1061 = vld [vmem:[#allocation14 + $0x8] sm:$0xff]
        %v1062 = vld [vmem:[#allocation14 + $0x10] sm:$0xff]
        %v1063 = vld [vmem:[#allocation14 + $0x18] sm:$0xff]
        %v1064 = vld [vmem:[#allocation14 + $0x20] sm:$0xff]
        %v1065 = vld [vmem:[#allocation14 + $0x28] sm:$0xff]
        %v1066 = vld [vmem:[#allocation14 + $0x30] sm:$0xff]
        %v1067 = vld [vmem:[#allocation14 + $0x38] sm:$0xff]
        %v1068 = vld [vmem:[#allocation14 + $0x40] sm:$0xff]
        %v1069 = vld [vmem:[#allocation14 + $0x48] sm:$0xff]
        %v1070 = vld [vmem:[#allocation14 + $0x50] sm:$0xff]
        %v1071 = vld [vmem:[#allocation14 + $0x58] sm:$0xff]
        %v1072 = vld [vmem:[#allocation14 + $0x60] sm:$0xff]
        %v1073 = vld [vmem:[#allocation14 + $0x68] sm:$0xff]
        %v1074 = vld [vmem:[#allocation14 + $0x70] sm:$0xff]
        %v1075 = vld [vmem:[#allocation14 + $0x78] sm:$0xff]
        %v1076 = vld [vmem:[#allocation14 + $0x80] sm:$0xff]
        %v1077 = vld [vmem:[#allocation14 + $0x88] sm:$0xff]
        %v1078 = vld [vmem:[#allocation14 + $0x90] sm:$0xff]
        %v1079 = vld [vmem:[#allocation14 + $0x98] sm:$0xff]
        %v1080 = vld [vmem:[#allocation14 + $0xa0] sm:$0xff]
        %v1081 = vld [vmem:[#allocation14 + $0xa8] sm:$0xff]
        %v1082 = vld [vmem:[#allocation14 + $0xb0] sm:$0xff]
        %v1083 = vld [vmem:[#allocation14 + $0xb8] sm:$0xff]
        %v1084 = vld [vmem:[#allocation14 + $0xc0] sm:$0xff]
        %v1085 = vld [vmem:[#allocation14 + $0xc8] sm:$0xff]
        %v1086 = vld [vmem:[#allocation14 + $0xd0] sm:$0xff]
        %v1087 = vld [vmem:[#allocation14 + $0xd8] sm:$0xff]
        %v1088 = vld [vmem:[#allocation14 + $0xe0] sm:$0xff]
        %v1089 = vld [vmem:[#allocation14 + $0xe8] sm:$0xff]
        %v1090 = vld [vmem:[#allocation14 + $0xf0] sm:$0xff]
        %v1091 = vld [vmem:[#allocation14 + $0xf8] sm:$0xff]
        %v1092 = vld [vmem:[%s11] sm:$0x3]
        %v1094 = vlaneseq
        %v1095 = vshrl.u32 %v1094, 7
        %v1096 = vsub.s32 0, %v1095
        %v1097 = vrot.slane %v1059, %v1096
        %v1100 = vsel %vm692, %v949, 0
        %v1103 = vsel %vm692, %v951, 0
        %1105 = vmatprep.subr.mxu0 0.0
        %1106 = vmatpush1.xpose.msra.mxu0 %v1103
        %1107 = vmatprep.subr.mxu0 0.0
        %1108 = vmatpush1.xpose.msra.mxu0 0.0
        %1109 = vmatprep.subr.mxu0 0.0
        %1110 = vmatpush1.xpose.msra.mxu0 0.0
        %1111 = vmatprep.subr.mxu0 0.0
        %1112 = vmatpush1.xpose.msra.mxu0 0.0
        %1113 = vmatprep.subr.mxu0 0.0
        %1114 = vmatpush1.xpose.msra.mxu0 0.0
        %1115 = vmatprep.subr.mxu0 0.0
        %1116 = vmatpush1.xpose.msra.mxu0 0.0
        %1117 = vmatprep.subr.mxu0 0.0
        %1118 = vmatpush1.xpose.msra.mxu0 0.0
        %1119 = vmatprep.subr.mxu0 0.0
        %1120 = vmatpush1.xpose.msra.mxu0 0.0
        %1121 = vmatprep.subr.mxu0 0.0
        %1122 = vmatpush1.xpose.msra.mxu0 0.0
        %1123 = vmatprep.subr.mxu0 0.0
        %1124 = vmatpush1.xpose.msra.mxu0 0.0
        %1125 = vmatprep.subr.mxu0 0.0
        %1126 = vmatpush1.xpose.msra.mxu0 0.0
        %1127 = vmatprep.subr.mxu0 0.0
        %1128 = vmatpush1.xpose.msra.mxu0 0.0
        %1129 = vmatprep.subr.mxu0 0.0
        %1130 = vmatpush1.xpose.msra.mxu0 0.0
        %1131 = vmatprep.subr.mxu0 0.0
        %1132 = vmatpush1.xpose.msra.mxu0 0.0
        %1133 = vmatprep.subr.mxu0 0.0
        %1134 = vmatpush1.xpose.msra.mxu0 0.0
        %1135 = vmatprep.subr.mxu0 0.0
        %1136 = vmatpush1.xpose.msra.mxu0 0.0
        %1137 = vmatprep.subr.mxu0 0.0
        %1138 = vmatpush1.xpose.msra.mxu0 0.0
        %1139 = vmatprep.subr.mxu0 0.0
        %1140 = vmatpush1.xpose.msra.mxu0 0.0
        %1141 = vmatprep.subr.mxu0 0.0
        %1142 = vmatpush1.xpose.msra.mxu0 0.0
        %1143 = vmatprep.subr.mxu0 0.0
        %1144 = vmatpush1.xpose.msra.mxu0 0.0
        %1145 = vmatprep.subr.mxu0 0.0
        %1146 = vmatpush1.xpose.msra.mxu0 0.0
        %1147 = vmatprep.subr.mxu0 0.0
        %1148 = vmatpush1.xpose.msra.mxu0 0.0
        %1149 = vmatprep.subr.mxu0 0.0
        %1150 = vmatpush1.xpose.msra.mxu0 0.0
        %1151 = vmatprep.subr.mxu0 0.0
        %1152 = vmatpush1.xpose.msra.mxu0 0.0
        %1153 = vmatprep.subr.mxu0 0.0
        %1154 = vmatpush1.xpose.msra.mxu0 0.0
        %1155 = vmatprep.subr.mxu0 0.0
        %1156 = vmatpush1.xpose.msra.mxu0 0.0
        %1157 = vmatprep.subr.mxu0 0.0
        %1158 = vmatpush1.xpose.msra.mxu0 0.0
        %1159 = vmatprep.subr.mxu0 0.0
        %1160 = vmatpush1.xpose.msra.mxu0 0.0
        %1161 = vmatprep.subr.mxu0 0.0
        %1162 = vmatpush1.xpose.msra.mxu0 0.0
        %1163 = vmatprep.subr.mxu0 0.0
        %1164 = vmatpush1.xpose.msra.mxu0 0.0
        %1165 = vmatprep.subr.mxu0 0.0
        %1166 = vmatpush1.xpose.msra.mxu0 0.0
        %1167 = vmatprep.subr.mxu0 0.0
        %1168 = vmatpush1.xpose.msra.mxu0 0.0
        %1169 = vmatprep.mubr.f32.mxu0 0.0
        %1170 = vmatmul.mubr.f32.gmra.mrb[0].mxu0 %v1100
        %v1171 = vpop.f32.mrb[0].mxu0
        %v1172 = vadd.f32 0.0, %v1171
        %v1173 = vpop.f32.mrb[0].mxu0
        %1174 = vdwg.mxu0
        %vm1175 = vcmask 64512
        %v1176 = vsel %vm1175, %v1172, -inf
        %1177 = vmax.xlane.f32.xlu0 %v1176
        %v1178 = vpop.xlane.xlu0 %1177
        %v1179 = vsub.f32 %v1172, %v1178
        %v1180 = vmul.f32 %v1179, 1.442695
        %v1181 = vpow.pop %v1180
        %v1182 = vsel %vm1175, %v1181, 0.0
        %1183 = vadd.xlane.f32.xlu0 %v1182
        %v1184 = vpop.xlane.xlu0 %1183
        %v1185 = vrcp.pop %v1184
        %v1186 = vmul.f32 %v1181, %v1185
        %v1188 = vsel %vm1175, %v1186, 0
        %1190 = vmatprep.subr.mxu0 0.0
        %1191 = vmatpush1.msra.mxu0 %v990
        %1192 = vmatprep.subr.mxu0 0.0
        %1193 = vmatpush1.msra.mxu0 0.0
        %1194 = vmatprep.subr.mxu0 0.0
        %1195 = vmatpush1.msra.mxu0 0.0
        %1196 = vmatprep.subr.mxu0 0.0
        %1197 = vmatpush1.msra.mxu0 0.0
        %1198 = vmatprep.subr.mxu0 0.0
        %1199 = vmatpush1.msra.mxu0 0.0
        %1200 = vmatprep.subr.mxu0 0.0
        %1201 = vmatpush1.msra.mxu0 0.0
        %1202 = vmatprep.subr.mxu0 0.0
        %1203 = vmatpush1.msra.mxu0 0.0
        %1204 = vmatprep.subr.mxu0 0.0
        %1205 = vmatpush1.msra.mxu0 0.0
        %1206 = vmatprep.subr.mxu0 0.0
        %1207 = vmatpush1.msra.mxu0 0.0
        %1208 = vmatprep.subr.mxu0 0.0
        %1209 = vmatpush1.msra.mxu0 0.0
        %1210 = vmatprep.subr.mxu0 0.0
        %1211 = vmatpush1.msra.mxu0 0.0
        %1212 = vmatprep.subr.mxu0 0.0
        %1213 = vmatpush1.msra.mxu0 0.0
        %1214 = vmatprep.subr.mxu0 0.0
        %1215 = vmatpush1.msra.mxu0 0.0
        %1216 = vmatprep.subr.mxu0 0.0
        %1217 = vmatpush1.msra.mxu0 0.0
        %1218 = vmatprep.subr.mxu0 0.0
        %1219 = vmatpush1.msra.mxu0 0.0
        %1220 = vmatprep.subr.mxu0 0.0
        %1221 = vmatpush1.msra.mxu0 0.0
        %1222 = vmatprep.subr.mxu0 0.0
        %1223 = vmatpush1.msra.mxu0 0.0
        %1224 = vmatprep.subr.mxu0 0.0
        %1225 = vmatpush1.msra.mxu0 0.0
        %1226 = vmatprep.subr.mxu0 0.0
        %1227 = vmatpush1.msra.mxu0 0.0
        %1228 = vmatprep.subr.mxu0 0.0
        %1229 = vmatpush1.msra.mxu0 0.0
        %1230 = vmatprep.subr.mxu0 0.0
        %1231 = vmatpush1.msra.mxu0 0.0
        %1232 = vmatprep.subr.mxu0 0.0
        %1233 = vmatpush1.msra.mxu0 0.0
        %1234 = vmatprep.subr.mxu0 0.0
        %1235 = vmatpush1.msra.mxu0 0.0
        %1236 = vmatprep.subr.mxu0 0.0
        %1237 = vmatpush1.msra.mxu0 0.0
        %1238 = vmatprep.subr.mxu0 0.0
        %1239 = vmatpush1.msra.mxu0 0.0
        %1240 = vmatprep.subr.mxu0 0.0
        %1241 = vmatpush1.msra.mxu0 0.0
        %1242 = vmatprep.subr.mxu0 0.0
        %1243 = vmatpush1.msra.mxu0 0.0
        %1244 = vmatprep.subr.mxu0 0.0
        %1245 = vmatpush1.msra.mxu0 0.0
        %1246 = vmatprep.subr.mxu0 0.0
        %1247 = vmatpush1.msra.mxu0 0.0
        %1248 = vmatprep.subr.mxu0 0.0
        %1249 = vmatpush1.msra.mxu0 0.0
        %1250 = vmatprep.subr.mxu0 0.0
        %1251 = vmatpush1.msra.mxu0 0.0
        %1252 = vmatprep.subr.mxu0 0.0
        %1253 = vmatpush1.msra.mxu0 0.0
        %1254 = vmatprep.mubr.f32.mxu0 0.0
        %1255 = vmatmul.mubr.f32.gmra.mrb[0].mxu0 %v1188
        %v1256 = vpop.f32.mrb[0].mxu0
        %v1257 = vadd.f32 0.0, %v1256
        %v1258 = vpop.f32.mrb[0].mxu0
        %1259 = vdwg.mxu0
        %v1260 = vpack.c.bf16 %v1257, %v1257
        %v1265 = vunpack.c.l.b16 %v1043
        %v1266 = vunpack.c.l.b16 %v1044
        %v1267 = vunpack.c.l.b16 %v1045
        %v1268 = vunpack.c.l.b16 %v1046
        %v1269 = vpack.c.b16 %v1266, %v1265
        %v1270 = vpack.c.b16 %v1268, %v1267
        %v1274 = vsel %vm692, %v1260, 0
        %1276 = vmatprep.subr.bf16.mxu0 0
        %1277 = vmatpush1.bf16.msra.mxu0 %v1269
        %1278 = vmatprep.subr.bf16.mxu0 0
        %1279 = vmatpush1.bf16.msra.mxu0 %v1270
        %1280 = vmatprep.subr.bf16.mxu0 0
        %1281 = vmatpush1.bf16.msra.mxu0 0
        %1282 = vmatprep.subr.bf16.mxu0 0
        %1283 = vmatpush1.bf16.msra.mxu0 0
        %1284 = vmatprep.subr.bf16.mxu0 0
        %1285 = vmatpush1.bf16.msra.mxu0 0
        %1286 = vmatprep.subr.bf16.mxu0 0
        %1287 = vmatpush1.bf16.msra.mxu0 0
        %1288 = vmatprep.subr.bf16.mxu0 0
        %1289 = vmatpush1.bf16.msra.mxu0 0
        %1290 = vmatprep.subr.bf16.mxu0 0
        %1291 = vmatpush1.bf16.msra.mxu0 0
        %1292 = vmatprep.subr.bf16.mxu0 0
        %1293 = vmatpush1.bf16.msra.mxu0 0
        %1294 = vmatprep.subr.bf16.mxu0 0
        %1295 = vmatpush1.bf16.msra.mxu0 0
        %1296 = vmatprep.subr.bf16.mxu0 0
        %1297 = vmatpush1.bf16.msra.mxu0 0
        %1298 = vmatprep.subr.bf16.mxu0 0
        %1299 = vmatpush1.bf16.msra.mxu0 0
        %1300 = vmatprep.subr.bf16.mxu0 0
        %1301 = vmatpush1.bf16.msra.mxu0 0
        %1302 = vmatprep.subr.bf16.mxu0 0
        %1303 = vmatpush1.bf16.msra.mxu0 0
        %1304 = vmatprep.subr.bf16.mxu0 0
        %1305 = vmatpush1.bf16.msra.mxu0 0
        %1306 = vmatprep.subr.bf16.mxu0 0
        %1307 = vmatpush1.bf16.msra.mxu0 0
        %1308 = vmatprep.mubr.bf16.mxu0 0
        %1309 = vmatmul.mubr.bf16.gmra.mrb[0].mxu0 %v1274
        %v1310 = vpop.f32.mrb[0].mxu0
        %v1311 = vadd.f32 0.0, %v1310
        %v1312 = vpop.f32.mrb[0].mxu0
        %v1313 = vpop.f32.mrb[0].mxu0
        %v1314 = vpop.f32.mrb[0].mxu0
        %1315 = vdwg.mxu0
        %v1316 = vadd.f32 %v1097, %v1311
        %1317 = vrot.lane.b32.xlu0 %v949, 96
        %v1318 = vpop.permute.xlu0 %1317
        %1319 = vrot.lane.b32.xlu0 %v951, 96
        %v1320 = vpop.permute.xlu0 %1319
        %v1321 = vsel %vm692, %v1318, 0
        %v1323 = vsel %vm692, %v1320, 0
        %1325 = vmatprep.subr.mxu0 0.0
        %1326 = vmatpush1.xpose.msra.mxu0 %v1323
        %1327 = vmatprep.subr.mxu0 0.0
        %1328 = vmatpush1.xpose.msra.mxu0 0.0
        %1329 = vmatprep.subr.mxu0 0.0
        %1330 = vmatpush1.xpose.msra.mxu0 0.0
        %1331 = vmatprep.subr.mxu0 0.0
        %1332 = vmatpush1.xpose.msra.mxu0 0.0
        %1333 = vmatprep.subr.mxu0 0.0
        %1334 = vmatpush1.xpose.msra.mxu0 0.0
        %1335 = vmatprep.subr.mxu0 0.0
        %1336 = vmatpush1.xpose.msra.mxu0 0.0
        %1337 = vmatprep.subr.mxu0 0.0
        %1338 = vmatpush1.xpose.msra.mxu0 0.0
        %1339 = vmatprep.subr.mxu0 0.0
        %1340 = vmatpush1.xpose.msra.mxu0 0.0
        %1341 = vmatprep.subr.mxu0 0.0
        %1342 = vmatpush1.xpose.msra.mxu0 0.0
        %1343 = vmatprep.subr.mxu0 0.0
        %1344 = vmatpush1.xpose.msra.mxu0 0.0
        %1345 = vmatprep.subr.mxu0 0.0
        %1346 = vmatpush1.xpose.msra.mxu0 0.0
        %1347 = vmatprep.subr.mxu0 0.0
        %1348 = vmatpush1.xpose.msra.mxu0 0.0
        %1349 = vmatprep.subr.mxu0 0.0
        %1350 = vmatpush1.xpose.msra.mxu0 0.0
        %1351 = vmatprep.subr.mxu0 0.0
        %1352 = vmatpush1.xpose.msra.mxu0 0.0
        %1353 = vmatprep.subr.mxu0 0.0
        %1354 = vmatpush1.xpose.msra.mxu0 0.0
        %1355 = vmatprep.subr.mxu0 0.0
        %1356 = vmatpush1.xpose.msra.mxu0 0.0
        %1357 = vmatprep.subr.mxu0 0.0
        %1358 = vmatpush1.xpose.msra.mxu0 0.0
        %1359 = vmatprep.subr.mxu0 0.0
        %1360 = vmatpush1.xpose.msra.mxu0 0.0
        %1361 = vmatprep.subr.mxu0 0.0
        %1362 = vmatpush1.xpose.msra.mxu0 0.0
        %1363 = vmatprep.subr.mxu0 0.0
        %1364 = vmatpush1.xpose.msra.mxu0 0.0
        %1365 = vmatprep.subr.mxu0 0.0
        %1366 = vmatpush1.xpose.msra.mxu0 0.0
        %1367 = vmatprep.subr.mxu0 0.0
        %1368 = vmatpush1.xpose.msra.mxu0 0.0
        %1369 = vmatprep.subr.mxu0 0.0
        %1370 = vmatpush1.xpose.msra.mxu0 0.0
        %1371 = vmatprep.subr.mxu0 0.0
        %1372 = vmatpush1.xpose.msra.mxu0 0.0
        %1373 = vmatprep.subr.mxu0 0.0
        %1374 = vmatpush1.xpose.msra.mxu0 0.0
        %1375 = vmatprep.subr.mxu0 0.0
        %1376 = vmatpush1.xpose.msra.mxu0 0.0
        %1377 = vmatprep.subr.mxu0 0.0
        %1378 = vmatpush1.xpose.msra.mxu0 0.0
        %1379 = vmatprep.subr.mxu0 0.0
        %1380 = vmatpush1.xpose.msra.mxu0 0.0
        %1381 = vmatprep.subr.mxu0 0.0
        %1382 = vmatpush1.xpose.msra.mxu0 0.0
        %1383 = vmatprep.subr.mxu0 0.0
        %1384 = vmatpush1.xpose.msra.mxu0 0.0
        %1385 = vmatprep.subr.mxu0 0.0
        %1386 = vmatpush1.xpose.msra.mxu0 0.0
        %1387 = vmatprep.subr.mxu0 0.0
        %1388 = vmatpush1.xpose.msra.mxu0 0.0
        %1389 = vmatprep.mubr.f32.mxu0 0.0
        %1390 = vmatmul.mubr.f32.gmra.mrb[0].mxu0 %v1321
        %v1391 = vpop.f32.mrb[0].mxu0
        %v1392 = vadd.f32 0.0, %v1391
        %v1393 = vpop.f32.mrb[0].mxu0
        %1394 = vdwg.mxu0
        %v1395 = vsel %vm1175, %v1392, -inf
        %1396 = vmax.xlane.f32.xlu0 %v1395
        %v1397 = vpop.xlane.xlu0 %1396
        %v1398 = vsub.f32 %v1392, %v1397
        %v1399 = vmul.f32 %v1398, 1.442695
        %v1400 = vpow.pop %v1399
        %v1401 = vsel %vm1175, %v1400, 0.0
        %1402 = vadd.xlane.f32.xlu0 %v1401
        %v1403 = vpop.xlane.xlu0 %1402
        %v1404 = vrcp.pop %v1403
        %v1405 = vmul.f32 %v1400, %v1404
        %1407 = vrot.lane.b32.xlu0 %v990, 96
        %v1408 = vpop.permute.xlu0 %1407
        %v1411 = vsel %vm1175, %v1405, 0
        %1413 = vmatprep.subr.mxu0 0.0
        %1414 = vmatpush1.msra.mxu0 %v1408
        %1415 = vmatprep.subr.mxu0 0.0
        %1416 = vmatpush1.msra.mxu0 0.0
        %1417 = vmatprep.subr.mxu0 0.0
        %1418 = vmatpush1.msra.mxu0 0.0
        %1419 = vmatprep.subr.mxu0 0.0
        %1420 = vmatpush1.msra.mxu0 0.0
        %1421 = vmatprep.subr.mxu0 0.0
        %1422 = vmatpush1.msra.mxu0 0.0
        %1423 = vmatprep.subr.mxu0 0.0
        %1424 = vmatpush1.msra.mxu0 0.0
        %1425 = vmatprep.subr.mxu0 0.0
        %1426 = vmatpush1.msra.mxu0 0.0
        %1427 = vmatprep.subr.mxu0 0.0
        %1428 = vmatpush1.msra.mxu0 0.0
        %1429 = vmatprep.subr.mxu0 0.0
        %1430 = vmatpush1.msra.mxu0 0.0
        %1431 = vmatprep.subr.mxu0 0.0
        %1432 = vmatpush1.msra.mxu0 0.0
        %1433 = vmatprep.subr.mxu0 0.0
        %1434 = vmatpush1.msra.mxu0 0.0
        %1435 = vmatprep.subr.mxu0 0.0
        %1436 = vmatpush1.msra.mxu0 0.0
        %1437 = vmatprep.subr.mxu0 0.0
        %1438 = vmatpush1.msra.mxu0 0.0
        %1439 = vmatprep.subr.mxu0 0.0
        %1440 = vmatpush1.msra.mxu0 0.0
        %1441 = vmatprep.subr.mxu0 0.0
        %1442 = vmatpush1.msra.mxu0 0.0
        %1443 = vmatprep.subr.mxu0 0.0
        %1444 = vmatpush1.msra.mxu0 0.0
        %1445 = vmatprep.subr.mxu0 0.0
        %1446 = vmatpush1.msra.mxu0 0.0
        %1447 = vmatprep.subr.mxu0 0.0
        %1448 = vmatpush1.msra.mxu0 0.0
        %1449 = vmatprep.subr.mxu0 0.0
        %1450 = vmatpush1.msra.mxu0 0.0
        %1451 = vmatprep.subr.mxu0 0.0
        %1452 = vmatpush1.msra.mxu0 0.0
        %1453 = vmatprep.subr.mxu0 0.0
        %1454 = vmatpush1.msra.mxu0 0.0
        %1455 = vmatprep.subr.mxu0 0.0
        %1456 = vmatpush1.msra.mxu0 0.0
        %1457 = vmatprep.subr.mxu0 0.0
        %1458 = vmatpush1.msra.mxu0 0.0
        %1459 = vmatprep.subr.mxu0 0.0
        %1460 = vmatpush1.msra.mxu0 0.0
        %1461 = vmatprep.subr.mxu0 0.0
        %1462 = vmatpush1.msra.mxu0 0.0
        %1463 = vmatprep.subr.mxu0 0.0
        %1464 = vmatpush1.msra.mxu0 0.0
        %1465 = vmatprep.subr.mxu0 0.0
        %1466 = vmatpush1.msra.mxu0 0.0
        %1467 = vmatprep.subr.mxu0 0.0
        %1468 = vmatpush1.msra.mxu0 0.0
        %1469 = vmatprep.subr.mxu0 0.0
        %1470 = vmatpush1.msra.mxu0 0.0
        %1471 = vmatprep.subr.mxu0 0.0
        %1472 = vmatpush1.msra.mxu0 0.0
        %1473 = vmatprep.subr.mxu0 0.0
        %1474 = vmatpush1.msra.mxu0 0.0
        %1475 = vmatprep.subr.mxu0 0.0
        %1476 = vmatpush1.msra.mxu0 0.0
        %1477 = vmatprep.mubr.f32.mxu0 0.0
        %1478 = vmatmul.mubr.f32.gmra.mrb[0].mxu0 %v1411
        %v1479 = vpop.f32.mrb[0].mxu0
        %v1480 = vadd.f32 0.0, %v1479
        %v1481 = vpop.f32.mrb[0].mxu0
        %1482 = vdwg.mxu0
        %v1483 = vpack.c.bf16 %v1480, %v1480
        %v1488 = vunpack.c.l.b16 %v1047
        %v1489 = vunpack.c.l.b16 %v1048
        %v1490 = vunpack.c.l.b16 %v1049
        %v1491 = vunpack.c.l.b16 %v1050
        %v1492 = vpack.c.b16 %v1489, %v1488
        %v1493 = vpack.c.b16 %v1491, %v1490
        %v1497 = vsel %vm692, %v1483, 0
        %1499 = vmatprep.subr.bf16.mxu0 0
        %1500 = vmatpush1.bf16.msra.mxu0 %v1492
        %1501 = vmatprep.subr.bf16.mxu0 0
        %1502 = vmatpush1.bf16.msra.mxu0 %v1493
        %1503 = vmatprep.subr.bf16.mxu0 0
        %1504 = vmatpush1.bf16.msra.mxu0 0
        %1505 = vmatprep.subr.bf16.mxu0 0
        %1506 = vmatpush1.bf16.msra.mxu0 0
        %1507 = vmatprep.subr.bf16.mxu0 0
        %1508 = vmatpush1.bf16.msra.mxu0 0
        %1509 = vmatprep.subr.bf16.mxu0 0
        %1510 = vmatpush1.bf16.msra.mxu0 0
        %1511 = vmatprep.subr.bf16.mxu0 0
        %1512 = vmatpush1.bf16.msra.mxu0 0
        %1513 = vmatprep.subr.bf16.mxu0 0
        %1514 = vmatpush1.bf16.msra.mxu0 0
        %1515 = vmatprep.subr.bf16.mxu0 0
        %1516 = vmatpush1.bf16.msra.mxu0 0
        %1517 = vmatprep.subr.bf16.mxu0 0
        %1518 = vmatpush1.bf16.msra.mxu0 0
        %1519 = vmatprep.subr.bf16.mxu0 0
        %1520 = vmatpush1.bf16.msra.mxu0 0
        %1521 = vmatprep.subr.bf16.mxu0 0
        %1522 = vmatpush1.bf16.msra.mxu0 0
        %1523 = vmatprep.subr.bf16.mxu0 0
        %1524 = vmatpush1.bf16.msra.mxu0 0
        %1525 = vmatprep.subr.bf16.mxu0 0
        %1526 = vmatpush1.bf16.msra.mxu0 0
        %1527 = vmatprep.subr.bf16.mxu0 0
        %1528 = vmatpush1.bf16.msra.mxu0 0
        %1529 = vmatprep.subr.bf16.mxu0 0
        %1530 = vmatpush1.bf16.msra.mxu0 0
        %1531 = vmatprep.mubr.bf16.mxu0 0
        %1532 = vmatmul.mubr.bf16.gmra.mrb[0].mxu0 %v1497
        %v1533 = vpop.f32.mrb[0].mxu0
        %v1534 = vadd.f32 0.0, %v1533
        %v1535 = vpop.f32.mrb[0].mxu0
        %v1536 = vpop.f32.mrb[0].mxu0
        %v1537 = vpop.f32.mrb[0].mxu0
        %1538 = vdwg.mxu0
        %v1539 = vadd.f32 %v1316, %v1534
        %1540 = vrot.lane.b32.xlu0 %v949, 64
        %v1541 = vpop.permute.xlu0 %1540
        %1542 = vrot.lane.b32.xlu0 %v951, 64
        %v1543 = vpop.permute.xlu0 %1542
        %v1544 = vsel %vm692, %v1541, 0
        %v1546 = vsel %vm692, %v1543, 0
        %1548 = vmatprep.subr.mxu0 0.0
        %1549 = vmatpush1.xpose.msra.mxu0 %v1546
        %1550 = vmatprep.subr.mxu0 0.0
        %1551 = vmatpush1.xpose.msra.mxu0 0.0
        %1552 = vmatprep.subr.mxu0 0.0
        %1553 = vmatpush1.xpose.msra.mxu0 0.0
        %1554 = vmatprep.subr.mxu0 0.0
        %1555 = vmatpush1.xpose.msra.mxu0 0.0
        %1556 = vmatprep.subr.mxu0 0.0
        %1557 = vmatpush1.xpose.msra.mxu0 0.0
        %1558 = vmatprep.subr.mxu0 0.0
        %1559 = vmatpush1.xpose.msra.mxu0 0.0
        %1560 = vmatprep.subr.mxu0 0.0
        %1561 = vmatpush1.xpose.msra.mxu0 0.0
        %1562 = vmatprep.subr.mxu0 0.0
        %1563 = vmatpush1.xpose.msra.mxu0 0.0
        %1564 = vmatprep.subr.mxu0 0.0
        %1565 = vmatpush1.xpose.msra.mxu0 0.0
        %1566 = vmatprep.subr.mxu0 0.0
        %1567 = vmatpush1.xpose.msra.mxu0 0.0
        %1568 = vmatprep.subr.mxu0 0.0
        %1569 = vmatpush1.xpose.msra.mxu0 0.0
        %1570 = vmatprep.subr.mxu0 0.0
        %1571 = vmatpush1.xpose.msra.mxu0 0.0
        %1572 = vmatprep.subr.mxu0 0.0
        %1573 = vmatpush1.xpose.msra.mxu0 0.0
        %1574 = vmatprep.subr.mxu0 0.0
        %1575 = vmatpush1.xpose.msra.mxu0 0.0
        %1576 = vmatprep.subr.mxu0 0.0
        %1577 = vmatpush1.xpose.msra.mxu0 0.0
        %1578 = vmatprep.subr.mxu0 0.0
        %1579 = vmatpush1.xpose.msra.mxu0 0.0
        %1580 = vmatprep.subr.mxu0 0.0
        %1581 = vmatpush1.xpose.msra.mxu0 0.0
        %1582 = vmatprep.subr.mxu0 0.0
        %1583 = vmatpush1.xpose.msra.mxu0 0.0
        %1584 = vmatprep.subr.mxu0 0.0
        %1585 = vmatpush1.xpose.msra.mxu0 0.0
        %1586 = vmatprep.subr.mxu0 0.0
        %1587 = vmatpush1.xpose.msra.mxu0 0.0
        %1588 = vmatprep.subr.mxu0 0.0
        %1589 = vmatpush1.xpose.msra.mxu0 0.0
        %1590 = vmatprep.subr.mxu0 0.0
        %1591 = vmatpush1.xpose.msra.mxu0 0.0
        %1592 = vmatprep.subr.mxu0 0.0
        %1593 = vmatpush1.xpose.msra.mxu0 0.0
        %1594 = vmatprep.subr.mxu0 0.0
        %1595 = vmatpush1.xpose.msra.mxu0 0.0
        %1596 = vmatprep.subr.mxu0 0.0
        %1597 = vmatpush1.xpose.msra.mxu0 0.0
        %1598 = vmatprep.subr.mxu0 0.0
        %1599 = vmatpush1.xpose.msra.mxu0 0.0
        %1600 = vmatprep.subr.mxu0 0.0
        %1601 = vmatpush1.xpose.msra.mxu0 0.0
        %1602 = vmatprep.subr.mxu0 0.0
        %1603 = vmatpush1.xpose.msra.mxu0 0.0
        %1604 = vmatprep.subr.mxu0 0.0
        %1605 = vmatpush1.xpose.msra.mxu0 0.0
        %1606 = vmatprep.subr.mxu0 0.0
        %1607 = vmatpush1.xpose.msra.mxu0 0.0
        %1608 = vmatprep.subr.mxu0 0.0
        %1609 = vmatpush1.xpose.msra.mxu0 0.0
        %1610 = vmatprep.subr.mxu0 0.0
        %1611 = vmatpush1.xpose.msra.mxu0 0.0
        %1612 = vmatprep.mubr.f32.mxu0 0.0
        %1613 = vmatmul.mubr.f32.gmra.mrb[0].mxu0 %v1544
        %v1614 = vpop.f32.mrb[0].mxu0
        %v1615 = vadd.f32 0.0, %v1614
        %v1616 = vpop.f32.mrb[0].mxu0
        %1617 = vdwg.mxu0
        %v1618 = vsel %vm1175, %v1615, -inf
        %1619 = vmax.xlane.f32.xlu0 %v1618
        %v1620 = vpop.xlane.xlu0 %1619
        %v1621 = vsub.f32 %v1615, %v1620
        %v1622 = vmul.f32 %v1621, 1.442695
        %v1623 = vpow.pop %v1622
        %v1624 = vsel %vm1175, %v1623, 0.0
        %1625 = vadd.xlane.f32.xlu0 %v1624
        %v1626 = vpop.xlane.xlu0 %1625
        %v1627 = vrcp.pop %v1626
        %v1628 = vmul.f32 %v1623, %v1627
        %1629 = vrot.lane.b32.xlu0 %v990, 64
        %v1630 = vpop.permute.xlu0 %1629
        %v1633 = vsel %vm1175, %v1628, 0
        %1635 = vmatprep.subr.mxu0 0.0
        %1636 = vmatpush1.msra.mxu0 %v1630
        %1637 = vmatprep.subr.mxu0 0.0
        %1638 = vmatpush1.msra.mxu0 0.0
        %1639 = vmatprep.subr.mxu0 0.0
        %1640 = vmatpush1.msra.mxu0 0.0
        %1641 = vmatprep.subr.mxu0 0.0
        %1642 = vmatpush1.msra.mxu0 0.0
        %1643 = vmatprep.subr.mxu0 0.0
        %1644 = vmatpush1.msra.mxu0 0.0
        %1645 = vmatprep.subr.mxu0 0.0
        %1646 = vmatpush1.msra.mxu0 0.0
        %1647 = vmatprep.subr.mxu0 0.0
        %1648 = vmatpush1.msra.mxu0 0.0
        %1649 = vmatprep.subr.mxu0 0.0
        %1650 = vmatpush1.msra.mxu0 0.0
        %1651 = vmatprep.subr.mxu0 0.0
        %1652 = vmatpush1.msra.mxu0 0.0
        %1653 = vmatprep.subr.mxu0 0.0
        %1654 = vmatpush1.msra.mxu0 0.0
        %1655 = vmatprep.subr.mxu0 0.0
        %1656 = vmatpush1.msra.mxu0 0.0
        %1657 = vmatprep.subr.mxu0 0.0
        %1658 = vmatpush1.msra.mxu0 0.0
        %1659 = vmatprep.subr.mxu0 0.0
        %1660 = vmatpush1.msra.mxu0 0.0
        %1661 = vmatprep.subr.mxu0 0.0
        %1662 = vmatpush1.msra.mxu0 0.0
        %1663 = vmatprep.subr.mxu0 0.0
        %1664 = vmatpush1.msra.mxu0 0.0
        %1665 = vmatprep.subr.mxu0 0.0
        %1666 = vmatpush1.msra.mxu0 0.0
        %1667 = vmatprep.subr.mxu0 0.0
        %1668 = vmatpush1.msra.mxu0 0.0
        %1669 = vmatprep.subr.mxu0 0.0
        %1670 = vmatpush1.msra.mxu0 0.0
        %1671 = vmatprep.subr.mxu0 0.0
        %1672 = vmatpush1.msra.mxu0 0.0
        %1673 = vmatprep.subr.mxu0 0.0
        %1674 = vmatpush1.msra.mxu0 0.0
        %1675 = vmatprep.subr.mxu0 0.0
        %1676 = vmatpush1.msra.mxu0 0.0
        %1677 = vmatprep.subr.mxu0 0.0
        %1678 = vmatpush1.msra.mxu0 0.0
        %1679 = vmatprep.subr.mxu0 0.0
        %1680 = vmatpush1.msra.mxu0 0.0
        %1681 = vmatprep.subr.mxu0 0.0
        %1682 = vmatpush1.msra.mxu0 0.0
        %1683 = vmatprep.subr.mxu0 0.0
        %1684 = vmatpush1.msra.mxu0 0.0
        %1685 = vmatprep.subr.mxu0 0.0
        %1686 = vmatpush1.msra.mxu0 0.0
        %1687 = vmatprep.subr.mxu0 0.0
        %1688 = vmatpush1.msra.mxu0 0.0
        %1689 = vmatprep.subr.mxu0 0.0
        %1690 = vmatpush1.msra.mxu0 0.0
        %1691 = vmatprep.subr.mxu0 0.0
        %1692 = vmatpush1.msra.mxu0 0.0
        %1693 = vmatprep.subr.mxu0 0.0
        %1694 = vmatpush1.msra.mxu0 0.0
        %1695 = vmatprep.subr.mxu0 0.0
        %1696 = vmatpush1.msra.mxu0 0.0
        %1697 = vmatprep.subr.mxu0 0.0
        %1698 = vmatpush1.msra.mxu0 0.0
        %1699 = vmatprep.mubr.f32.mxu0 0.0
        %1700 = vmatmul.mubr.f32.gmra.mrb[0].mxu0 %v1633
        %v1701 = vpop.f32.mrb[0].mxu0
        %v1702 = vadd.f32 0.0, %v1701
        %v1703 = vpop.f32.mrb[0].mxu0
        %1704 = vdwg.mxu0
        %v1705 = vpack.c.bf16 %v1702, %v1702
        %v1710 = vunpack.c.l.b16 %v1051
        %v1711 = vunpack.c.l.b16 %v1052
        %v1712 = vunpack.c.l.b16 %v1053
        %v1713 = vunpack.c.l.b16 %v1054
        %v1714 = vpack.c.b16 %v1711, %v1710
        %v1715 = vpack.c.b16 %v1713, %v1712
        %v1719 = vsel %vm692, %v1705, 0
        %1721 = vmatprep.subr.bf16.mxu0 0
        %1722 = vmatpush1.bf16.msra.mxu0 %v1714
        %1723 = vmatprep.subr.bf16.mxu0 0
        %1724 = vmatpush1.bf16.msra.mxu0 %v1715
        %1725 = vmatprep.subr.bf16.mxu0 0
        %1726 = vmatpush1.bf16.msra.mxu0 0
        %1727 = vmatprep.subr.bf16.mxu0 0
        %1728 = vmatpush1.bf16.msra.mxu0 0
        %1729 = vmatprep.subr.bf16.mxu0 0
        %1730 = vmatpush1.bf16.msra.mxu0 0
        %1731 = vmatprep.subr.bf16.mxu0 0
        %1732 = vmatpush1.bf16.msra.mxu0 0
        %1733 = vmatprep.subr.bf16.mxu0 0
        %1734 = vmatpush1.bf16.msra.mxu0 0
        %1735 = vmatprep.subr.bf16.mxu0 0
        %1736 = vmatpush1.bf16.msra.mxu0 0
        %1737 = vmatprep.subr.bf16.mxu0 0
        %1738 = vmatpush1.bf16.msra.mxu0 0
        %1739 = vmatprep.subr.bf16.mxu0 0
        %1740 = vmatpush1.bf16.msra.mxu0 0
        %1741 = vmatprep.subr.bf16.mxu0 0
        %1742 = vmatpush1.bf16.msra.mxu0 0
        %1743 = vmatprep.subr.bf16.mxu0 0
        %1744 = vmatpush1.bf16.msra.mxu0 0
        %1745 = vmatprep.subr.bf16.mxu0 0
        %1746 = vmatpush1.bf16.msra.mxu0 0
        %1747 = vmatprep.subr.bf16.mxu0 0
        %1748 = vmatpush1.bf16.msra.mxu0 0
        %1749 = vmatprep.subr.bf16.mxu0 0
        %1750 = vmatpush1.bf16.msra.mxu0 0
        %1751 = vmatprep.subr.bf16.mxu0 0
        %1752 = vmatpush1.bf16.msra.mxu0 0
        %1753 = vmatprep.mubr.bf16.mxu0 0
        %1754 = vmatmul.mubr.bf16.gmra.mrb[0].mxu0 %v1719
        %v1755 = vpop.f32.mrb[0].mxu0
        %v1756 = vadd.f32 0.0, %v1755
        %v1757 = vpop.f32.mrb[0].mxu0
        %v1758 = vpop.f32.mrb[0].mxu0
        %v1759 = vpop.f32.mrb[0].mxu0
        %1760 = vdwg.mxu0
        %v1761 = vadd.f32 %v1539, %v1756
        %1762 = vrot.lane.b32.xlu0 %v949, 32
        %v1763 = vpop.permute.xlu0 %1762
        %1764 = vrot.lane.b32.xlu0 %v951, 32
        %v1765 = vpop.permute.xlu0 %1764
        %v1766 = vsel %vm692, %v1763, 0
        %v1768 = vsel %vm692, %v1765, 0
        %1770 = vmatprep.subr.mxu0 0.0
        %1771 = vmatpush1.xpose.msra.mxu0 %v1768
        %1772 = vmatprep.subr.mxu0 0.0
        %1773 = vmatpush1.xpose.msra.mxu0 0.0
        %1774 = vmatprep.subr.mxu0 0.0
        %1775 = vmatpush1.xpose.msra.mxu0 0.0
        %1776 = vmatprep.subr.mxu0 0.0
        %1777 = vmatpush1.xpose.msra.mxu0 0.0
        %1778 = vmatprep.subr.mxu0 0.0
        %1779 = vmatpush1.xpose.msra.mxu0 0.0
        %1780 = vmatprep.subr.mxu0 0.0
        %1781 = vmatpush1.xpose.msra.mxu0 0.0
        %1782 = vmatprep.subr.mxu0 0.0
        %1783 = vmatpush1.xpose.msra.mxu0 0.0
        %1784 = vmatprep.subr.mxu0 0.0
        %1785 = vmatpush1.xpose.msra.mxu0 0.0
        %1786 = vmatprep.subr.mxu0 0.0
        %1787 = vmatpush1.xpose.msra.mxu0 0.0
        %1788 = vmatprep.subr.mxu0 0.0
        %1789 = vmatpush1.xpose.msra.mxu0 0.0
        %1790 = vmatprep.subr.mxu0 0.0
        %1791 = vmatpush1.xpose.msra.mxu0 0.0
        %1792 = vmatprep.subr.mxu0 0.0
        %1793 = vmatpush1.xpose.msra.mxu0 0.0
        %1794 = vmatprep.subr.mxu0 0.0
        %1795 = vmatpush1.xpose.msra.mxu0 0.0
        %1796 = vmatprep.subr.mxu0 0.0
        %1797 = vmatpush1.xpose.msra.mxu0 0.0
        %1798 = vmatprep.subr.mxu0 0.0
        %1799 = vmatpush1.xpose.msra.mxu0 0.0
        %1800 = vmatprep.subr.mxu0 0.0
        %1801 = vmatpush1.xpose.msra.mxu0 0.0
        %1802 = vmatprep.subr.mxu0 0.0
        %1803 = vmatpush1.xpose.msra.mxu0 0.0
        %1804 = vmatprep.subr.mxu0 0.0
        %1805 = vmatpush1.xpose.msra.mxu0 0.0
        %1806 = vmatprep.subr.mxu0 0.0
        %1807 = vmatpush1.xpose.msra.mxu0 0.0
        %1808 = vmatprep.subr.mxu0 0.0
        %1809 = vmatpush1.xpose.msra.mxu0 0.0
        %1810 = vmatprep.subr.mxu0 0.0
        %1811 = vmatpush1.xpose.msra.mxu0 0.0
        %1812 = vmatprep.subr.mxu0 0.0
        %1813 = vmatpush1.xpose.msra.mxu0 0.0
        %1814 = vmatprep.subr.mxu0 0.0
        %1815 = vmatpush1.xpose.msra.mxu0 0.0
        %1816 = vmatprep.subr.mxu0 0.0
        %1817 = vmatpush1.xpose.msra.mxu0 0.0
        %1818 = vmatprep.subr.mxu0 0.0
        %1819 = vmatpush1.xpose.msra.mxu0 0.0
        %1820 = vmatprep.subr.mxu0 0.0
        %1821 = vmatpush1.xpose.msra.mxu0 0.0
        %1822 = vmatprep.subr.mxu0 0.0
        %1823 = vmatpush1.xpose.msra.mxu0 0.0
        %1824 = vmatprep.subr.mxu0 0.0
        %1825 = vmatpush1.xpose.msra.mxu0 0.0
        %1826 = vmatprep.subr.mxu0 0.0
        %1827 = vmatpush1.xpose.msra.mxu0 0.0
        %1828 = vmatprep.subr.mxu0 0.0
        %1829 = vmatpush1.xpose.msra.mxu0 0.0
        %1830 = vmatprep.subr.mxu0 0.0
        %1831 = vmatpush1.xpose.msra.mxu0 0.0
        %1832 = vmatprep.subr.mxu0 0.0
        %1833 = vmatpush1.xpose.msra.mxu0 0.0
        %1834 = vmatprep.mubr.f32.mxu0 0.0
        %1835 = vmatmul.mubr.f32.gmra.mrb[0].mxu0 %v1766
        %v1836 = vpop.f32.mrb[0].mxu0
        %v1837 = vadd.f32 0.0, %v1836
        %v1838 = vpop.f32.mrb[0].mxu0
        %1839 = vdwg.mxu0
        %v1840 = vsel %vm1175, %v1837, -inf
        %1841 = vmax.xlane.f32.xlu0 %v1840
        %v1842 = vpop.xlane.xlu0 %1841
        %v1843 = vsub.f32 %v1837, %v1842
        %v1844 = vmul.f32 %v1843, 1.442695
        %v1845 = vpow.pop %v1844
        %v1846 = vsel %vm1175, %v1845, 0.0
        %1847 = vadd.xlane.f32.xlu0 %v1846
        %v1848 = vpop.xlane.xlu0 %1847
        %v1849 = vrcp.pop %v1848
        %v1850 = vmul.f32 %v1845, %v1849
        %1851 = vrot.lane.b32.xlu0 %v990, 32
        %v1852 = vpop.permute.xlu0 %1851
        %v1855 = vsel %vm1175, %v1850, 0
        %1857 = vmatprep.subr.mxu0 0.0
        %1858 = vmatpush1.msra.mxu0 %v1852
        %1859 = vmatprep.subr.mxu0 0.0
        %1860 = vmatpush1.msra.mxu0 0.0
        %1861 = vmatprep.subr.mxu0 0.0
        %1862 = vmatpush1.msra.mxu0 0.0
        %1863 = vmatprep.subr.mxu0 0.0
        %1864 = vmatpush1.msra.mxu0 0.0
        %1865 = vmatprep.subr.mxu0 0.0
        %1866 = vmatpush1.msra.mxu0 0.0
        %1867 = vmatprep.subr.mxu0 0.0
        %1868 = vmatpush1.msra.mxu0 0.0
        %1869 = vmatprep.subr.mxu0 0.0
        %1870 = vmatpush1.msra.mxu0 0.0
        %1871 = vmatprep.subr.mxu0 0.0
        %1872 = vmatpush1.msra.mxu0 0.0
        %1873 = vmatprep.subr.mxu0 0.0
        %1874 = vmatpush1.msra.mxu0 0.0
        %1875 = vmatprep.subr.mxu0 0.0
        %1876 = vmatpush1.msra.mxu0 0.0
        %1877 = vmatprep.subr.mxu0 0.0
        %1878 = vmatpush1.msra.mxu0 0.0
        %1879 = vmatprep.subr.mxu0 0.0
        %1880 = vmatpush1.msra.mxu0 0.0
        %1881 = vmatprep.subr.mxu0 0.0
        %1882 = vmatpush1.msra.mxu0 0.0
        %1883 = vmatprep.subr.mxu0 0.0
        %1884 = vmatpush1.msra.mxu0 0.0
        %1885 = vmatprep.subr.mxu0 0.0
        %1886 = vmatpush1.msra.mxu0 0.0
        %1887 = vmatprep.subr.mxu0 0.0
        %1888 = vmatpush1.msra.mxu0 0.0
        %1889 = vmatprep.subr.mxu0 0.0
        %1890 = vmatpush1.msra.mxu0 0.0
        %1891 = vmatprep.subr.mxu0 0.0
        %1892 = vmatpush1.msra.mxu0 0.0
        %1893 = vmatprep.subr.mxu0 0.0
        %1894 = vmatpush1.msra.mxu0 0.0
        %1895 = vmatprep.subr.mxu0 0.0
        %1896 = vmatpush1.msra.mxu0 0.0
        %1897 = vmatprep.subr.mxu0 0.0
        %1898 = vmatpush1.msra.mxu0 0.0
        %1899 = vmatprep.subr.mxu0 0.0
        %1900 = vmatpush1.msra.mxu0 0.0
        %1901 = vmatprep.subr.mxu0 0.0
        %1902 = vmatpush1.msra.mxu0 0.0
        %1903 = vmatprep.subr.mxu0 0.0
        %1904 = vmatpush1.msra.mxu0 0.0
        %1905 = vmatprep.subr.mxu0 0.0
        %1906 = vmatpush1.msra.mxu0 0.0
        %1907 = vmatprep.subr.mxu0 0.0
        %1908 = vmatpush1.msra.mxu0 0.0
        %1909 = vmatprep.subr.mxu0 0.0
        %1910 = vmatpush1.msra.mxu0 0.0
        %1911 = vmatprep.subr.mxu0 0.0
        %1912 = vmatpush1.msra.mxu0 0.0
        %1913 = vmatprep.subr.mxu0 0.0
        %1914 = vmatpush1.msra.mxu0 0.0
        %1915 = vmatprep.subr.mxu0 0.0
        %1916 = vmatpush1.msra.mxu0 0.0
        %1917 = vmatprep.subr.mxu0 0.0
        %1918 = vmatpush1.msra.mxu0 0.0
        %1919 = vmatprep.subr.mxu0 0.0
        %1920 = vmatpush1.msra.mxu0 0.0
        %1921 = vmatprep.mubr.f32.mxu0 0.0
        %1922 = vmatmul.mubr.f32.gmra.mrb[0].mxu0 %v1855
        %v1923 = vpop.f32.mrb[0].mxu0
        %v1924 = vadd.f32 0.0, %v1923
        %v1925 = vpop.f32.mrb[0].mxu0
        %1926 = vdwg.mxu0
        %v1927 = vpack.c.bf16 %v1924, %v1924
        %v1932 = vunpack.c.l.b16 %v1055
        %v1933 = vunpack.c.l.b16 %v1056
        %v1934 = vunpack.c.l.b16 %v1057
        %v1935 = vunpack.c.l.b16 %v1058
        %v1936 = vpack.c.b16 %v1933, %v1932
        %v1937 = vpack.c.b16 %v1935, %v1934
        %v1941 = vsel %vm692, %v1927, 0
        %1943 = vmatprep.subr.bf16.mxu0 0
        %1944 = vmatpush1.bf16.msra.mxu0 %v1936
        %1945 = vmatprep.subr.bf16.mxu0 0
        %1946 = vmatpush1.bf16.msra.mxu0 %v1937
        %1947 = vmatprep.subr.bf16.mxu0 0
        %1948 = vmatpush1.bf16.msra.mxu0 0
        %1949 = vmatprep.subr.bf16.mxu0 0
        %1950 = vmatpush1.bf16.msra.mxu0 0
        %1951 = vmatprep.subr.bf16.mxu0 0
        %1952 = vmatpush1.bf16.msra.mxu0 0
        %1953 = vmatprep.subr.bf16.mxu0 0
        %1954 = vmatpush1.bf16.msra.mxu0 0
        %1955 = vmatprep.subr.bf16.mxu0 0
        %1956 = vmatpush1.bf16.msra.mxu0 0
        %1957 = vmatprep.subr.bf16.mxu0 0
        %1958 = vmatpush1.bf16.msra.mxu0 0
        %1959 = vmatprep.subr.bf16.mxu0 0
        %1960 = vmatpush1.bf16.msra.mxu0 0
        %1961 = vmatprep.subr.bf16.mxu0 0
        %1962 = vmatpush1.bf16.msra.mxu0 0
        %1963 = vmatprep.subr.bf16.mxu0 0
        %1964 = vmatpush1.bf16.msra.mxu0 0
        %1965 = vmatprep.subr.bf16.mxu0 0
        %1966 = vmatpush1.bf16.msra.mxu0 0
        %1967 = vmatprep.subr.bf16.mxu0 0
        %1968 = vmatpush1.bf16.msra.mxu0 0
        %1969 = vmatprep.subr.bf16.mxu0 0
        %1970 = vmatpush1.bf16.msra.mxu0 0
        %1971 = vmatprep.subr.bf16.mxu0 0
        %1972 = vmatpush1.bf16.msra.mxu0 0
        %1973 = vmatprep.subr.bf16.mxu0 0
        %1974 = vmatpush1.bf16.msra.mxu0 0
        %1975 = vmatprep.mubr.bf16.mxu0 0
        %1976 = vmatmul.mubr.bf16.gmra.mrb[0].mxu0 %v1941
        %v1977 = vpop.f32.mrb[0].mxu0
        %v1978 = vadd.f32 0.0, %v1977
        %v1979 = vpop.f32.mrb[0].mxu0
        %v1980 = vpop.f32.mrb[0].mxu0
        %v1981 = vpop.f32.mrb[0].mxu0
        %1982 = vdwg.mxu0
        %v1983 = vadd.f32 %v1761, %v1978
        %v1984 = vrot.slane %v1983, 4
        %v1985 = vadd.f32 %v1983, %v1984
        %v1986 = vrot.slane %v1985, 2
        %v1987 = vadd.f32 %v1985, %v1986
        %v1988 = vrot.slane %v1987, 1
        %v1989 = vadd.f32 %v1987, %v1988
        %v1990 = vrcp.pop 8.0
        %v1991 = vmul.f32 %v1989, %v1990
        %v1992 = vpack.c.bf16 %v1991, %v1991
        %v1993 = vld [vmem:[#allocation13] sm:$0xff]
        %v1994 = vld [vmem:[#allocation13 + $0x8] sm:$0xff]
        %v1995 = vld [vmem:[#allocation13 + $0x10] sm:$0xff]
        %v1996 = vld [vmem:[#allocation13 + $0x18] sm:$0xff]
        %v1997 = vld [vmem:[#allocation13 + $0x20] sm:$0xff]
        %v1998 = vld [vmem:[#allocation13 + $0x28] sm:$0xff]
        %v1999 = vld [vmem:[#allocation13 + $0x30] sm:$0xff]
        %v2000 = vld [vmem:[#allocation13 + $0x38] sm:$0xff]
        %v2001 = vld [vmem:[#allocation13 + $0x40] sm:$0xff]
        %v2002 = vld [vmem:[#allocation13 + $0x48] sm:$0xff]
        %v2003 = vld [vmem:[#allocation13 + $0x50] sm:$0xff]
        %v2004 = vld [vmem:[#allocation13 + $0x58] sm:$0xff]
        %v2005 = vld [vmem:[#allocation13 + $0x60] sm:$0xff]
        %v2006 = vld [vmem:[#allocation13 + $0x68] sm:$0xff]
        %v2007 = vld [vmem:[#allocation13 + $0x70] sm:$0xff]
        %v2008 = vld [vmem:[#allocation13 + $0x78] sm:$0xff]
        %v2009 = vld [vmem:[#allocation13 + $0x80] sm:$0xff]
        %v2010 = vld [vmem:[#allocation13 + $0x88] sm:$0xff]
        %v2011 = vld [vmem:[#allocation13 + $0x90] sm:$0xff]
        %v2012 = vld [vmem:[#allocation13 + $0x98] sm:$0xff]
        %v2013 = vld [vmem:[#allocation13 + $0xa0] sm:$0xff]
        %v2014 = vld [vmem:[#allocation13 + $0xa8] sm:$0xff]
        %v2015 = vld [vmem:[#allocation13 + $0xb0] sm:$0xff]
        %v2016 = vld [vmem:[#allocation13 + $0xb8] sm:$0xff]
        %v2017 = vld [vmem:[#allocation13 + $0xc0] sm:$0xff]
        %v2018 = vld [vmem:[#allocation13 + $0xc8] sm:$0xff]
        %v2019 = vld [vmem:[#allocation13 + $0xd0] sm:$0xff]
        %v2020 = vld [vmem:[#allocation13 + $0xd8] sm:$0xff]
        %v2021 = vld [vmem:[#allocation13 + $0xe0] sm:$0xff]
        %v2022 = vld [vmem:[#allocation13 + $0xe8] sm:$0xff]
        %v2023 = vld [vmem:[#allocation13 + $0xf0] sm:$0xff]
        %v2024 = vld [vmem:[#allocation13 + $0xf8] sm:$0xff]
        %v2025 = vld [vmem:[#allocation13 + $0x100] sm:$0xff]
        %v2026 = vld [vmem:[#allocation13 + $0x108] sm:$0xff]
        %v2027 = vld [vmem:[#allocation13 + $0x110] sm:$0xff]
        %v2028 = vld [vmem:[#allocation13 + $0x118] sm:$0xff]
        %v2029 = vld [vmem:[#allocation13 + $0x120] sm:$0xff]
        %v2030 = vld [vmem:[#allocation13 + $0x128] sm:$0xff]
        %v2031 = vld [vmem:[#allocation13 + $0x130] sm:$0xff]
        %v2032 = vld [vmem:[#allocation13 + $0x138] sm:$0xff]
        %v2033 = vld [vmem:[#allocation13 + $0x140] sm:$0xff]
        %v2034 = vld [vmem:[#allocation13 + $0x148] sm:$0xff]
        %v2035 = vld [vmem:[#allocation13 + $0x150] sm:$0xff]
        %v2036 = vld [vmem:[#allocation13 + $0x158] sm:$0xff]
        %v2037 = vld [vmem:[#allocation13 + $0x160] sm:$0xff]
        %v2038 = vld [vmem:[#allocation13 + $0x168] sm:$0xff]
        %v2039 = vld [vmem:[#allocation13 + $0x170] sm:$0xff]
        %v2040 = vld [vmem:[#allocation13 + $0x178] sm:$0xff]
        %v2041 = vld [vmem:[%s9] sm:$0x3f]
        %v2090 = vunpack.c.l.b16 %v1993
        %v2091 = vunpack.c.h.b16 %v1993
        %v2092 = vunpack.c.l.b16 %v1994
        %v2093 = vunpack.c.h.b16 %v1994
        %v2094 = vunpack.c.l.b16 %v1995
        %v2095 = vunpack.c.h.b16 %v1995
        %v2096 = vunpack.c.l.b16 %v1996
        %v2097 = vunpack.c.h.b16 %v1996
        %v2098 = vunpack.c.l.b16 %v1997
        %v2099 = vunpack.c.h.b16 %v1997
        %v2100 = vunpack.c.l.b16 %v1998
        %v2101 = vunpack.c.h.b16 %v1998
        %v2102 = vunpack.c.l.b16 %v1999
        %v2103 = vunpack.c.h.b16 %v1999
        %v2104 = vunpack.c.l.b16 %v2000
        %v2105 = vunpack.c.h.b16 %v2000
        %v2106 = vunpack.c.l.b16 %v2001
        %v2107 = vunpack.c.h.b16 %v2001
        %v2108 = vunpack.c.l.b16 %v2002
        %v2109 = vunpack.c.h.b16 %v2002
        %v2110 = vunpack.c.l.b16 %v2003
        %v2111 = vunpack.c.h.b16 %v2003
        %v2112 = vunpack.c.l.b16 %v2004
        %v2113 = vunpack.c.h.b16 %v2004
        %v2114 = vunpack.c.l.b16 %v2005
        %v2115 = vunpack.c.h.b16 %v2005
        %v2116 = vunpack.c.l.b16 %v2006
        %v2117 = vunpack.c.h.b16 %v2006
        %v2118 = vunpack.c.l.b16 %v2007
        %v2119 = vunpack.c.h.b16 %v2007
        %v2120 = vunpack.c.l.b16 %v2008
        %v2121 = vunpack.c.h.b16 %v2008
        %v2122 = vunpack.c.l.b16 %v2009
        %v2123 = vunpack.c.h.b16 %v2009
        %v2124 = vunpack.c.l.b16 %v2010
        %v2125 = vunpack.c.h.b16 %v2010
        %v2126 = vunpack.c.l.b16 %v2011
        %v2127 = vunpack.c.h.b16 %v2011
        %v2128 = vunpack.c.l.b16 %v2012
        %v2129 = vunpack.c.h.b16 %v2012
        %v2130 = vunpack.c.l.b16 %v2013
        %v2131 = vunpack.c.h.b16 %v2013
        %v2132 = vunpack.c.l.b16 %v2014
        %v2133 = vunpack.c.h.b16 %v2014
        %v2134 = vunpack.c.l.b16 %v2015
        %v2135 = vunpack.c.h.b16 %v2015
        %v2136 = vunpack.c.l.b16 %v2016
        %v2137 = vunpack.c.h.b16 %v2016
        %v2138 = vunpack.c.l.b16 %v2017
        %v2139 = vunpack.c.h.b16 %v2017
        %v2140 = vunpack.c.l.b16 %v2018
        %v2141 = vunpack.c.h.b16 %v2018
        %v2142 = vunpack.c.l.b16 %v2019
        %v2143 = vunpack.c.h.b16 %v2019
        %v2144 = vunpack.c.l.b16 %v2020
        %v2145 = vunpack.c.h.b16 %v2020
        %v2146 = vunpack.c.l.b16 %v2021
        %v2147 = vunpack.c.h.b16 %v2021
        %v2148 = vunpack.c.l.b16 %v2022
        %v2149 = vunpack.c.h.b16 %v2022
        %v2150 = vunpack.c.l.b16 %v2023
        %v2151 = vunpack.c.h.b16 %v2023
        %v2152 = vunpack.c.l.b16 %v2024
        %v2153 = vunpack.c.h.b16 %v2024
        %v2154 = vunpack.c.l.b16 %v2025
        %v2155 = vunpack.c.h.b16 %v2025
        %v2156 = vunpack.c.l.b16 %v2026
        %v2157 = vunpack.c.h.b16 %v2026
        %v2158 = vunpack.c.l.b16 %v2027
        %v2159 = vunpack.c.h.b16 %v2027
        %v2160 = vunpack.c.l.b16 %v2028
        %v2161 = vunpack.c.h.b16 %v2028
        %v2162 = vunpack.c.l.b16 %v2029
        %v2163 = vunpack.c.h.b16 %v2029
        %v2164 = vunpack.c.l.b16 %v2030
        %v2165 = vunpack.c.h.b16 %v2030
        %v2166 = vunpack.c.l.b16 %v2031
        %v2167 = vunpack.c.h.b16 %v2031
        %v2168 = vunpack.c.l.b16 %v2032
        %v2169 = vunpack.c.h.b16 %v2032
        %v2170 = vunpack.c.l.b16 %v2033
        %v2171 = vunpack.c.h.b16 %v2033
        %v2172 = vunpack.c.l.b16 %v2034
        %v2173 = vunpack.c.h.b16 %v2034
        %v2174 = vunpack.c.l.b16 %v2035
        %v2175 = vunpack.c.h.b16 %v2035
        %v2176 = vunpack.c.l.b16 %v2036
        %v2177 = vunpack.c.h.b16 %v2036
        %v2178 = vunpack.c.l.b16 %v2037
        %v2179 = vunpack.c.h.b16 %v2037
        %v2180 = vunpack.c.l.b16 %v2038
        %v2181 = vunpack.c.h.b16 %v2038
        %v2182 = vunpack.c.l.b16 %v2039
        %v2183 = vunpack.c.h.b16 %v2039
        %v2184 = vunpack.c.l.b16 %v2040
        %v2185 = vunpack.c.h.b16 %v2040
        %v2186 = vpack.c.b16 %v2096, %v2090
        %v2187 = vpack.c.b16 %v2097, %v2091
        %v2188 = vpack.c.b16 %v2098, %v2092
        %v2189 = vpack.c.b16 %v2099, %v2093
        %v2190 = vpack.c.b16 %v2100, %v2094
        %v2191 = vpack.c.b16 %v2101, %v2095
        %v2192 = vpack.c.b16 %v2108, %v2102
        %v2193 = vpack.c.b16 %v2109, %v2103
        %v2194 = vpack.c.b16 %v2110, %v2104
        %v2195 = vpack.c.b16 %v2111, %v2105
        %v2196 = vpack.c.b16 %v2112, %v2106
        %v2197 = vpack.c.b16 %v2113, %v2107
        %v2198 = vpack.c.b16 %v2120, %v2114
        %v2199 = vpack.c.b16 %v2121, %v2115
        %v2200 = vpack.c.b16 %v2122, %v2116
        %v2201 = vpack.c.b16 %v2123, %v2117
        %v2202 = vpack.c.b16 %v2124, %v2118
        %v2203 = vpack.c.b16 %v2125, %v2119
        %v2204 = vpack.c.b16 %v2132, %v2126
        %v2205 = vpack.c.b16 %v2133, %v2127
        %v2206 = vpack.c.b16 %v2134, %v2128
        %v2207 = vpack.c.b16 %v2135, %v2129
        %v2208 = vpack.c.b16 %v2136, %v2130
        %v2209 = vpack.c.b16 %v2137, %v2131
        %v2210 = vpack.c.b16 %v2144, %v2138
        %v2211 = vpack.c.b16 %v2145, %v2139
        %v2212 = vpack.c.b16 %v2146, %v2140
        %v2213 = vpack.c.b16 %v2147, %v2141
        %v2214 = vpack.c.b16 %v2148, %v2142
        %v2215 = vpack.c.b16 %v2149, %v2143
        %v2216 = vpack.c.b16 %v2156, %v2150
        %v2217 = vpack.c.b16 %v2157, %v2151
        %v2218 = vpack.c.b16 %v2158, %v2152
        %v2219 = vpack.c.b16 %v2159, %v2153
        %v2220 = vpack.c.b16 %v2160, %v2154
        %v2221 = vpack.c.b16 %v2161, %v2155
        %v2222 = vpack.c.b16 %v2168, %v2162
        %v2223 = vpack.c.b16 %v2169, %v2163
        %v2224 = vpack.c.b16 %v2170, %v2164
        %v2225 = vpack.c.b16 %v2171, %v2165
        %v2226 = vpack.c.b16 %v2172, %v2166
        %v2227 = vpack.c.b16 %v2173, %v2167
        %v2228 = vpack.c.b16 %v2180, %v2174
        %v2229 = vpack.c.b16 %v2181, %v2175
        %v2230 = vpack.c.b16 %v2182, %v2176
        %v2231 = vpack.c.b16 %v2183, %v2177
        %v2232 = vpack.c.b16 %v2184, %v2178
        %v2233 = vpack.c.b16 %v2185, %v2179
        %v2283 = vlaneseq
        %v2284 = vshrl.u32 %v2283, 7
        %v2285 = vsub.s32 0, %v2284
        %v2286 = vrot.slane %v2041, %v2285
        %v2287 = vlaneseq
        %v2288 = vshrl.u32 %v2287, 7
        %v2289 = vsub.s32 1, %v2288
        %v2290 = vrot.slane %v2041, %v2289
        %v2291 = vlaneseq
        %v2292 = vshrl.u32 %v2291, 7
        %v2293 = vsub.s32 2, %v2292
        %v2294 = vrot.slane %v2041, %v2293
        %v2295 = vlaneseq
        %v2296 = vshrl.u32 %v2295, 7
        %v2297 = vsub.s32 3, %v2296
        %v2298 = vrot.slane %v2041, %v2297
        %v2299 = vlaneseq
        %v2300 = vshrl.u32 %v2299, 7
        %v2301 = vsub.s32 4, %v2300
        %v2302 = vrot.slane %v2041, %v2301
        %v2303 = vlaneseq
        %v2304 = vshrl.u32 %v2303, 7
        %v2305 = vsub.s32 5, %v2304
        %v2306 = vrot.slane %v2041, %v2305
        %2313 = vmatprep.subr.bf16.mxu0 %v2187
        %2314 = vmatpush1.bf16.msra.mxu0 %v2186
        %2315 = vmatprep.subr.bf16.mxu0 %v2193
        %2316 = vmatpush1.bf16.msra.mxu0 %v2192
        %2317 = vmatprep.subr.bf16.mxu0 %v2199
        %2318 = vmatpush1.bf16.msra.mxu0 %v2198
        %2319 = vmatprep.subr.bf16.mxu0 %v2205
        %2320 = vmatpush1.bf16.msra.mxu0 %v2204
        %2321 = vmatprep.subr.bf16.mxu0 %v2211
        %2322 = vmatpush1.bf16.msra.mxu0 %v2210
        %2323 = vmatprep.subr.bf16.mxu0 %v2217
        %2324 = vmatpush1.bf16.msra.mxu0 %v2216
        %2325 = vmatprep.subr.bf16.mxu0 %v2223
        %2326 = vmatpush1.bf16.msra.mxu0 %v2222
        %2327 = vmatprep.subr.bf16.mxu0 %v2229
        %2328 = vmatpush1.bf16.msra.mxu0 %v2228
        %2329 = vmatprep.subr.bf16.mxu0 0
        %2330 = vmatpush1.bf16.msra.mxu0 0
        %2331 = vmatprep.subr.bf16.mxu0 0
        %2332 = vmatpush1.bf16.msra.mxu0 0
        %2333 = vmatprep.subr.bf16.mxu0 0
        %2334 = vmatpush1.bf16.msra.mxu0 0
        %2335 = vmatprep.subr.bf16.mxu0 0
        %2336 = vmatpush1.bf16.msra.mxu0 0
        %2337 = vmatprep.subr.bf16.mxu0 0
        %2338 = vmatpush1.bf16.msra.mxu0 0
        %2339 = vmatprep.subr.bf16.mxu0 0
        %2340 = vmatpush1.bf16.msra.mxu0 0
        %2341 = vmatprep.subr.bf16.mxu0 0
        %2342 = vmatpush1.bf16.msra.mxu0 0
        %2343 = vmatprep.subr.bf16.mxu0 0
        %2344 = vmatpush1.bf16.msra.mxu0 0
        %2345 = vmatprep.mubr.bf16.mxu0 0
        %2346 = vmatmul.mubr.bf16.gmra.mrb[0].mxu0 %v1992
        %v2347 = vpop.f32.mrb[0].mxu0
        %v2348 = vadd.f32 %v2286, %v2347
        %v2349 = vpop.f32.mrb[0].mxu0
        %v2350 = vadd.f32 %v2290, %v2349
        %v2351 = vpop.f32.mrb[0].mxu0
        %v2352 = vpop.f32.mrb[0].mxu0
        %2353 = vdwg.mxu0
        %2354 = vmatprep.subr.bf16.mxu0 %v2189
        %2355 = vmatpush1.bf16.msra.mxu0 %v2188
        %2356 = vmatprep.subr.bf16.mxu0 %v2195
        %2357 = vmatpush1.bf16.msra.mxu0 %v2194
        %2358 = vmatprep.subr.bf16.mxu0 %v2201
        %2359 = vmatpush1.bf16.msra.mxu0 %v2200
        %2360 = vmatprep.subr.bf16.mxu0 %v2207
        %2361 = vmatpush1.bf16.msra.mxu0 %v2206
        %2362 = vmatprep.subr.bf16.mxu0 %v2213
        %2363 = vmatpush1.bf16.msra.mxu0 %v2212
        %2364 = vmatprep.subr.bf16.mxu0 %v2219
        %2365 = vmatpush1.bf16.msra.mxu0 %v2218
        %2366 = vmatprep.subr.bf16.mxu0 %v2225
        %2367 = vmatpush1.bf16.msra.mxu0 %v2224
        %2368 = vmatprep.subr.bf16.mxu0 %v2231
        %2369 = vmatpush1.bf16.msra.mxu0 %v2230
        %2370 = vmatprep.subr.bf16.mxu0 0
        %2371 = vmatpush1.bf16.msra.mxu0 0
        %2372 = vmatprep.subr.bf16.mxu0 0
        %2373 = vmatpush1.bf16.msra.mxu0 0
        %2374 = vmatprep.subr.bf16.mxu0 0
        %2375 = vmatpush1.bf16.msra.mxu0 0
        %2376 = vmatprep.subr.bf16.mxu0 0
        %2377 = vmatpush1.bf16.msra.mxu0 0
        %2378 = vmatprep.subr.bf16.mxu0 0
        %2379 = vmatpush1.bf16.msra.mxu0 0
        %2380 = vmatprep.subr.bf16.mxu0 0
        %2381 = vmatpush1.bf16.msra.mxu0 0
        %2382 = vmatprep.subr.bf16.mxu0 0
        %2383 = vmatpush1.bf16.msra.mxu0 0
        %2384 = vmatprep.subr.bf16.mxu0 0
        %2385 = vmatpush1.bf16.msra.mxu0 0
        %2386 = vmatprep.mubr.bf16.mxu0 0
        %2387 = vmatmul.mubr.bf16.gmra.mrb[0].mxu0 %v1992
        %v2388 = vpop.f32.mrb[0].mxu0
        %v2389 = vadd.f32 %v2294, %v2388
        %v2390 = vpop.f32.mrb[0].mxu0
        %v2391 = vadd.f32 %v2298, %v2390
        %v2392 = vpop.f32.mrb[0].mxu0
        %v2393 = vpop.f32.mrb[0].mxu0
        %2394 = vdwg.mxu0
        %2395 = vmatprep.subr.bf16.mxu0 %v2191
        %2396 = vmatpush1.bf16.msra.mxu0 %v2190
        %2397 = vmatprep.subr.bf16.mxu0 %v2197
        %2398 = vmatpush1.bf16.msra.mxu0 %v2196
        %2399 = vmatprep.subr.bf16.mxu0 %v2203
        %2400 = vmatpush1.bf16.msra.mxu0 %v2202
        %2401 = vmatprep.subr.bf16.mxu0 %v2209
        %2402 = vmatpush1.bf16.msra.mxu0 %v2208
        %2403 = vmatprep.subr.bf16.mxu0 %v2215
        %2404 = vmatpush1.bf16.msra.mxu0 %v2214
        %2405 = vmatprep.subr.bf16.mxu0 %v2221
        %2406 = vmatpush1.bf16.msra.mxu0 %v2220
        %2407 = vmatprep.subr.bf16.mxu0 %v2227
        %2408 = vmatpush1.bf16.msra.mxu0 %v2226
        %2409 = vmatprep.subr.bf16.mxu0 %v2233
        %2410 = vmatpush1.bf16.msra.mxu0 %v2232
        %2411 = vmatprep.subr.bf16.mxu0 0
        %2412 = vmatpush1.bf16.msra.mxu0 0
        %2413 = vmatprep.subr.bf16.mxu0 0
        %2414 = vmatpush1.bf16.msra.mxu0 0
        %2415 = vmatprep.subr.bf16.mxu0 0
        %2416 = vmatpush1.bf16.msra.mxu0 0
        %2417 = vmatprep.subr.bf16.mxu0 0
        %2418 = vmatpush1.bf16.msra.mxu0 0
        %2419 = vmatprep.subr.bf16.mxu0 0
        %2420 = vmatpush1.bf16.msra.mxu0 0
        %2421 = vmatprep.subr.bf16.mxu0 0
        %2422 = vmatpush1.bf16.msra.mxu0 0
        %2423 = vmatprep.subr.bf16.mxu0 0
        %2424 = vmatpush1.bf16.msra.mxu0 0
        %2425 = vmatprep.subr.bf16.mxu0 0
        %2426 = vmatpush1.bf16.msra.mxu0 0
        %2427 = vmatprep.mubr.bf16.mxu0 0
        %2428 = vmatmul.mubr.bf16.gmra.mrb[0].mxu0 %v1992
        %v2429 = vpop.f32.mrb[0].mxu0
        %v2430 = vadd.f32 %v2302, %v2429
        %v2431 = vpop.f32.mrb[0].mxu0
        %v2432 = vadd.f32 %v2306, %v2431
        %v2433 = vpop.f32.mrb[0].mxu0
        %v2434 = vpop.f32.mrb[0].mxu0
        %2435 = vdwg.mxu0
        %v2436 = vlaneseq
        %v2437 = vshrl.u32 %v2436, 7
        %v2438 = vsub.s32 0, %v2437
        %v2439 = vrot.slane %v2348, %v2438
        %v2440 = vlaneseq
        %v2441 = vshrl.u32 %v2440, 7
        %v2442 = vsub.s32 0, %v2441
        %v2443 = vrot.slane %v2350, %v2442
        %v2444 = vlaneseq
        %v2445 = vshrl.u32 %v2444, 7
        %v2446 = vsub.s32 0, %v2445
        %v2447 = vrot.slane %v2389, %v2446
        %v2448 = vlaneseq
        %v2449 = vshrl.u32 %v2448, 7
        %v2450 = vsub.s32 0, %v2449
        %v2451 = vrot.slane %v2391, %v2450
        %v2452 = vlaneseq
        %v2453 = vshrl.u32 %v2452, 7
        %v2454 = vsub.s32 0, %v2453
        %v2455 = vrot.slane %v2430, %v2454
        %v2456 = vlaneseq
        %v2457 = vshrl.u32 %v2456, 7
        %v2458 = vsub.s32 0, %v2457
        %v2459 = vrot.slane %v2432, %v2458
        %v2508 = vunpack.c.l.b16 %v995
        %v2509 = vunpack.c.h.b16 %v995
        %v2510 = vunpack.c.l.b16 %v996
        %v2511 = vunpack.c.h.b16 %v996
        %v2512 = vunpack.c.l.b16 %v997
        %v2513 = vunpack.c.h.b16 %v997
        %v2514 = vunpack.c.l.b16 %v998
        %v2515 = vunpack.c.h.b16 %v998
        %v2516 = vunpack.c.l.b16 %v999
        %v2517 = vunpack.c.h.b16 %v999
        %v2518 = vunpack.c.l.b16 %v1000
        %v2519 = vunpack.c.h.b16 %v1000
        %v2520 = vunpack.c.l.b16 %v1001
        %v2521 = vunpack.c.h.b16 %v1001
        %v2522 = vunpack.c.l.b16 %v1002
        %v2523 = vunpack.c.h.b16 %v1002
        %v2524 = vunpack.c.l.b16 %v1003
        %v2525 = vunpack.c.h.b16 %v1003
        %v2526 = vunpack.c.l.b16 %v1004
        %v2527 = vunpack.c.h.b16 %v1004
        %v2528 = vunpack.c.l.b16 %v1005
        %v2529 = vunpack.c.h.b16 %v1005
        %v2530 = vunpack.c.l.b16 %v1006
        %v2531 = vunpack.c.h.b16 %v1006
        %v2532 = vunpack.c.l.b16 %v1007
        %v2533 = vunpack.c.h.b16 %v1007
        %v2534 = vunpack.c.l.b16 %v1008
        %v2535 = vunpack.c.h.b16 %v1008
        %v2536 = vunpack.c.l.b16 %v1009
        %v2537 = vunpack.c.h.b16 %v1009
        %v2538 = vunpack.c.l.b16 %v1010
        %v2539 = vunpack.c.h.b16 %v1010
        %v2540 = vunpack.c.l.b16 %v1011
        %v2541 = vunpack.c.h.b16 %v1011
        %v2542 = vunpack.c.l.b16 %v1012
        %v2543 = vunpack.c.h.b16 %v1012
        %v2544 = vunpack.c.l.b16 %v1013
        %v2545 = vunpack.c.h.b16 %v1013
        %v2546 = vunpack.c.l.b16 %v1014
        %v2547 = vunpack.c.h.b16 %v1014
        %v2548 = vunpack.c.l.b16 %v1015
        %v2549 = vunpack.c.h.b16 %v1015
        %v2550 = vunpack.c.l.b16 %v1016
        %v2551 = vunpack.c.h.b16 %v1016
        %v2552 = vunpack.c.l.b16 %v1017
        %v2553 = vunpack.c.h.b16 %v1017
        %v2554 = vunpack.c.l.b16 %v1018
        %v2555 = vunpack.c.h.b16 %v1018
        %v2556 = vunpack.c.l.b16 %v1019
        %v2557 = vunpack.c.h.b16 %v1019
        %v2558 = vunpack.c.l.b16 %v1020
        %v2559 = vunpack.c.h.b16 %v1020
        %v2560 = vunpack.c.l.b16 %v1021
        %v2561 = vunpack.c.h.b16 %v1021
        %v2562 = vunpack.c.l.b16 %v1022
        %v2563 = vunpack.c.h.b16 %v1022
        %v2564 = vunpack.c.l.b16 %v1023
        %v2565 = vunpack.c.h.b16 %v1023
        %v2566 = vunpack.c.l.b16 %v1024
        %v2567 = vunpack.c.h.b16 %v1024
        %v2568 = vunpack.c.l.b16 %v1025
        %v2569 = vunpack.c.h.b16 %v1025
        %v2570 = vunpack.c.l.b16 %v1026
        %v2571 = vunpack.c.h.b16 %v1026
        %v2572 = vunpack.c.l.b16 %v1027
        %v2573 = vunpack.c.h.b16 %v1027
        %v2574 = vunpack.c.l.b16 %v1028
        %v2575 = vunpack.c.h.b16 %v1028
        %v2576 = vunpack.c.l.b16 %v1029
        %v2577 = vunpack.c.h.b16 %v1029
        %v2578 = vunpack.c.l.b16 %v1030
        %v2579 = vunpack.c.h.b16 %v1030
        %v2580 = vunpack.c.l.b16 %v1031
        %v2581 = vunpack.c.h.b16 %v1031
        %v2582 = vunpack.c.l.b16 %v1032
        %v2583 = vunpack.c.h.b16 %v1032
        %v2584 = vunpack.c.l.b16 %v1033
        %v2585 = vunpack.c.h.b16 %v1033
        %v2586 = vunpack.c.l.b16 %v1034
        %v2587 = vunpack.c.h.b16 %v1034
        %v2588 = vunpack.c.l.b16 %v1035
        %v2589 = vunpack.c.h.b16 %v1035
        %v2590 = vunpack.c.l.b16 %v1036
        %v2591 = vunpack.c.h.b16 %v1036
        %v2592 = vunpack.c.l.b16 %v1037
        %v2593 = vunpack.c.h.b16 %v1037
        %v2594 = vunpack.c.l.b16 %v1038
        %v2595 = vunpack.c.h.b16 %v1038
        %v2596 = vunpack.c.l.b16 %v1039
        %v2597 = vunpack.c.h.b16 %v1039
        %v2598 = vunpack.c.l.b16 %v1040
        %v2599 = vunpack.c.h.b16 %v1040
        %v2600 = vunpack.c.l.b16 %v1041
        %v2601 = vunpack.c.h.b16 %v1041
        %v2602 = vunpack.c.l.b16 %v1042
        %v2603 = vunpack.c.h.b16 %v1042
        %v2604 = vpack.c.b16 %v2514, %v2508
        %v2605 = vpack.c.b16 %v2515, %v2509
        %v2606 = vpack.c.b16 %v2516, %v2510
        %v2607 = vpack.c.b16 %v2517, %v2511
        %v2608 = vpack.c.b16 %v2518, %v2512
        %v2609 = vpack.c.b16 %v2519, %v2513
        %v2610 = vpack.c.b16 %v2526, %v2520
        %v2611 = vpack.c.b16 %v2527, %v2521
        %v2612 = vpack.c.b16 %v2528, %v2522
        %v2613 = vpack.c.b16 %v2529, %v2523
        %v2614 = vpack.c.b16 %v2530, %v2524
        %v2615 = vpack.c.b16 %v2531, %v2525
        %v2616 = vpack.c.b16 %v2538, %v2532
        %v2617 = vpack.c.b16 %v2539, %v2533
        %v2618 = vpack.c.b16 %v2540, %v2534
        %v2619 = vpack.c.b16 %v2541, %v2535
        %v2620 = vpack.c.b16 %v2542, %v2536
        %v2621 = vpack.c.b16 %v2543, %v2537
        %v2622 = vpack.c.b16 %v2550, %v2544
        %v2623 = vpack.c.b16 %v2551, %v2545
        %v2624 = vpack.c.b16 %v2552, %v2546
        %v2625 = vpack.c.b16 %v2553, %v2547
        %v2626 = vpack.c.b16 %v2554, %v2548
        %v2627 = vpack.c.b16 %v2555, %v2549
        %v2628 = vpack.c.b16 %v2562, %v2556
        %v2629 = vpack.c.b16 %v2563, %v2557
        %v2630 = vpack.c.b16 %v2564, %v2558
        %v2631 = vpack.c.b16 %v2565, %v2559
        %v2632 = vpack.c.b16 %v2566, %v2560
        %v2633 = vpack.c.b16 %v2567, %v2561
        %v2634 = vpack.c.b16 %v2574, %v2568
        %v2635 = vpack.c.b16 %v2575, %v2569
        %v2636 = vpack.c.b16 %v2576, %v2570
        %v2637 = vpack.c.b16 %v2577, %v2571
        %v2638 = vpack.c.b16 %v2578, %v2572
        %v2639 = vpack.c.b16 %v2579, %v2573
        %v2640 = vpack.c.b16 %v2586, %v2580
        %v2641 = vpack.c.b16 %v2587, %v2581
        %v2642 = vpack.c.b16 %v2588, %v2582
        %v2643 = vpack.c.b16 %v2589, %v2583
        %v2644 = vpack.c.b16 %v2590, %v2584
        %v2645 = vpack.c.b16 %v2591, %v2585
        %v2646 = vpack.c.b16 %v2598, %v2592
        %v2647 = vpack.c.b16 %v2599, %v2593
        %v2648 = vpack.c.b16 %v2600, %v2594
        %v2649 = vpack.c.b16 %v2601, %v2595
        %v2650 = vpack.c.b16 %v2602, %v2596
        %v2651 = vpack.c.b16 %v2603, %v2597
        %2700 = vmatprep.subr.bf16.mxu0 %v2605
        %2701 = vmatpush1.bf16.msra.mxu0 %v2604
        %2702 = vmatprep.subr.bf16.mxu0 %v2611
        %2703 = vmatpush1.bf16.msra.mxu0 %v2610
        %2704 = vmatprep.subr.bf16.mxu0 %v2617
        %2705 = vmatpush1.bf16.msra.mxu0 %v2616
        %2706 = vmatprep.subr.bf16.mxu0 %v2623
        %2707 = vmatpush1.bf16.msra.mxu0 %v2622
        %2708 = vmatprep.subr.bf16.mxu0 %v2629
        %2709 = vmatpush1.bf16.msra.mxu0 %v2628
        %2710 = vmatprep.subr.bf16.mxu0 %v2635
        %2711 = vmatpush1.bf16.msra.mxu0 %v2634
        %2712 = vmatprep.subr.bf16.mxu0 %v2641
        %2713 = vmatpush1.bf16.msra.mxu0 %v2640
        %2714 = vmatprep.subr.bf16.mxu0 %v2647
        %2715 = vmatpush1.bf16.msra.mxu0 %v2646
        %2716 = vmatprep.subr.bf16.mxu0 0
        %2717 = vmatpush1.bf16.msra.mxu0 0
        %2718 = vmatprep.subr.bf16.mxu0 0
        %2719 = vmatpush1.bf16.msra.mxu0 0
        %2720 = vmatprep.subr.bf16.mxu0 0
        %2721 = vmatpush1.bf16.msra.mxu0 0
        %2722 = vmatprep.subr.bf16.mxu0 0
        %2723 = vmatpush1.bf16.msra.mxu0 0
        %2724 = vmatprep.subr.bf16.mxu0 0
        %2725 = vmatpush1.bf16.msra.mxu0 0
        %2726 = vmatprep.subr.bf16.mxu0 0
        %2727 = vmatpush1.bf16.msra.mxu0 0
        %2728 = vmatprep.subr.bf16.mxu0 0
        %2729 = vmatpush1.bf16.msra.mxu0 0
        %2730 = vmatprep.subr.bf16.mxu0 0
        %2731 = vmatpush1.bf16.msra.mxu0 0
        %2732 = vmatprep.mubr.bf16.mxu0 0
        %2733 = vmatmul.mubr.bf16.gmra.mrb[0].mxu0 %v736
        %v2734 = vpop.f32.mrb[0].mxu0
        %v2735 = vadd.f32 %v2439, %v2734
        %v2736 = vpop.f32.mrb[0].mxu0
        %v2737 = vadd.f32 %v2443, %v2736
        %v2738 = vpop.f32.mrb[0].mxu0
        %v2739 = vpop.f32.mrb[0].mxu0
        %2740 = vdwg.mxu0
        %2741 = vmatprep.subr.bf16.mxu0 %v2607
        %2742 = vmatpush1.bf16.msra.mxu0 %v2606
        %2743 = vmatprep.subr.bf16.mxu0 %v2613
        %2744 = vmatpush1.bf16.msra.mxu0 %v2612
        %2745 = vmatprep.subr.bf16.mxu0 %v2619
        %2746 = vmatpush1.bf16.msra.mxu0 %v2618
        %2747 = vmatprep.subr.bf16.mxu0 %v2625
        %2748 = vmatpush1.bf16.msra.mxu0 %v2624
        %2749 = vmatprep.subr.bf16.mxu0 %v2631
        %2750 = vmatpush1.bf16.msra.mxu0 %v2630
        %2751 = vmatprep.subr.bf16.mxu0 %v2637
        %2752 = vmatpush1.bf16.msra.mxu0 %v2636
        %2753 = vmatprep.subr.bf16.mxu0 %v2643
        %2754 = vmatpush1.bf16.msra.mxu0 %v2642
        %2755 = vmatprep.subr.bf16.mxu0 %v2649
        %2756 = vmatpush1.bf16.msra.mxu0 %v2648
        %2757 = vmatprep.subr.bf16.mxu0 0
        %2758 = vmatpush1.bf16.msra.mxu0 0
        %2759 = vmatprep.subr.bf16.mxu0 0
        %2760 = vmatpush1.bf16.msra.mxu0 0
        %2761 = vmatprep.subr.bf16.mxu0 0
        %2762 = vmatpush1.bf16.msra.mxu0 0
        %2763 = vmatprep.subr.bf16.mxu0 0
        %2764 = vmatpush1.bf16.msra.mxu0 0
        %2765 = vmatprep.subr.bf16.mxu0 0
        %2766 = vmatpush1.bf16.msra.mxu0 0
        %2767 = vmatprep.subr.bf16.mxu0 0
        %2768 = vmatpush1.bf16.msra.mxu0 0
        %2769 = vmatprep.subr.bf16.mxu0 0
        %2770 = vmatpush1.bf16.msra.mxu0 0
        %2771 = vmatprep.subr.bf16.mxu0 0
        %2772 = vmatpush1.bf16.msra.mxu0 0
        %2773 = vmatprep.mubr.bf16.mxu0 0
        %2774 = vmatmul.mubr.bf16.gmra.mrb[0].mxu0 %v736
        %v2775 = vpop.f32.mrb[0].mxu0
        %v2776 = vadd.f32 %v2447, %v2775
        %v2777 = vpop.f32.mrb[0].mxu0
        %v2778 = vadd.f32 %v2451, %v2777
        %v2779 = vpop.f32.mrb[0].mxu0
        %v2780 = vpop.f32.mrb[0].mxu0
        %2781 = vdwg.mxu0
        %2782 = vmatprep.subr.bf16.mxu0 %v2609
        %2783 = vmatpush1.bf16.msra.mxu0 %v2608
        %2784 = vmatprep.subr.bf16.mxu0 %v2615
        %2785 = vmatpush1.bf16.msra.mxu0 %v2614
        %2786 = vmatprep.subr.bf16.mxu0 %v2621
        %2787 = vmatpush1.bf16.msra.mxu0 %v2620
        %2788 = vmatprep.subr.bf16.mxu0 %v2627
        %2789 = vmatpush1.bf16.msra.mxu0 %v2626
        %2790 = vmatprep.subr.bf16.mxu0 %v2633
        %2791 = vmatpush1.bf16.msra.mxu0 %v2632
        %2792 = vmatprep.subr.bf16.mxu0 %v2639
        %2793 = vmatpush1.bf16.msra.mxu0 %v2638
        %2794 = vmatprep.subr.bf16.mxu0 %v2645
        %2795 = vmatpush1.bf16.msra.mxu0 %v2644
        %2796 = vmatprep.subr.bf16.mxu0 %v2651
        %2797 = vmatpush1.bf16.msra.mxu0 %v2650
        %2798 = vmatprep.subr.bf16.mxu0 0
        %2799 = vmatpush1.bf16.msra.mxu0 0
        %2800 = vmatprep.subr.bf16.mxu0 0
        %2801 = vmatpush1.bf16.msra.mxu0 0
        %2802 = vmatprep.subr.bf16.mxu0 0
        %2803 = vmatpush1.bf16.msra.mxu0 0
        %2804 = vmatprep.subr.bf16.mxu0 0
        %2805 = vmatpush1.bf16.msra.mxu0 0
        %2806 = vmatprep.subr.bf16.mxu0 0
        %2807 = vmatpush1.bf16.msra.mxu0 0
        %2808 = vmatprep.subr.bf16.mxu0 0
        %2809 = vmatpush1.bf16.msra.mxu0 0
        %2810 = vmatprep.subr.bf16.mxu0 0
        %2811 = vmatpush1.bf16.msra.mxu0 0
        %2812 = vmatprep.subr.bf16.mxu0 0
        %2813 = vmatpush1.bf16.msra.mxu0 0
        %2814 = vmatprep.mubr.bf16.mxu0 0
        %2815 = vmatmul.mubr.bf16.gmra.mrb[0].mxu0 %v736
        %v2816 = vpop.f32.mrb[0].mxu0
        %v2817 = vadd.f32 %v2455, %v2816
        %v2818 = vpop.f32.mrb[0].mxu0
        %v2819 = vadd.f32 %v2459, %v2818
        %v2820 = vpop.f32.mrb[0].mxu0
        %v2821 = vpop.f32.mrb[0].mxu0
        %2822 = vdwg.mxu0
        %v2824 = vlaneseq
        %v2825 = vshrl.u32 %v2824, 7
        %v2826 = vsub.s32 0, %v2825
        %v2827 = vrot.slane %v1092, %v2826
        %v2828 = vlaneseq
        %v2829 = vshrl.u32 %v2828, 7
        %v2830 = vsub.s32 1, %v2829
        %v2831 = vrot.slane %v1092, %v2830
        %vm2834 = vcmask 523264
        %v2836 = vsel %vm2834, %v2735, 0
        %v2839 = vsel %vm2834, %v2776, 0
        %2841 = vmatprep.subr.mxu0 0.0
        %2842 = vmatpush1.xpose.msra.mxu0 %v2839
        %2843 = vmatprep.subr.mxu0 0.0
        %2844 = vmatpush1.xpose.msra.mxu0 0.0
        %2845 = vmatprep.subr.mxu0 0.0
        %2846 = vmatpush1.xpose.msra.mxu0 0.0
        %2847 = vmatprep.subr.mxu0 0.0
        %2848 = vmatpush1.xpose.msra.mxu0 0.0
        %2849 = vmatprep.subr.mxu0 0.0
        %2850 = vmatpush1.xpose.msra.mxu0 0.0
        %2851 = vmatprep.subr.mxu0 0.0
        %2852 = vmatpush1.xpose.msra.mxu0 0.0
        %2853 = vmatprep.subr.mxu0 0.0
        %2854 = vmatpush1.xpose.msra.mxu0 0.0
        %2855 = vmatprep.subr.mxu0 0.0
        %2856 = vmatpush1.xpose.msra.mxu0 0.0
        %2857 = vmatprep.subr.mxu0 0.0
        %2858 = vmatpush1.xpose.msra.mxu0 0.0
        %2859 = vmatprep.subr.mxu0 0.0
        %2860 = vmatpush1.xpose.msra.mxu0 0.0
        %2861 = vmatprep.subr.mxu0 0.0
        %2862 = vmatpush1.xpose.msra.mxu0 0.0
        %2863 = vmatprep.subr.mxu0 0.0
        %2864 = vmatpush1.xpose.msra.mxu0 0.0
        %2865 = vmatprep.subr.mxu0 0.0
        %2866 = vmatpush1.xpose.msra.mxu0 0.0
        %2867 = vmatprep.subr.mxu0 0.0
        %2868 = vmatpush1.xpose.msra.mxu0 0.0
        %2869 = vmatprep.subr.mxu0 0.0
        %2870 = vmatpush1.xpose.msra.mxu0 0.0
        %2871 = vmatprep.subr.mxu0 0.0
        %2872 = vmatpush1.xpose.msra.mxu0 0.0
        %2873 = vmatprep.subr.mxu0 0.0
        %2874 = vmatpush1.xpose.msra.mxu0 0.0
        %2875 = vmatprep.subr.mxu0 0.0
        %2876 = vmatpush1.xpose.msra.mxu0 0.0
        %2877 = vmatprep.subr.mxu0 0.0
        %2878 = vmatpush1.xpose.msra.mxu0 0.0
        %2879 = vmatprep.subr.mxu0 0.0
        %2880 = vmatpush1.xpose.msra.mxu0 0.0
        %2881 = vmatprep.subr.mxu0 0.0
        %2882 = vmatpush1.xpose.msra.mxu0 0.0
        %2883 = vmatprep.subr.mxu0 0.0
        %2884 = vmatpush1.xpose.msra.mxu0 0.0
        %2885 = vmatprep.subr.mxu0 0.0
        %2886 = vmatpush1.xpose.msra.mxu0 0.0
        %2887 = vmatprep.subr.mxu0 0.0
        %2888 = vmatpush1.xpose.msra.mxu0 0.0
        %2889 = vmatprep.subr.mxu0 0.0
        %2890 = vmatpush1.xpose.msra.mxu0 0.0
        %2891 = vmatprep.subr.mxu0 0.0
        %2892 = vmatpush1.xpose.msra.mxu0 0.0
        %2893 = vmatprep.subr.mxu0 0.0
        %2894 = vmatpush1.xpose.msra.mxu0 0.0
        %2895 = vmatprep.subr.mxu0 0.0
        %2896 = vmatpush1.xpose.msra.mxu0 0.0
        %2897 = vmatprep.subr.mxu0 0.0
        %2898 = vmatpush1.xpose.msra.mxu0 0.0
        %2899 = vmatprep.subr.mxu0 0.0
        %2900 = vmatpush1.xpose.msra.mxu0 0.0
        %2901 = vmatprep.subr.mxu0 0.0
        %2902 = vmatpush1.xpose.msra.mxu0 0.0
        %2903 = vmatprep.subr.mxu0 0.0
        %2904 = vmatpush1.xpose.msra.mxu0 0.0
        %2905 = vmatprep.mubr.f32.mxu0 0.0
        %2906 = vmatmul.mubr.f32.gmra.mrb[0].mxu0 %v2836
        %v2907 = vpop.f32.mrb[0].mxu0
        %v2908 = vadd.f32 0.0, %v2907
        %v2909 = vpop.f32.mrb[0].mxu0
        %2910 = vdwg.mxu0
        %v2911 = vsel %vm1175, %v2908, -inf
        %2912 = vmax.xlane.f32.xlu0 %v2911
        %v2913 = vpop.xlane.xlu0 %2912
        %v2914 = vsub.f32 %v2908, %v2913
        %v2915 = vmul.f32 %v2914, 1.442695
        %v2916 = vpow.pop %v2915
        %v2917 = vsel %vm1175, %v2916, 0.0
        %2918 = vadd.xlane.f32.xlu0 %v2917
        %v2919 = vpop.xlane.xlu0 %2918
        %v2920 = vrcp.pop %v2919
        %v2921 = vmul.f32 %v2916, %v2920
        %v2923 = vsel %vm1175, %v2921, 0
        %2925 = vmatprep.subr.mxu0 0.0
        %2926 = vmatpush1.msra.mxu0 %v2817
        %2927 = vmatprep.subr.mxu0 0.0
        %2928 = vmatpush1.msra.mxu0 0.0
        %2929 = vmatprep.subr.mxu0 0.0
        %2930 = vmatpush1.msra.mxu0 0.0
        %2931 = vmatprep.subr.mxu0 0.0
        %2932 = vmatpush1.msra.mxu0 0.0
        %2933 = vmatprep.subr.mxu0 0.0
        %2934 = vmatpush1.msra.mxu0 0.0
        %2935 = vmatprep.subr.mxu0 0.0
        %2936 = vmatpush1.msra.mxu0 0.0
        %2937 = vmatprep.subr.mxu0 0.0
        %2938 = vmatpush1.msra.mxu0 0.0
        %2939 = vmatprep.subr.mxu0 0.0
        %2940 = vmatpush1.msra.mxu0 0.0
        %2941 = vmatprep.subr.mxu0 0.0
        %2942 = vmatpush1.msra.mxu0 0.0
        %2943 = vmatprep.subr.mxu0 0.0
        %2944 = vmatpush1.msra.mxu0 0.0
        %2945 = vmatprep.subr.mxu0 0.0
        %2946 = vmatpush1.msra.mxu0 0.0
        %2947 = vmatprep.subr.mxu0 0.0
        %2948 = vmatpush1.msra.mxu0 0.0
        %2949 = vmatprep.subr.mxu0 0.0
        %2950 = vmatpush1.msra.mxu0 0.0
        %2951 = vmatprep.subr.mxu0 0.0
        %2952 = vmatpush1.msra.mxu0 0.0
        %2953 = vmatprep.subr.mxu0 0.0
        %2954 = vmatpush1.msra.mxu0 0.0
        %2955 = vmatprep.subr.mxu0 0.0
        %2956 = vmatpush1.msra.mxu0 0.0
        %2957 = vmatprep.subr.mxu0 0.0
        %2958 = vmatpush1.msra.mxu0 0.0
        %2959 = vmatprep.subr.mxu0 0.0
        %2960 = vmatpush1.msra.mxu0 0.0
        %2961 = vmatprep.subr.mxu0 0.0
        %2962 = vmatpush1.msra.mxu0 0.0
        %2963 = vmatprep.subr.mxu0 0.0
        %2964 = vmatpush1.msra.mxu0 0.0
        %2965 = vmatprep.subr.mxu0 0.0
        %2966 = vmatpush1.msra.mxu0 0.0
        %2967 = vmatprep.subr.mxu0 0.0
        %2968 = vmatpush1.msra.mxu0 0.0
        %2969 = vmatprep.subr.mxu0 0.0
        %2970 = vmatpush1.msra.mxu0 0.0
        %2971 = vmatprep.subr.mxu0 0.0
        %2972 = vmatpush1.msra.mxu0 0.0
        %2973 = vmatprep.subr.mxu0 0.0
        %2974 = vmatpush1.msra.mxu0 0.0
        %2975 = vmatprep.subr.mxu0 0.0
        %2976 = vmatpush1.msra.mxu0 0.0
        %2977 = vmatprep.subr.mxu0 0.0
        %2978 = vmatpush1.msra.mxu0 0.0
        %2979 = vmatprep.subr.mxu0 0.0
        %2980 = vmatpush1.msra.mxu0 0.0
        %2981 = vmatprep.subr.mxu0 0.0
        %2982 = vmatpush1.msra.mxu0 0.0
        %2983 = vmatprep.subr.mxu0 0.0
        %2984 = vmatpush1.msra.mxu0 0.0
        %2985 = vmatprep.subr.mxu0 0.0
        %2986 = vmatpush1.msra.mxu0 0.0
        %2987 = vmatprep.subr.mxu0 0.0
        %2988 = vmatpush1.msra.mxu0 0.0
        %2989 = vmatprep.mubr.f32.mxu0 0.0
        %2990 = vmatmul.mubr.f32.gmra.mrb[0].mxu0 %v2923
        %v2991 = vpop.f32.mrb[0].mxu0
        %v2992 = vadd.f32 0.0, %v2991
        %v2993 = vpop.f32.mrb[0].mxu0
        %2994 = vdwg.mxu0
        %v2995 = vpack.c.bf16 %v2992, %v2992
        %v3004 = vunpack.c.l.b16 %v1060
        %v3005 = vunpack.c.h.b16 %v1060
        %v3006 = vunpack.c.l.b16 %v1061
        %v3007 = vunpack.c.h.b16 %v1061
        %v3008 = vunpack.c.l.b16 %v1062
        %v3009 = vunpack.c.h.b16 %v1062
        %v3010 = vunpack.c.l.b16 %v1063
        %v3011 = vunpack.c.h.b16 %v1063
        %v3012 = vunpack.c.l.b16 %v1064
        %v3013 = vunpack.c.h.b16 %v1064
        %v3014 = vunpack.c.l.b16 %v1065
        %v3015 = vunpack.c.h.b16 %v1065
        %v3016 = vunpack.c.l.b16 %v1066
        %v3017 = vunpack.c.h.b16 %v1066
        %v3018 = vunpack.c.l.b16 %v1067
        %v3019 = vunpack.c.h.b16 %v1067
        %v3020 = vpack.c.b16 %v3006, %v3004
        %v3021 = vpack.c.b16 %v3007, %v3005
        %v3022 = vpack.c.b16 %v3010, %v3008
        %v3023 = vpack.c.b16 %v3011, %v3009
        %v3024 = vpack.c.b16 %v3014, %v3012
        %v3025 = vpack.c.b16 %v3015, %v3013
        %v3026 = vpack.c.b16 %v3018, %v3016
        %v3027 = vpack.c.b16 %v3019, %v3017
        %v3037 = vsel %vm2834, %v2995, 0
        %3039 = vmatprep.subr.bf16.mxu0 %v3021
        %3040 = vmatpush1.bf16.msra.mxu0 %v3020
        %3041 = vmatprep.subr.bf16.mxu0 %v3023
        %3042 = vmatpush1.bf16.msra.mxu0 %v3022
        %3043 = vmatprep.subr.bf16.mxu0 %v3025
        %3044 = vmatpush1.bf16.msra.mxu0 %v3024
        %3045 = vmatprep.subr.bf16.mxu0 %v3027
        %3046 = vmatpush1.bf16.msra.mxu0 %v3026
        %3047 = vmatprep.subr.bf16.mxu0 0
        %3048 = vmatpush1.bf16.msra.mxu0 0
        %3049 = vmatprep.subr.bf16.mxu0 0
        %3050 = vmatpush1.bf16.msra.mxu0 0
        %3051 = vmatprep.subr.bf16.mxu0 0
        %3052 = vmatpush1.bf16.msra.mxu0 0
        %3053 = vmatprep.subr.bf16.mxu0 0
        %3054 = vmatpush1.bf16.msra.mxu0 0
        %3055 = vmatprep.subr.bf16.mxu0 0
        %3056 = vmatpush1.bf16.msra.mxu0 0
        %3057 = vmatprep.subr.bf16.mxu0 0
        %3058 = vmatpush1.bf16.msra.mxu0 0
        %3059 = vmatprep.subr.bf16.mxu0 0
        %3060 = vmatpush1.bf16.msra.mxu0 0
        %3061 = vmatprep.subr.bf16.mxu0 0
        %3062 = vmatpush1.bf16.msra.mxu0 0
        %3063 = vmatprep.subr.bf16.mxu0 0
        %3064 = vmatpush1.bf16.msra.mxu0 0
        %3065 = vmatprep.subr.bf16.mxu0 0
        %3066 = vmatpush1.bf16.msra.mxu0 0
        %3067 = vmatprep.subr.bf16.mxu0 0
        %3068 = vmatpush1.bf16.msra.mxu0 0
        %3069 = vmatprep.subr.bf16.mxu0 0
        %3070 = vmatpush1.bf16.msra.mxu0 0
        %3071 = vmatprep.mubr.bf16.mxu0 0
        %3072 = vmatmul.mubr.bf16.gmra.mrb[0].mxu0 %v3037
        %v3073 = vpop.f32.mrb[0].mxu0
        %v3074 = vadd.f32 0.0, %v3073
        %v3075 = vpop.f32.mrb[0].mxu0
        %v3076 = vadd.f32 0.0, %v3075
        %v3077 = vpop.f32.mrb[0].mxu0
        %v3078 = vpop.f32.mrb[0].mxu0
        %3079 = vdwg.mxu0
        %v3080 = vadd.f32 %v2827, %v3074
        %v3081 = vadd.f32 %v2831, %v3076
        %3082 = vrot.lane.b32.xlu0 %v2735, 64
        %v3083 = vpop.permute.xlu0 %3082
        %3084 = vrot.lane.b32.xlu0 %v2776, 64
        %v3085 = vpop.permute.xlu0 %3084
        %v3086 = vsel %vm2834, %v3083, 0
        %v3088 = vsel %vm2834, %v3085, 0
        %3090 = vmatprep.subr.mxu0 0.0
        %3091 = vmatpush1.xpose.msra.mxu0 %v3088
        %3092 = vmatprep.subr.mxu0 0.0
        %3093 = vmatpush1.xpose.msra.mxu0 0.0
        %3094 = vmatprep.subr.mxu0 0.0
        %3095 = vmatpush1.xpose.msra.mxu0 0.0
        %3096 = vmatprep.subr.mxu0 0.0
        %3097 = vmatpush1.xpose.msra.mxu0 0.0
        %3098 = vmatprep.subr.mxu0 0.0
        %3099 = vmatpush1.xpose.msra.mxu0 0.0
        %3100 = vmatprep.subr.mxu0 0.0
        %3101 = vmatpush1.xpose.msra.mxu0 0.0
        %3102 = vmatprep.subr.mxu0 0.0
        %3103 = vmatpush1.xpose.msra.mxu0 0.0
        %3104 = vmatprep.subr.mxu0 0.0
        %3105 = vmatpush1.xpose.msra.mxu0 0.0
        %3106 = vmatprep.subr.mxu0 0.0
        %3107 = vmatpush1.xpose.msra.mxu0 0.0
        %3108 = vmatprep.subr.mxu0 0.0
        %3109 = vmatpush1.xpose.msra.mxu0 0.0
        %3110 = vmatprep.subr.mxu0 0.0
        %3111 = vmatpush1.xpose.msra.mxu0 0.0
        %3112 = vmatprep.subr.mxu0 0.0
        %3113 = vmatpush1.xpose.msra.mxu0 0.0
        %3114 = vmatprep.subr.mxu0 0.0
        %3115 = vmatpush1.xpose.msra.mxu0 0.0
        %3116 = vmatprep.subr.mxu0 0.0
        %3117 = vmatpush1.xpose.msra.mxu0 0.0
        %3118 = vmatprep.subr.mxu0 0.0
        %3119 = vmatpush1.xpose.msra.mxu0 0.0
        %3120 = vmatprep.subr.mxu0 0.0
        %3121 = vmatpush1.xpose.msra.mxu0 0.0
        %3122 = vmatprep.subr.mxu0 0.0
        %3123 = vmatpush1.xpose.msra.mxu0 0.0
        %3124 = vmatprep.subr.mxu0 0.0
        %3125 = vmatpush1.xpose.msra.mxu0 0.0
        %3126 = vmatprep.subr.mxu0 0.0
        %3127 = vmatpush1.xpose.msra.mxu0 0.0
        %3128 = vmatprep.subr.mxu0 0.0
        %3129 = vmatpush1.xpose.msra.mxu0 0.0
        %3130 = vmatprep.subr.mxu0 0.0
        %3131 = vmatpush1.xpose.msra.mxu0 0.0
        %3132 = vmatprep.subr.mxu0 0.0
        %3133 = vmatpush1.xpose.msra.mxu0 0.0
        %3134 = vmatprep.subr.mxu0 0.0
        %3135 = vmatpush1.xpose.msra.mxu0 0.0
        %3136 = vmatprep.subr.mxu0 0.0
        %3137 = vmatpush1.xpose.msra.mxu0 0.0
        %3138 = vmatprep.subr.mxu0 0.0
        %3139 = vmatpush1.xpose.msra.mxu0 0.0
        %3140 = vmatprep.subr.mxu0 0.0
        %3141 = vmatpush1.xpose.msra.mxu0 0.0
        %3142 = vmatprep.subr.mxu0 0.0
        %3143 = vmatpush1.xpose.msra.mxu0 0.0
        %3144 = vmatprep.subr.mxu0 0.0
        %3145 = vmatpush1.xpose.msra.mxu0 0.0
        %3146 = vmatprep.subr.mxu0 0.0
        %3147 = vmatpush1.xpose.msra.mxu0 0.0
        %3148 = vmatprep.subr.mxu0 0.0
        %3149 = vmatpush1.xpose.msra.mxu0 0.0
        %3150 = vmatprep.subr.mxu0 0.0
        %3151 = vmatpush1.xpose.msra.mxu0 0.0
        %3152 = vmatprep.subr.mxu0 0.0
        %3153 = vmatpush1.xpose.msra.mxu0 0.0
        %3154 = vmatprep.mubr.f32.mxu0 0.0
        %3155 = vmatmul.mubr.f32.gmra.mrb[0].mxu0 %v3086
        %v3156 = vpop.f32.mrb[0].mxu0
        %v3157 = vadd.f32 0.0, %v3156
        %v3158 = vpop.f32.mrb[0].mxu0
        %3159 = vdwg.mxu0
        %v3160 = vsel %vm1175, %v3157, -inf
        %3161 = vmax.xlane.f32.xlu0 %v3160
        %v3162 = vpop.xlane.xlu0 %3161
        %v3163 = vsub.f32 %v3157, %v3162
        %v3164 = vmul.f32 %v3163, 1.442695
        %v3165 = vpow.pop %v3164
        %v3166 = vsel %vm1175, %v3165, 0.0
        %3167 = vadd.xlane.f32.xlu0 %v3166
        %v3168 = vpop.xlane.xlu0 %3167
        %v3169 = vrcp.pop %v3168
        %v3170 = vmul.f32 %v3165, %v3169
        %3172 = vrot.lane.b32.xlu0 %v2817, 64
        %v3173 = vpop.permute.xlu0 %3172
        %v3176 = vsel %vm1175, %v3170, 0
        %3178 = vmatprep.subr.mxu0 0.0
        %3179 = vmatpush1.msra.mxu0 %v3173
        %3180 = vmatprep.subr.mxu0 0.0
        %3181 = vmatpush1.msra.mxu0 0.0
        %3182 = vmatprep.subr.mxu0 0.0
        %3183 = vmatpush1.msra.mxu0 0.0
        %3184 = vmatprep.subr.mxu0 0.0
        %3185 = vmatpush1.msra.mxu0 0.0
        %3186 = vmatprep.subr.mxu0 0.0
        %3187 = vmatpush1.msra.mxu0 0.0
        %3188 = vmatprep.subr.mxu0 0.0
        %3189 = vmatpush1.msra.mxu0 0.0
        %3190 = vmatprep.subr.mxu0 0.0
        %3191 = vmatpush1.msra.mxu0 0.0
        %3192 = vmatprep.subr.mxu0 0.0
        %3193 = vmatpush1.msra.mxu0 0.0
        %3194 = vmatprep.subr.mxu0 0.0
        %3195 = vmatpush1.msra.mxu0 0.0
        %3196 = vmatprep.subr.mxu0 0.0
        %3197 = vmatpush1.msra.mxu0 0.0
        %3198 = vmatprep.subr.mxu0 0.0
        %3199 = vmatpush1.msra.mxu0 0.0
        %3200 = vmatprep.subr.mxu0 0.0
        %3201 = vmatpush1.msra.mxu0 0.0
        %3202 = vmatprep.subr.mxu0 0.0
        %3203 = vmatpush1.msra.mxu0 0.0
        %3204 = vmatprep.subr.mxu0 0.0
        %3205 = vmatpush1.msra.mxu0 0.0
        %3206 = vmatprep.subr.mxu0 0.0
        %3207 = vmatpush1.msra.mxu0 0.0
        %3208 = vmatprep.subr.mxu0 0.0
        %3209 = vmatpush1.msra.mxu0 0.0
        %3210 = vmatprep.subr.mxu0 0.0
        %3211 = vmatpush1.msra.mxu0 0.0
        %3212 = vmatprep.subr.mxu0 0.0
        %3213 = vmatpush1.msra.mxu0 0.0
        %3214 = vmatprep.subr.mxu0 0.0
        %3215 = vmatpush1.msra.mxu0 0.0
        %3216 = vmatprep.subr.mxu0 0.0
        %3217 = vmatpush1.msra.mxu0 0.0
        %3218 = vmatprep.subr.mxu0 0.0
        %3219 = vmatpush1.msra.mxu0 0.0
        %3220 = vmatprep.subr.mxu0 0.0
        %3221 = vmatpush1.msra.mxu0 0.0
        %3222 = vmatprep.subr.mxu0 0.0
        %3223 = vmatpush1.msra.mxu0 0.0
        %3224 = vmatprep.subr.mxu0 0.0
        %3225 = vmatpush1.msra.mxu0 0.0
        %3226 = vmatprep.subr.mxu0 0.0
        %3227 = vmatpush1.msra.mxu0 0.0
        %3228 = vmatprep.subr.mxu0 0.0
        %3229 = vmatpush1.msra.mxu0 0.0
        %3230 = vmatprep.subr.mxu0 0.0
        %3231 = vmatpush1.msra.mxu0 0.0
        %3232 = vmatprep.subr.mxu0 0.0
        %3233 = vmatpush1.msra.mxu0 0.0
        %3234 = vmatprep.subr.mxu0 0.0
        %3235 = vmatpush1.msra.mxu0 0.0
        %3236 = vmatprep.subr.mxu0 0.0
        %3237 = vmatpush1.msra.mxu0 0.0
        %3238 = vmatprep.subr.mxu0 0.0
        %3239 = vmatpush1.msra.mxu0 0.0
        %3240 = vmatprep.subr.mxu0 0.0
        %3241 = vmatpush1.msra.mxu0 0.0
        %3242 = vmatprep.mubr.f32.mxu0 0.0
        %3243 = vmatmul.mubr.f32.gmra.mrb[0].mxu0 %v3176
        %v3244 = vpop.f32.mrb[0].mxu0
        %v3245 = vadd.f32 0.0, %v3244
        %v3246 = vpop.f32.mrb[0].mxu0
        %3247 = vdwg.mxu0
        %v3248 = vpack.c.bf16 %v3245, %v3245
        %v3257 = vunpack.c.l.b16 %v1068
        %v3258 = vunpack.c.h.b16 %v1068
        %v3259 = vunpack.c.l.b16 %v1069
        %v3260 = vunpack.c.h.b16 %v1069
        %v3261 = vunpack.c.l.b16 %v1070
        %v3262 = vunpack.c.h.b16 %v1070
        %v3263 = vunpack.c.l.b16 %v1071
        %v3264 = vunpack.c.h.b16 %v1071
        %v3265 = vunpack.c.l.b16 %v1072
        %v3266 = vunpack.c.h.b16 %v1072
        %v3267 = vunpack.c.l.b16 %v1073
        %v3268 = vunpack.c.h.b16 %v1073
        %v3269 = vunpack.c.l.b16 %v1074
        %v3270 = vunpack.c.h.b16 %v1074
        %v3271 = vunpack.c.l.b16 %v1075
        %v3272 = vunpack.c.h.b16 %v1075
        %v3273 = vpack.c.b16 %v3259, %v3257
        %v3274 = vpack.c.b16 %v3260, %v3258
        %v3275 = vpack.c.b16 %v3263, %v3261
        %v3276 = vpack.c.b16 %v3264, %v3262
        %v3277 = vpack.c.b16 %v3267, %v3265
        %v3278 = vpack.c.b16 %v3268, %v3266
        %v3279 = vpack.c.b16 %v3271, %v3269
        %v3280 = vpack.c.b16 %v3272, %v3270
        %v3290 = vsel %vm2834, %v3248, 0
        %3292 = vmatprep.subr.bf16.mxu0 %v3274
        %3293 = vmatpush1.bf16.msra.mxu0 %v3273
        %3294 = vmatprep.subr.bf16.mxu0 %v3276
        %3295 = vmatpush1.bf16.msra.mxu0 %v3275
        %3296 = vmatprep.subr.bf16.mxu0 %v3278
        %3297 = vmatpush1.bf16.msra.mxu0 %v3277
        %3298 = vmatprep.subr.bf16.mxu0 %v3280
        %3299 = vmatpush1.bf16.msra.mxu0 %v3279
        %3300 = vmatprep.subr.bf16.mxu0 0
        %3301 = vmatpush1.bf16.msra.mxu0 0
        %3302 = vmatprep.subr.bf16.mxu0 0
        %3303 = vmatpush1.bf16.msra.mxu0 0
        %3304 = vmatprep.subr.bf16.mxu0 0
        %3305 = vmatpush1.bf16.msra.mxu0 0
        %3306 = vmatprep.subr.bf16.mxu0 0
        %3307 = vmatpush1.bf16.msra.mxu0 0
        %3308 = vmatprep.subr.bf16.mxu0 0
        %3309 = vmatpush1.bf16.msra.mxu0 0
        %3310 = vmatprep.subr.bf16.mxu0 0
        %3311 = vmatpush1.bf16.msra.mxu0 0
        %3312 = vmatprep.subr.bf16.mxu0 0
        %3313 = vmatpush1.bf16.msra.mxu0 0
        %3314 = vmatprep.subr.bf16.mxu0 0
        %3315 = vmatpush1.bf16.msra.mxu0 0
        %3316 = vmatprep.subr.bf16.mxu0 0
        %3317 = vmatpush1.bf16.msra.mxu0 0
        %3318 = vmatprep.subr.bf16.mxu0 0
        %3319 = vmatpush1.bf16.msra.mxu0 0
        %3320 = vmatprep.subr.bf16.mxu0 0
        %3321 = vmatpush1.bf16.msra.mxu0 0
        %3322 = vmatprep.subr.bf16.mxu0 0
        %3323 = vmatpush1.bf16.msra.mxu0 0
        %3324 = vmatprep.mubr.bf16.mxu0 0
        %3325 = vmatmul.mubr.bf16.gmra.mrb[0].mxu0 %v3290
        %v3326 = vpop.f32.mrb[0].mxu0
        %v3327 = vadd.f32 0.0, %v3326
        %v3328 = vpop.f32.mrb[0].mxu0
        %v3329 = vadd.f32 0.0, %v3328
        %v3330 = vpop.f32.mrb[0].mxu0
        %v3331 = vpop.f32.mrb[0].mxu0
        %3332 = vdwg.mxu0
        %v3333 = vadd.f32 %v3080, %v3327
        %v3334 = vadd.f32 %v3081, %v3329
        %v3336 = vsel %vm2834, %v2737, 0
        %v3339 = vsel %vm2834, %v2778, 0
        %3341 = vmatprep.subr.mxu0 0.0
        %3342 = vmatpush1.xpose.msra.mxu0 %v3339
        %3343 = vmatprep.subr.mxu0 0.0
        %3344 = vmatpush1.xpose.msra.mxu0 0.0
        %3345 = vmatprep.subr.mxu0 0.0
        %3346 = vmatpush1.xpose.msra.mxu0 0.0
        %3347 = vmatprep.subr.mxu0 0.0
        %3348 = vmatpush1.xpose.msra.mxu0 0.0
        %3349 = vmatprep.subr.mxu0 0.0
        %3350 = vmatpush1.xpose.msra.mxu0 0.0
        %3351 = vmatprep.subr.mxu0 0.0
        %3352 = vmatpush1.xpose.msra.mxu0 0.0
        %3353 = vmatprep.subr.mxu0 0.0
        %3354 = vmatpush1.xpose.msra.mxu0 0.0
        %3355 = vmatprep.subr.mxu0 0.0
        %3356 = vmatpush1.xpose.msra.mxu0 0.0
        %3357 = vmatprep.subr.mxu0 0.0
        %3358 = vmatpush1.xpose.msra.mxu0 0.0
        %3359 = vmatprep.subr.mxu0 0.0
        %3360 = vmatpush1.xpose.msra.mxu0 0.0
        %3361 = vmatprep.subr.mxu0 0.0
        %3362 = vmatpush1.xpose.msra.mxu0 0.0
        %3363 = vmatprep.subr.mxu0 0.0
        %3364 = vmatpush1.xpose.msra.mxu0 0.0
        %3365 = vmatprep.subr.mxu0 0.0
        %3366 = vmatpush1.xpose.msra.mxu0 0.0
        %3367 = vmatprep.subr.mxu0 0.0
        %3368 = vmatpush1.xpose.msra.mxu0 0.0
        %3369 = vmatprep.subr.mxu0 0.0
        %3370 = vmatpush1.xpose.msra.mxu0 0.0
        %3371 = vmatprep.subr.mxu0 0.0
        %3372 = vmatpush1.xpose.msra.mxu0 0.0
        %3373 = vmatprep.subr.mxu0 0.0
        %3374 = vmatpush1.xpose.msra.mxu0 0.0
        %3375 = vmatprep.subr.mxu0 0.0
        %3376 = vmatpush1.xpose.msra.mxu0 0.0
        %3377 = vmatprep.subr.mxu0 0.0
        %3378 = vmatpush1.xpose.msra.mxu0 0.0
        %3379 = vmatprep.subr.mxu0 0.0
        %3380 = vmatpush1.xpose.msra.mxu0 0.0
        %3381 = vmatprep.subr.mxu0 0.0
        %3382 = vmatpush1.xpose.msra.mxu0 0.0
        %3383 = vmatprep.subr.mxu0 0.0
        %3384 = vmatpush1.xpose.msra.mxu0 0.0
        %3385 = vmatprep.subr.mxu0 0.0
        %3386 = vmatpush1.xpose.msra.mxu0 0.0
        %3387 = vmatprep.subr.mxu0 0.0
        %3388 = vmatpush1.xpose.msra.mxu0 0.0
        %3389 = vmatprep.subr.mxu0 0.0
        %3390 = vmatpush1.xpose.msra.mxu0 0.0
        %3391 = vmatprep.subr.mxu0 0.0
        %3392 = vmatpush1.xpose.msra.mxu0 0.0
        %3393 = vmatprep.subr.mxu0 0.0
        %3394 = vmatpush1.xpose.msra.mxu0 0.0
        %3395 = vmatprep.subr.mxu0 0.0
        %3396 = vmatpush1.xpose.msra.mxu0 0.0
        %3397 = vmatprep.subr.mxu0 0.0
        %3398 = vmatpush1.xpose.msra.mxu0 0.0
        %3399 = vmatprep.subr.mxu0 0.0
        %3400 = vmatpush1.xpose.msra.mxu0 0.0
        %3401 = vmatprep.subr.mxu0 0.0
        %3402 = vmatpush1.xpose.msra.mxu0 0.0
        %3403 = vmatprep.subr.mxu0 0.0
        %3404 = vmatpush1.xpose.msra.mxu0 0.0
        %3405 = vmatprep.mubr.f32.mxu0 0.0
        %3406 = vmatmul.mubr.f32.gmra.mrb[0].mxu0 %v3336
        %v3407 = vpop.f32.mrb[0].mxu0
        %v3408 = vadd.f32 0.0, %v3407
        %v3409 = vpop.f32.mrb[0].mxu0
        %3410 = vdwg.mxu0
        %v3411 = vsel %vm1175, %v3408, -inf
        %3412 = vmax.xlane.f32.xlu0 %v3411
        %v3413 = vpop.xlane.xlu0 %3412
        %v3414 = vsub.f32 %v3408, %v3413
        %v3415 = vmul.f32 %v3414, 1.442695
        %v3416 = vpow.pop %v3415
        %v3417 = vsel %vm1175, %v3416, 0.0
        %3418 = vadd.xlane.f32.xlu0 %v3417
        %v3419 = vpop.xlane.xlu0 %3418
        %v3420 = vrcp.pop %v3419
        %v3421 = vmul.f32 %v3416, %v3420
        %v3423 = vsel %vm1175, %v3421, 0
        %3425 = vmatprep.subr.mxu0 0.0
        %3426 = vmatpush1.msra.mxu0 %v2819
        %3427 = vmatprep.subr.mxu0 0.0
        %3428 = vmatpush1.msra.mxu0 0.0
        %3429 = vmatprep.subr.mxu0 0.0
        %3430 = vmatpush1.msra.mxu0 0.0
        %3431 = vmatprep.subr.mxu0 0.0
        %3432 = vmatpush1.msra.mxu0 0.0
        %3433 = vmatprep.subr.mxu0 0.0
        %3434 = vmatpush1.msra.mxu0 0.0
        %3435 = vmatprep.subr.mxu0 0.0
        %3436 = vmatpush1.msra.mxu0 0.0
        %3437 = vmatprep.subr.mxu0 0.0
        %3438 = vmatpush1.msra.mxu0 0.0
        %3439 = vmatprep.subr.mxu0 0.0
        %3440 = vmatpush1.msra.mxu0 0.0
        %3441 = vmatprep.subr.mxu0 0.0
        %3442 = vmatpush1.msra.mxu0 0.0
        %3443 = vmatprep.subr.mxu0 0.0
        %3444 = vmatpush1.msra.mxu0 0.0
        %3445 = vmatprep.subr.mxu0 0.0
        %3446 = vmatpush1.msra.mxu0 0.0
        %3447 = vmatprep.subr.mxu0 0.0
        %3448 = vmatpush1.msra.mxu0 0.0
        %3449 = vmatprep.subr.mxu0 0.0
        %3450 = vmatpush1.msra.mxu0 0.0
        %3451 = vmatprep.subr.mxu0 0.0
        %3452 = vmatpush1.msra.mxu0 0.0
        %3453 = vmatprep.subr.mxu0 0.0
        %3454 = vmatpush1.msra.mxu0 0.0
        %3455 = vmatprep.subr.mxu0 0.0
        %3456 = vmatpush1.msra.mxu0 0.0
        %3457 = vmatprep.subr.mxu0 0.0
        %3458 = vmatpush1.msra.mxu0 0.0
        %3459 = vmatprep.subr.mxu0 0.0
        %3460 = vmatpush1.msra.mxu0 0.0
        %3461 = vmatprep.subr.mxu0 0.0
        %3462 = vmatpush1.msra.mxu0 0.0
        %3463 = vmatprep.subr.mxu0 0.0
        %3464 = vmatpush1.msra.mxu0 0.0
        %3465 = vmatprep.subr.mxu0 0.0
        %3466 = vmatpush1.msra.mxu0 0.0
        %3467 = vmatprep.subr.mxu0 0.0
        %3468 = vmatpush1.msra.mxu0 0.0
        %3469 = vmatprep.subr.mxu0 0.0
        %3470 = vmatpush1.msra.mxu0 0.0
        %3471 = vmatprep.subr.mxu0 0.0
        %3472 = vmatpush1.msra.mxu0 0.0
        %3473 = vmatprep.subr.mxu0 0.0
        %3474 = vmatpush1.msra.mxu0 0.0
        %3475 = vmatprep.subr.mxu0 0.0
        %3476 = vmatpush1.msra.mxu0 0.0
        %3477 = vmatprep.subr.mxu0 0.0
        %3478 = vmatpush1.msra.mxu0 0.0
        %3479 = vmatprep.subr.mxu0 0.0
        %3480 = vmatpush1.msra.mxu0 0.0
        %3481 = vmatprep.subr.mxu0 0.0
        %3482 = vmatpush1.msra.mxu0 0.0
        %3483 = vmatprep.subr.mxu0 0.0
        %3484 = vmatpush1.msra.mxu0 0.0
        %3485 = vmatprep.subr.mxu0 0.0
        %3486 = vmatpush1.msra.mxu0 0.0
        %3487 = vmatprep.subr.mxu0 0.0
        %3488 = vmatpush1.msra.mxu0 0.0
        %3489 = vmatprep.mubr.f32.mxu0 0.0
        %3490 = vmatmul.mubr.f32.gmra.mrb[0].mxu0 %v3423
        %v3491 = vpop.f32.mrb[0].mxu0
        %v3492 = vadd.f32 0.0, %v3491
        %v3493 = vpop.f32.mrb[0].mxu0
        %3494 = vdwg.mxu0
        %v3495 = vpack.c.bf16 %v3492, %v3492
        %v3504 = vunpack.c.l.b16 %v1076
        %v3505 = vunpack.c.h.b16 %v1076
        %v3506 = vunpack.c.l.b16 %v1077
        %v3507 = vunpack.c.h.b16 %v1077
        %v3508 = vunpack.c.l.b16 %v1078
        %v3509 = vunpack.c.h.b16 %v1078
        %v3510 = vunpack.c.l.b16 %v1079
        %v3511 = vunpack.c.h.b16 %v1079
        %v3512 = vunpack.c.l.b16 %v1080
        %v3513 = vunpack.c.h.b16 %v1080
        %v3514 = vunpack.c.l.b16 %v1081
        %v3515 = vunpack.c.h.b16 %v1081
        %v3516 = vunpack.c.l.b16 %v1082
        %v3517 = vunpack.c.h.b16 %v1082
        %v3518 = vunpack.c.l.b16 %v1083
        %v3519 = vunpack.c.h.b16 %v1083
        %v3520 = vpack.c.b16 %v3506, %v3504
        %v3521 = vpack.c.b16 %v3507, %v3505
        %v3522 = vpack.c.b16 %v3510, %v3508
        %v3523 = vpack.c.b16 %v3511, %v3509
        %v3524 = vpack.c.b16 %v3514, %v3512
        %v3525 = vpack.c.b16 %v3515, %v3513
        %v3526 = vpack.c.b16 %v3518, %v3516
        %v3527 = vpack.c.b16 %v3519, %v3517
        %v3537 = vsel %vm2834, %v3495, 0
        %3539 = vmatprep.subr.bf16.mxu0 %v3521
        %3540 = vmatpush1.bf16.msra.mxu0 %v3520
        %3541 = vmatprep.subr.bf16.mxu0 %v3523
        %3542 = vmatpush1.bf16.msra.mxu0 %v3522
        %3543 = vmatprep.subr.bf16.mxu0 %v3525
        %3544 = vmatpush1.bf16.msra.mxu0 %v3524
        %3545 = vmatprep.subr.bf16.mxu0 %v3527
        %3546 = vmatpush1.bf16.msra.mxu0 %v3526
        %3547 = vmatprep.subr.bf16.mxu0 0
        %3548 = vmatpush1.bf16.msra.mxu0 0
        %3549 = vmatprep.subr.bf16.mxu0 0
        %3550 = vmatpush1.bf16.msra.mxu0 0
        %3551 = vmatprep.subr.bf16.mxu0 0
        %3552 = vmatpush1.bf16.msra.mxu0 0
        %3553 = vmatprep.subr.bf16.mxu0 0
        %3554 = vmatpush1.bf16.msra.mxu0 0
        %3555 = vmatprep.subr.bf16.mxu0 0
        %3556 = vmatpush1.bf16.msra.mxu0 0
        %3557 = vmatprep.subr.bf16.mxu0 0
        %3558 = vmatpush1.bf16.msra.mxu0 0
        %3559 = vmatprep.subr.bf16.mxu0 0
        %3560 = vmatpush1.bf16.msra.mxu0 0
        %3561 = vmatprep.subr.bf16.mxu0 0
        %3562 = vmatpush1.bf16.msra.mxu0 0
        %3563 = vmatprep.subr.bf16.mxu0 0
        %3564 = vmatpush1.bf16.msra.mxu0 0
        %3565 = vmatprep.subr.bf16.mxu0 0
        %3566 = vmatpush1.bf16.msra.mxu0 0
        %3567 = vmatprep.subr.bf16.mxu0 0
        %3568 = vmatpush1.bf16.msra.mxu0 0
        %3569 = vmatprep.subr.bf16.mxu0 0
        %3570 = vmatpush1.bf16.msra.mxu0 0
        %3571 = vmatprep.mubr.bf16.mxu0 0
        %3572 = vmatmul.mubr.bf16.gmra.mrb[0].mxu0 %v3537
        %v3573 = vpop.f32.mrb[0].mxu0
        %v3574 = vadd.f32 0.0, %v3573
        %v3575 = vpop.f32.mrb[0].mxu0
        %v3576 = vadd.f32 0.0, %v3575
        %v3577 = vpop.f32.mrb[0].mxu0
        %v3578 = vpop.f32.mrb[0].mxu0
        %3579 = vdwg.mxu0
        %v3580 = vadd.f32 %v3333, %v3574
        %v3581 = vadd.f32 %v3334, %v3576
        %3582 = vrot.lane.b32.xlu0 %v2737, 64
        %v3583 = vpop.permute.xlu0 %3582
        %3584 = vrot.lane.b32.xlu0 %v2778, 64
        %v3585 = vpop.permute.xlu0 %3584
        %v3586 = vsel %vm2834, %v3583, 0
        %v3588 = vsel %vm2834, %v3585, 0
        %3590 = vmatprep.subr.mxu0 0.0
        %3591 = vmatpush1.xpose.msra.mxu0 %v3588
        %3592 = vmatprep.subr.mxu0 0.0
        %3593 = vmatpush1.xpose.msra.mxu0 0.0
        %3594 = vmatprep.subr.mxu0 0.0
        %3595 = vmatpush1.xpose.msra.mxu0 0.0
        %3596 = vmatprep.subr.mxu0 0.0
        %3597 = vmatpush1.xpose.msra.mxu0 0.0
        %3598 = vmatprep.subr.mxu0 0.0
        %3599 = vmatpush1.xpose.msra.mxu0 0.0
        %3600 = vmatprep.subr.mxu0 0.0
        %3601 = vmatpush1.xpose.msra.mxu0 0.0
        %3602 = vmatprep.subr.mxu0 0.0
        %3603 = vmatpush1.xpose.msra.mxu0 0.0
        %3604 = vmatprep.subr.mxu0 0.0
        %3605 = vmatpush1.xpose.msra.mxu0 0.0
        %3606 = vmatprep.subr.mxu0 0.0
        %3607 = vmatpush1.xpose.msra.mxu0 0.0
        %3608 = vmatprep.subr.mxu0 0.0
        %3609 = vmatpush1.xpose.msra.mxu0 0.0
        %3610 = vmatprep.subr.mxu0 0.0
        %3611 = vmatpush1.xpose.msra.mxu0 0.0
        %3612 = vmatprep.subr.mxu0 0.0
        %3613 = vmatpush1.xpose.msra.mxu0 0.0
        %3614 = vmatprep.subr.mxu0 0.0
        %3615 = vmatpush1.xpose.msra.mxu0 0.0
        %3616 = vmatprep.subr.mxu0 0.0
        %3617 = vmatpush1.xpose.msra.mxu0 0.0
        %3618 = vmatprep.subr.mxu0 0.0
        %3619 = vmatpush1.xpose.msra.mxu0 0.0
        %3620 = vmatprep.subr.mxu0 0.0
        %3621 = vmatpush1.xpose.msra.mxu0 0.0
        %3622 = vmatprep.subr.mxu0 0.0
        %3623 = vmatpush1.xpose.msra.mxu0 0.0
        %3624 = vmatprep.subr.mxu0 0.0
        %3625 = vmatpush1.xpose.msra.mxu0 0.0
        %3626 = vmatprep.subr.mxu0 0.0
        %3627 = vmatpush1.xpose.msra.mxu0 0.0
        %3628 = vmatprep.subr.mxu0 0.0
        %3629 = vmatpush1.xpose.msra.mxu0 0.0
        %3630 = vmatprep.subr.mxu0 0.0
        %3631 = vmatpush1.xpose.msra.mxu0 0.0
        %3632 = vmatprep.subr.mxu0 0.0
        %3633 = vmatpush1.xpose.msra.mxu0 0.0
        %3634 = vmatprep.subr.mxu0 0.0
        %3635 = vmatpush1.xpose.msra.mxu0 0.0
        %3636 = vmatprep.subr.mxu0 0.0
        %3637 = vmatpush1.xpose.msra.mxu0 0.0
        %3638 = vmatprep.subr.mxu0 0.0
        %3639 = vmatpush1.xpose.msra.mxu0 0.0
        %3640 = vmatprep.subr.mxu0 0.0
        %3641 = vmatpush1.xpose.msra.mxu0 0.0
        %3642 = vmatprep.subr.mxu0 0.0
        %3643 = vmatpush1.xpose.msra.mxu0 0.0
        %3644 = vmatprep.subr.mxu0 0.0
        %3645 = vmatpush1.xpose.msra.mxu0 0.0
        %3646 = vmatprep.subr.mxu0 0.0
        %3647 = vmatpush1.xpose.msra.mxu0 0.0
        %3648 = vmatprep.subr.mxu0 0.0
        %3649 = vmatpush1.xpose.msra.mxu0 0.0
        %3650 = vmatprep.subr.mxu0 0.0
        %3651 = vmatpush1.xpose.msra.mxu0 0.0
        %3652 = vmatprep.subr.mxu0 0.0
        %3653 = vmatpush1.xpose.msra.mxu0 0.0
        %3654 = vmatprep.mubr.f32.mxu0 0.0
        %3655 = vmatmul.mubr.f32.gmra.mrb[0].mxu0 %v3586
        %v3656 = vpop.f32.mrb[0].mxu0
        %v3657 = vadd.f32 0.0, %v3656
        %v3658 = vpop.f32.mrb[0].mxu0
        %3659 = vdwg.mxu0
        %v3660 = vsel %vm1175, %v3657, -inf
        %3661 = vmax.xlane.f32.xlu0 %v3660
        %v3662 = vpop.xlane.xlu0 %3661
        %v3663 = vsub.f32 %v3657, %v3662
        %v3664 = vmul.f32 %v3663, 1.442695
        %v3665 = vpow.pop %v3664
        %v3666 = vsel %vm1175, %v3665, 0.0
        %3667 = vadd.xlane.f32.xlu0 %v3666
        %v3668 = vpop.xlane.xlu0 %3667
        %v3669 = vrcp.pop %v3668
        %v3670 = vmul.f32 %v3665, %v3669
        %3672 = vrot.lane.b32.xlu0 %v2819, 64
        %v3673 = vpop.permute.xlu0 %3672
        %v3676 = vsel %vm1175, %v3670, 0
        %3678 = vmatprep.subr.mxu0 0.0
        %3679 = vmatpush1.msra.mxu0 %v3673
        %3680 = vmatprep.subr.mxu0 0.0
        %3681 = vmatpush1.msra.mxu0 0.0
        %3682 = vmatprep.subr.mxu0 0.0
        %3683 = vmatpush1.msra.mxu0 0.0
        %3684 = vmatprep.subr.mxu0 0.0
        %3685 = vmatpush1.msra.mxu0 0.0
        %3686 = vmatprep.subr.mxu0 0.0
        %3687 = vmatpush1.msra.mxu0 0.0
        %3688 = vmatprep.subr.mxu0 0.0
        %3689 = vmatpush1.msra.mxu0 0.0
        %3690 = vmatprep.subr.mxu0 0.0
        %3691 = vmatpush1.msra.mxu0 0.0
        %3692 = vmatprep.subr.mxu0 0.0
        %3693 = vmatpush1.msra.mxu0 0.0
        %3694 = vmatprep.subr.mxu0 0.0
        %3695 = vmatpush1.msra.mxu0 0.0
        %3696 = vmatprep.subr.mxu0 0.0
        %3697 = vmatpush1.msra.mxu0 0.0
        %3698 = vmatprep.subr.mxu0 0.0
        %3699 = vmatpush1.msra.mxu0 0.0
        %3700 = vmatprep.subr.mxu0 0.0
        %3701 = vmatpush1.msra.mxu0 0.0
        %3702 = vmatprep.subr.mxu0 0.0
        %3703 = vmatpush1.msra.mxu0 0.0
        %3704 = vmatprep.subr.mxu0 0.0
        %3705 = vmatpush1.msra.mxu0 0.0
        %3706 = vmatprep.subr.mxu0 0.0
        %3707 = vmatpush1.msra.mxu0 0.0
        %3708 = vmatprep.subr.mxu0 0.0
        %3709 = vmatpush1.msra.mxu0 0.0
        %3710 = vmatprep.subr.mxu0 0.0
        %3711 = vmatpush1.msra.mxu0 0.0
        %3712 = vmatprep.subr.mxu0 0.0
        %3713 = vmatpush1.msra.mxu0 0.0
        %3714 = vmatprep.subr.mxu0 0.0
        %3715 = vmatpush1.msra.mxu0 0.0
        %3716 = vmatprep.subr.mxu0 0.0
        %3717 = vmatpush1.msra.mxu0 0.0
        %3718 = vmatprep.subr.mxu0 0.0
        %3719 = vmatpush1.msra.mxu0 0.0
        %3720 = vmatprep.subr.mxu0 0.0
        %3721 = vmatpush1.msra.mxu0 0.0
        %3722 = vmatprep.subr.mxu0 0.0
        %3723 = vmatpush1.msra.mxu0 0.0
        %3724 = vmatprep.subr.mxu0 0.0
        %3725 = vmatpush1.msra.mxu0 0.0
        %3726 = vmatprep.subr.mxu0 0.0
        %3727 = vmatpush1.msra.mxu0 0.0
        %3728 = vmatprep.subr.mxu0 0.0
        %3729 = vmatpush1.msra.mxu0 0.0
        %3730 = vmatprep.subr.mxu0 0.0
        %3731 = vmatpush1.msra.mxu0 0.0
        %3732 = vmatprep.subr.mxu0 0.0
        %3733 = vmatpush1.msra.mxu0 0.0
        %3734 = vmatprep.subr.mxu0 0.0
        %3735 = vmatpush1.msra.mxu0 0.0
        %3736 = vmatprep.subr.mxu0 0.0
        %3737 = vmatpush1.msra.mxu0 0.0
        %3738 = vmatprep.subr.mxu0 0.0
        %3739 = vmatpush1.msra.mxu0 0.0
        %3740 = vmatprep.subr.mxu0 0.0
        %3741 = vmatpush1.msra.mxu0 0.0
        %3742 = vmatprep.mubr.f32.mxu0 0.0
        %3743 = vmatmul.mubr.f32.gmra.mrb[0].mxu0 %v3676
        %v3744 = vpop.f32.mrb[0].mxu0
        %v3745 = vadd.f32 0.0, %v3744
        %v3746 = vpop.f32.mrb[0].mxu0
        %3747 = vdwg.mxu0
        %v3748 = vpack.c.bf16 %v3745, %v3745
        %v3757 = vunpack.c.l.b16 %v1084
        %v3758 = vunpack.c.h.b16 %v1084
        %v3759 = vunpack.c.l.b16 %v1085
        %v3760 = vunpack.c.h.b16 %v1085
        %v3761 = vunpack.c.l.b16 %v1086
        %v3762 = vunpack.c.h.b16 %v1086
        %v3763 = vunpack.c.l.b16 %v1087
        %v3764 = vunpack.c.h.b16 %v1087
        %v3765 = vunpack.c.l.b16 %v1088
        %v3766 = vunpack.c.h.b16 %v1088
        %v3767 = vunpack.c.l.b16 %v1089
        %v3768 = vunpack.c.h.b16 %v1089
        %v3769 = vunpack.c.l.b16 %v1090
        %v3770 = vunpack.c.h.b16 %v1090
        %v3771 = vunpack.c.l.b16 %v1091
        %v3772 = vunpack.c.h.b16 %v1091
        %v3773 = vpack.c.b16 %v3759, %v3757
        %v3774 = vpack.c.b16 %v3760, %v3758
        %v3775 = vpack.c.b16 %v3763, %v3761
        %v3776 = vpack.c.b16 %v3764, %v3762
        %v3777 = vpack.c.b16 %v3767, %v3765
        %v3778 = vpack.c.b16 %v3768, %v3766
        %v3779 = vpack.c.b16 %v3771, %v3769
        %v3780 = vpack.c.b16 %v3772, %v3770
        %v3790 = vsel %vm2834, %v3748, 0
        %3792 = vmatprep.subr.bf16.mxu0 %v3774
        %3793 = vmatpush1.bf16.msra.mxu0 %v3773
        %3794 = vmatprep.subr.bf16.mxu0 %v3776
        %3795 = vmatpush1.bf16.msra.mxu0 %v3775
        %3796 = vmatprep.subr.bf16.mxu0 %v3778
        %3797 = vmatpush1.bf16.msra.mxu0 %v3777
        %3798 = vmatprep.subr.bf16.mxu0 %v3780
        %3799 = vmatpush1.bf16.msra.mxu0 %v3779
        %3800 = vmatprep.subr.bf16.mxu0 0
        %3801 = vmatpush1.bf16.msra.mxu0 0
        %3802 = vmatprep.subr.bf16.mxu0 0
        %3803 = vmatpush1.bf16.msra.mxu0 0
        %3804 = vmatprep.subr.bf16.mxu0 0
        %3805 = vmatpush1.bf16.msra.mxu0 0
        %3806 = vmatprep.subr.bf16.mxu0 0
        %3807 = vmatpush1.bf16.msra.mxu0 0
        %3808 = vmatprep.subr.bf16.mxu0 0
        %3809 = vmatpush1.bf16.msra.mxu0 0
        %3810 = vmatprep.subr.bf16.mxu0 0
        %3811 = vmatpush1.bf16.msra.mxu0 0
        %3812 = vmatprep.subr.bf16.mxu0 0
        %3813 = vmatpush1.bf16.msra.mxu0 0
        %3814 = vmatprep.subr.bf16.mxu0 0
        %3815 = vmatpush1.bf16.msra.mxu0 0
        %3816 = vmatprep.subr.bf16.mxu0 0
        %3817 = vmatpush1.bf16.msra.mxu0 0
        %3818 = vmatprep.subr.bf16.mxu0 0
        %3819 = vmatpush1.bf16.msra.mxu0 0
        %3820 = vmatprep.subr.bf16.mxu0 0
        %3821 = vmatpush1.bf16.msra.mxu0 0
        %3822 = vmatprep.subr.bf16.mxu0 0
        %3823 = vmatpush1.bf16.msra.mxu0 0
        %3824 = vmatprep.mubr.bf16.mxu0 0
        %3825 = vmatmul.mubr.bf16.gmra.mrb[0].mxu0 %v3790
        %v3826 = vpop.f32.mrb[0].mxu0
        %v3827 = vadd.f32 0.0, %v3826
        %v3828 = vpop.f32.mrb[0].mxu0
        %v3829 = vadd.f32 0.0, %v3828
        %v3830 = vpop.f32.mrb[0].mxu0
        %v3831 = vpop.f32.mrb[0].mxu0
        %3832 = vdwg.mxu0
        %v3833 = vadd.f32 %v3580, %v3827
        %v3834 = vadd.f32 %v3581, %v3829
        %v3835 = vpack.c.bf16 %v3833, %v3833
        %v3836 = vpack.c.bf16 %v3834, %v3834
        %v3837 = vld [vmem:[#allocation16] sm:$0xf]
        %v3838 = vld [vmem:[#allocation16 + $0x4] sm:$0xf]
        %v3839 = vld [vmem:[#allocation16 + $0x8] sm:$0xf]
        %v3840 = vld [vmem:[#allocation16 + $0xc] sm:$0xf]
        %v3841 = vld [vmem:[#allocation16 + $0x10] sm:$0xf]
        %v3842 = vld [vmem:[#allocation16 + $0x14] sm:$0xf]
        %v3843 = vld [vmem:[#allocation16 + $0x18] sm:$0xf]
        %v3844 = vld [vmem:[#allocation16 + $0x1c] sm:$0xf]
        %v3845 = vld [vmem:[#allocation16 + $0x20] sm:$0xf]
        %v3846 = vld [vmem:[#allocation16 + $0x24] sm:$0xf]
        %v3847 = vld [vmem:[#allocation16 + $0x28] sm:$0xf]
        %v3848 = vld [vmem:[#allocation16 + $0x2c] sm:$0xf]
        %v3849 = vld [vmem:[#allocation16 + $0x30] sm:$0xf]
        %v3850 = vld [vmem:[#allocation16 + $0x34] sm:$0xf]
        %v3851 = vld [vmem:[#allocation16 + $0x38] sm:$0xf]
        %v3852 = vld [vmem:[#allocation16 + $0x3c] sm:$0xf]
        %v3853 = vld [vmem:[#allocation16 + $0x40] sm:$0xf]
        %v3854 = vld [vmem:[#allocation16 + $0x44] sm:$0xf]
        %v3855 = vld [vmem:[#allocation16 + $0x48] sm:$0xf]
        %v3856 = vld [vmem:[#allocation16 + $0x4c] sm:$0xf]
        %v3857 = vld [vmem:[#allocation16 + $0x50] sm:$0xf]
        %v3858 = vld [vmem:[#allocation16 + $0x54] sm:$0xf]
        %v3859 = vld [vmem:[#allocation16 + $0x58] sm:$0xf]
        %v3860 = vld [vmem:[#allocation16 + $0x5c] sm:$0xf]
        %v3861 = vld [vmem:[#allocation16 + $0x60] sm:$0xf]
        %v3862 = vld [vmem:[#allocation16 + $0x64] sm:$0xf]
        %v3863 = vld [vmem:[#allocation16 + $0x68] sm:$0xf]
        %v3864 = vld [vmem:[#allocation16 + $0x6c] sm:$0xf]
        %v3865 = vld [vmem:[#allocation16 + $0x70] sm:$0xf]
        %v3866 = vld [vmem:[#allocation16 + $0x74] sm:$0xf]
        %v3867 = vld [vmem:[#allocation16 + $0x78] sm:$0xf]
        %v3868 = vld [vmem:[#allocation16 + $0x7c] sm:$0xf]
        %v3869 = vld [vmem:[%s13] sm:$0x1]
        %v3871 = vlaneseq
        %v3872 = vshrl.u32 %v3871, 7
        %v3873 = vsub.s32 0, %v3872
        %v3874 = vrot.slane %v3869, %v3873
        %v3908 = vunpack.c.l.b16 %v3837
        %v3909 = vunpack.c.l.b16 %v3838
        %v3910 = vunpack.c.l.b16 %v3839
        %v3911 = vunpack.c.l.b16 %v3840
        %v3912 = vunpack.c.l.b16 %v3841
        %v3913 = vunpack.c.l.b16 %v3842
        %v3914 = vunpack.c.l.b16 %v3843
        %v3915 = vunpack.c.l.b16 %v3844
        %v3916 = vunpack.c.l.b16 %v3845
        %v3917 = vunpack.c.l.b16 %v3846
        %v3918 = vunpack.c.l.b16 %v3847
        %v3919 = vunpack.c.l.b16 %v3848
        %v3920 = vunpack.c.l.b16 %v3849
        %v3921 = vunpack.c.l.b16 %v3850
        %v3922 = vunpack.c.l.b16 %v3851
        %v3923 = vunpack.c.l.b16 %v3852
        %v3924 = vunpack.c.l.b16 %v3853
        %v3925 = vunpack.c.l.b16 %v3854
        %v3926 = vunpack.c.l.b16 %v3855
        %v3927 = vunpack.c.l.b16 %v3856
        %v3928 = vunpack.c.l.b16 %v3857
        %v3929 = vunpack.c.l.b16 %v3858
        %v3930 = vunpack.c.l.b16 %v3859
        %v3931 = vunpack.c.l.b16 %v3860
        %v3932 = vunpack.c.l.b16 %v3861
        %v3933 = vunpack.c.l.b16 %v3862
        %v3934 = vunpack.c.l.b16 %v3863
        %v3935 = vunpack.c.l.b16 %v3864
        %v3936 = vunpack.c.l.b16 %v3865
        %v3937 = vunpack.c.l.b16 %v3866
        %v3938 = vunpack.c.l.b16 %v3867
        %v3939 = vunpack.c.l.b16 %v3868
        %v3940 = vpack.c.b16 %v3909, %v3908
        %v3941 = vpack.c.b16 %v3911, %v3910
        %v3942 = vpack.c.b16 %v3913, %v3912
        %v3943 = vpack.c.b16 %v3915, %v3914
        %v3944 = vpack.c.b16 %v3917, %v3916
        %v3945 = vpack.c.b16 %v3919, %v3918
        %v3946 = vpack.c.b16 %v3921, %v3920
        %v3947 = vpack.c.b16 %v3923, %v3922
        %v3948 = vpack.c.b16 %v3925, %v3924
        %v3949 = vpack.c.b16 %v3927, %v3926
        %v3950 = vpack.c.b16 %v3929, %v3928
        %v3951 = vpack.c.b16 %v3931, %v3930
        %v3952 = vpack.c.b16 %v3933, %v3932
        %v3953 = vpack.c.b16 %v3935, %v3934
        %v3954 = vpack.c.b16 %v3937, %v3936
        %v3955 = vpack.c.b16 %v3939, %v3938
        %3972 = vmatprep.subr.bf16.mxu0 0
        %3973 = vmatpush1.bf16.msra.mxu0 %v3940
        %3974 = vmatprep.subr.bf16.mxu0 0
        %3975 = vmatpush1.bf16.msra.mxu0 %v3941
        %3976 = vmatprep.subr.bf16.mxu0 0
        %3977 = vmatpush1.bf16.msra.mxu0 %v3942
        %3978 = vmatprep.subr.bf16.mxu0 0
        %3979 = vmatpush1.bf16.msra.mxu0 %v3943
        %3980 = vmatprep.subr.bf16.mxu0 0
        %3981 = vmatpush1.bf16.msra.mxu0 %v3944
        %3982 = vmatprep.subr.bf16.mxu0 0
        %3983 = vmatpush1.bf16.msra.mxu0 %v3945
        %3984 = vmatprep.subr.bf16.mxu0 0
        %3985 = vmatpush1.bf16.msra.mxu0 %v3946
        %3986 = vmatprep.subr.bf16.mxu0 0
        %3987 = vmatpush1.bf16.msra.mxu0 %v3947
        %3988 = vmatprep.subr.bf16.mxu0 0
        %3989 = vmatpush1.bf16.msra.mxu0 %v3948
        %3990 = vmatprep.subr.bf16.mxu0 0
        %3991 = vmatpush1.bf16.msra.mxu0 %v3949
        %3992 = vmatprep.subr.bf16.mxu0 0
        %3993 = vmatpush1.bf16.msra.mxu0 %v3950
        %3994 = vmatprep.subr.bf16.mxu0 0
        %3995 = vmatpush1.bf16.msra.mxu0 %v3951
        %3996 = vmatprep.subr.bf16.mxu0 0
        %3997 = vmatpush1.bf16.msra.mxu0 %v3952
        %3998 = vmatprep.subr.bf16.mxu0 0
        %3999 = vmatpush1.bf16.msra.mxu0 %v3953
        %4000 = vmatprep.subr.bf16.mxu0 0
        %4001 = vmatpush1.bf16.msra.mxu0 %v3954
        %4002 = vmatprep.subr.bf16.mxu0 0
        %4003 = vmatpush1.bf16.msra.mxu0 %v3955
        %4004 = vmatprep.mubr.bf16.mxu0 %v3836
        %4005 = vmatmul.mubr.bf16.gmra.mrb[0].mxu0 %v3835
        %v4006 = vpop.f32.mrb[0].mxu0
        %v4007 = vadd.f32 %v3874, %v4006
        %v4008 = vpop.f32.mrb[0].mxu0
        %v4009 = vpop.f32.mrb[0].mxu0
        %v4010 = vpop.f32.mrb[0].mxu0
        %4011 = vdwg.mxu0
        %v4012 = vmul.f32 %v4007, %v731
        %v4013 = vpack.c.bf16 %v4012, %v4012
        %v4014 = vld [vmem:[#allocation17] sm:$0xf]
        %v4015 = vld [vmem:[#allocation17 + $0x4] sm:$0xf]
        %v4016 = vld [vmem:[#allocation17 + $0x8] sm:$0xf]
        %v4017 = vld [vmem:[#allocation17 + $0xc] sm:$0xf]
        %v4018 = vld [vmem:[#allocation17 + $0x10] sm:$0xf]
        %v4019 = vld [vmem:[#allocation17 + $0x14] sm:$0xf]
        %v4020 = vld [vmem:[#allocation17 + $0x18] sm:$0xf]
        %v4021 = vld [vmem:[#allocation17 + $0x1c] sm:$0xf]
        %v4022 = vld [vmem:[#allocation17 + $0x20] sm:$0xf]
        %v4023 = vld [vmem:[#allocation17 + $0x24] sm:$0xf]
        %v4024 = vld [vmem:[#allocation17 + $0x28] sm:$0xf]
        %v4025 = vld [vmem:[#allocation17 + $0x2c] sm:$0xf]
        %v4026 = vld [vmem:[#allocation17 + $0x30] sm:$0xf]
        %v4027 = vld [vmem:[#allocation17 + $0x34] sm:$0xf]
        %v4028 = vld [vmem:[#allocation17 + $0x38] sm:$0xf]
        %v4029 = vld [vmem:[#allocation17 + $0x3c] sm:$0xf]
        %v4030 = vld [vmem:[%s15] sm:$0x1]
        %v4032 = vlaneseq
        %v4033 = vshrl.u32 %v4032, 7
        %v4034 = vsub.s32 0, %v4033
        %v4035 = vrot.slane %v4030, %v4034
        %v4053 = vunpack.c.l.b16 %v4014
        %v4054 = vunpack.c.l.b16 %v4015
        %v4055 = vunpack.c.l.b16 %v4016
        %v4056 = vunpack.c.l.b16 %v4017
        %v4057 = vunpack.c.l.b16 %v4018
        %v4058 = vunpack.c.l.b16 %v4019
        %v4059 = vunpack.c.l.b16 %v4020
        %v4060 = vunpack.c.l.b16 %v4021
        %v4061 = vunpack.c.l.b16 %v4022
        %v4062 = vunpack.c.l.b16 %v4023
        %v4063 = vunpack.c.l.b16 %v4024
        %v4064 = vunpack.c.l.b16 %v4025
        %v4065 = vunpack.c.l.b16 %v4026
        %v4066 = vunpack.c.l.b16 %v4027
        %v4067 = vunpack.c.l.b16 %v4028
        %v4068 = vunpack.c.l.b16 %v4029
        %v4069 = vpack.c.b16 %v4054, %v4053
        %v4070 = vpack.c.b16 %v4056, %v4055
        %v4071 = vpack.c.b16 %v4058, %v4057
        %v4072 = vpack.c.b16 %v4060, %v4059
        %v4073 = vpack.c.b16 %v4062, %v4061
        %v4074 = vpack.c.b16 %v4064, %v4063
        %v4075 = vpack.c.b16 %v4066, %v4065
        %v4076 = vpack.c.b16 %v4068, %v4067
        %4085 = vmatprep.subr.bf16.mxu0 0
        %4086 = vmatpush1.bf16.msra.mxu0 %v4069
        %4087 = vmatprep.subr.bf16.mxu0 0
        %4088 = vmatpush1.bf16.msra.mxu0 %v4070
        %4089 = vmatprep.subr.bf16.mxu0 0
        %4090 = vmatpush1.bf16.msra.mxu0 %v4071
        %4091 = vmatprep.subr.bf16.mxu0 0
        %4092 = vmatpush1.bf16.msra.mxu0 %v4072
        %4093 = vmatprep.subr.bf16.mxu0 0
        %4094 = vmatpush1.bf16.msra.mxu0 %v4073
        %4095 = vmatprep.subr.bf16.mxu0 0
        %4096 = vmatpush1.bf16.msra.mxu0 %v4074
        %4097 = vmatprep.subr.bf16.mxu0 0
        %4098 = vmatpush1.bf16.msra.mxu0 %v4075
        %4099 = vmatprep.subr.bf16.mxu0 0
        %4100 = vmatpush1.bf16.msra.mxu0 %v4076
        %4101 = vmatprep.subr.bf16.mxu0 0
        %4102 = vmatpush1.bf16.msra.mxu0 0
        %4103 = vmatprep.subr.bf16.mxu0 0
        %4104 = vmatpush1.bf16.msra.mxu0 0
        %4105 = vmatprep.subr.bf16.mxu0 0
        %4106 = vmatpush1.bf16.msra.mxu0 0
        %4107 = vmatprep.subr.bf16.mxu0 0
        %4108 = vmatpush1.bf16.msra.mxu0 0
        %4109 = vmatprep.subr.bf16.mxu0 0
        %4110 = vmatpush1.bf16.msra.mxu0 0
        %4111 = vmatprep.subr.bf16.mxu0 0
        %4112 = vmatpush1.bf16.msra.mxu0 0
        %4113 = vmatprep.subr.bf16.mxu0 0
        %4114 = vmatpush1.bf16.msra.mxu0 0
        %4115 = vmatprep.subr.bf16.mxu0 0
        %4116 = vmatpush1.bf16.msra.mxu0 0
        %4117 = vmatprep.mubr.bf16.mxu0 0
        %4118 = vmatmul.mubr.bf16.gmra.mrb[0].mxu0 %v4013
        %v4119 = vpop.f32.mrb[0].mxu0
        %v4120 = vadd.f32 %v4035, %v4119
        %v4121 = vpop.f32.mrb[0].mxu0
        %v4122 = vpop.f32.mrb[0].mxu0
        %v4123 = vpop.f32.mrb[0].mxu0
        %4124 = vdwg.mxu0
        %v4125 = vmax.f32 %v4120, 0.0
        %4126 = vst [vmem:[%s665] sm:$0xff] %v4125
        %s4127 = sand.u32 %s387, 1
        %s4128 = scalar_lea.sflag [#allocation4], %s4127
        %s4129 = sand.u32 %s387, 1
        %s4130 = smul.addr %s4129, 8
        %s4131 = scalar_lea.vmem [#allocation19], %s4130
        // Predicated region
        $region125: #{tpu_custom_call.1} parent=83 // pred_check
          %p4132 = pneg %p397
        $region126: #{tpu_custom_call.1} parent=83 // pred_check_branch
          %4134 = sbr.rel (%p4132) target = $region128
        $region127: #{tpu_custom_call.1} parent=83 // pred_region
          %s4136 = ssub.s32 128, 128
          %4137 = vsyncadd %s4128, %s4136
          %s4138 = smul.addr %s38, 128
          %s4139 = scalar_lea.hbm %s16, %s4138
          %s4141 = sshll.u32 %s4131, 4
          %s4142 = int_to_ptr.vmem [resolvable:$true] %s4141
          %4144 = dma.vmem_to_hbm [thread:$0]  %s4142, 128, %s4139, %s4128
        $region128: #{tpu_custom_call.1} parent=83 // pred_fallthru
          _
      $region84: #{tpu_custom_call.1} parent=5 // pred_fallthru
        _
      %p4145 = scmp.le.s32.totalorder 2, %s33
      // Predicated region
      $region129: #{tpu_custom_call.1} parent=5 // pred_check
        %p4146 = pneg %p4145
      $region130: #{tpu_custom_call.1} parent=5 // pred_check_branch
        %4148 = sbr.rel (%p4146) target = $region132
      $region131: #{tpu_custom_call.1} parent=5 // pred_region
        %s4149 = ssub.s32 %s33, 2
        // Predicated region
        $region133: #{tpu_custom_call.1} parent=131 // pred_check
          %p4150 = pneg %p403
        $region134: #{tpu_custom_call.1} parent=131 // pred_check_branch
          %4152 = sbr.rel (%p4150) target = $region136
        $region135: #{tpu_custom_call.1} parent=131 // pred_region
          %s4153 = sand.u32 %s388, 1
          %s4154 = scalar_lea.sflag [#allocation4], %s4153
          %s4155 = sand.u32 %s388, 1
          %s4156 = smul.addr %s4155, 8
          %s4157 = scalar_lea.vmem [#allocation19], %s4156
          %4158 = dma.done %s4154, 128
        $region136: #{tpu_custom_call.1} parent=131 // pred_fallthru
          _
      $region132: #{tpu_custom_call.1} parent=5 // pred_fallthru
        _
    $region6: #{tpu_custom_call.1} parent=1 // loop_footer
      %s37 = sadd.s32 1, %s33
    $region7: #{tpu_custom_call.1} parent=1 // loop_footer_branch
      %32 = sbr.rel target = $region3
    $region8: #{tpu_custom_call.1} parent=1 // loop_exit
      _
    %4159 = vsyncpa [#allocation3], 1
    %s4160 = scalar_lea.sflag [#allocation3], 1
    %4161 = vsyncpa %s4160, 1
    %4162 = vsyncpa [#allocation6], 1
    %4163 = vsyncpa [#allocation9], 1
    %4164 = vsyncpa [#allocation12], 1
    %4165 = vsyncpa [#allocation15], 1
    %4166 = vsyncpa [#allocation18], 1
    %4167 = vsyncpa [#allocation4], 1
    %s4168 = scalar_lea.sflag [#allocation4], 1
    %4169 = vsyncpa %s4168, 1

</llo_original>
